<compile_context>
chip_gen: v7x
topology: tpu7x:2x2x1
jax: 0.10.0
libtpu: 0.0.40
codegen_flags: <defaults>
</compile_context>

<pallas_src>
import functools

import jax
import jax.numpy as jnp
from jax.experimental import pallas as pl
from jax.experimental.pallas import tpu as pltpu


def _ffwd_kernel(x_ref, w1_ref, b1_ref, w2_ref, b2_ref, o_ref, *, h_chunk):
    # x_ref : (tm, C) x.dtype     w1_ref: (C, H) bf16    b1_ref: (1, H) f32
    # w2_ref: (H, C)  bf16        b2_ref: (1, C) f32     o_ref : (tm, C) x.dtype
    x = x_ref[...].astype(jnp.bfloat16)          # in-kernel cast (VPU, hides under MXU)
    H = w1_ref.shape[1]
    acc = jnp.zeros(o_ref.shape, jnp.float32)
    # Hidden dim in lane-aligned slabs: keeps live intermediate small (v7x VMEM).
    for j0 in range(0, H, h_chunk):
        hs = min(h_chunk, H - j0)
        w1_j = w1_ref[:, j0:j0 + hs]             # static ref slices: free
        b1_j = b1_ref[:, j0:j0 + hs]
        w2_j = w2_ref[j0:j0 + hs, :]
        h = jnp.dot(x, w1_j, preferred_element_type=jnp.float32)
        h = jnp.maximum(h + b1_j, 0.0)           # bias + ReLU in f32 (VPU filler)
        acc = acc + jnp.dot(h.astype(jnp.bfloat16), w2_j,
                            preferred_element_type=jnp.float32)
    o_ref[...] = (acc + b2_ref[...]).astype(o_ref.dtype)   # Dropout(eval) == id


def _round_up(v, m):
    return ((v + m - 1) // m) * m


@functools.partial(jax.jit, static_argnames=("tm",))
def feed_forward(x, w1, b1, w2, b2, *, tm=1024):
    """x: (B, T, C). w1: (C, 4C) bf16, b1: (1, 4C) f32, w2: (4C, C) bf16, b2: (1, C) f32."""
    B, T, C = x.shape
    H = w1.shape[1]                               # 4 * n_embd
    M = B * T
    out_dtype = x.dtype

    # Row tile: cap at `tm`, keep the grid >= 2 steps so both v7x TensorCores
    # get work (the M axis is the "parallel" axis), and stay 16-aligned so
    # blocks satisfy the (8,128)/(16,128) tiling regardless of M % tm.
    align = 16
    if M <= align:
        tm_eff = M
    else:
        tm_eff = min(_round_up(tm, align),
                     _round_up(-(-M // 2), align),      # cdiv(M, 2), aligned
                     _round_up(M, align))
    grid_m = pl.cdiv(M, tm_eff)

    # Hidden-dim slab (lane-aligned, divides H when possible).
    h_chunk = next((c for c in (512, 384, 256, 128) if H % c == 0), H)

    # No-op casts if params were prepared once (init_params returns bf16/f32).
    w1b = w1.astype(jnp.bfloat16)
    w2b = w2.astype(jnp.bfloat16)
    b1f = b1.astype(jnp.float32)
    b2f = b2.astype(jnp.float32)

    xb = x.dtype.itemsize
    ob = jnp.dtype(out_dtype).itemsize

    # VMEM footprint -> scoped limit (headroom included; fits v5e/v6e/v7x).
    est = (2 * tm_eff * C * xb                    # x tile, double-buffered
           + 2 * tm_eff * C * ob                  # out tile, double-buffered
           + 2 * C * H * 2 + (H + C) * 4          # resident bf16 weights + f32 biases
           + tm_eff * C * 2                       # bf16 copy of x tile
           + tm_eff * h_chunk * 6                 # h slab: f32 + bf16
           + tm_eff * C * 4)                      # f32 accumulator
    vmem_limit = min(max(int(est * 1.5) + (6 << 20), 16 << 20), 56 << 20)

    flops = 4 * M * C * H                         # two (M, C, H) matmuls
    bytes_accessed = M * C * xb + M * C * ob + 2 * C * H * 2 + (H + C) * 4

    def _resident(shape):
        # Grid-invariant operand: constant index_map, single-buffered.
        return pl.BlockSpec(shape, lambda i: (0, 0),
                            pipeline_mode=pl.Buffered(1))

    kernel = functools.partial(_ffwd_kernel, h_chunk=h_chunk)

    out = pl.pallas_call(
        kernel,
        out_shape=jax.ShapeDtypeStruct((M, C), out_dtype),
        grid_spec=pltpu.PrefetchScalarGridSpec(
            num_scalar_prefetch=0,
            grid=(grid_m,),
            in_specs=[
                pl.BlockSpec((tm_eff, C), lambda i: (i, 0)),   # x row tile
                _resident((C, H)),                             # W1 (resident)
                _resident((1, H)),                             # b1
                _resident((H, C)),                             # W2 (resident)
                _resident((1, C)),                             # b2
            ],
            out_specs=pl.BlockSpec((tm_eff, C), lambda i: (i, 0)),
        ),
        compiler_params=pltpu.CompilerParams(
            dimension_semantics=("parallel",),
            vmem_limit_bytes=vmem_limit,
        ),
        cost_estimate=pl.CostEstimate(
            flops=flops, transcendentals=0, bytes_accessed=bytes_accessed),
    )(x.reshape(M, C), w1b, b1f, w2b, b2f)

    return out.reshape(B, T, C)


def init_params(key, n_embd):
    """nn.Linear-style U(-1/sqrt(fan_in), +1/sqrt(fan_in)) init.

    Weights are stored once in bf16 (biases in f32) so per-call wrapper casts
    are no-ops — no repeated HBM cast passes on the layer call path.
    """
    k1, k2, k3, k4 = jax.random.split(key, 4)
    hidden = 4 * n_embd
    bound1 = 1.0 / jnp.sqrt(n_embd)
    bound2 = 1.0 / jnp.sqrt(hidden)
    # Stored already transposed for row-major x @ W.
    w1 = jax.random.uniform(k1, (n_embd, hidden), jnp.float32, -bound1, bound1)
    b1 = jax.random.uniform(k2, (1, hidden), jnp.float32, -bound1, bound1)
    w2 = jax.random.uniform(k3, (hidden, n_embd), jnp.float32, -bound2, bound2)
    b2 = jax.random.uniform(k4, (1, n_embd), jnp.float32, -bound2, bound2)
    return (w1.astype(jnp.bfloat16), b1.astype(jnp.float32),
            w2.astype(jnp.bfloat16), b2.astype(jnp.float32))


def ref_ffwd(x, w1, b1, w2, b2):
    """Pure-JAX reference reproducing the kernel's bf16-in / f32-accumulate numerics."""
    f32 = jnp.float32
    xb = x.astype(jnp.bfloat16).astype(f32)
    w1f = w1.astype(f32)
    w2f = w2.astype(f32)
    h = jnp.maximum(xb @ w1f + b1.astype(f32), 0.0)
    hb = h.astype(jnp.bfloat16).astype(f32)
    return (hb @ w2f + b2.astype(f32)).astype(x.dtype)


if __name__ == "__main__":
    n_embd = 384

    key = jax.random.PRNGKey(0)
    kx1, kx2, kx3, kp = jax.random.split(key, 4)
    w1, b1, w2, b2 = init_params(kp, n_embd)

    def check(xin):
        y = jax.block_until_ready(feed_forward(xin, w1, b1, w2, b2))
        assert y.shape == xin.shape
        r = ref_ffwd(xin, w1, b1, w2, b2)
        assert jnp.allclose(y, r, atol=1e-2, rtol=1e-2), \
            float(jnp.max(jnp.abs(y.astype(jnp.float32) - r.astype(jnp.float32))))

    # Small case (grid of 1 step).
    check(jax.random.normal(kx1, (2, 8, n_embd), jnp.float32))

    # Larger case exercising multiple pipelined grid steps (M=1024 -> 2 steps).
    check(jax.random.normal(kx2, (4, 256, n_embd), jnp.float32))

    # Ragged case: M=300 not a multiple of the row tile (masked last block).
    check(jax.random.normal(kx3, (3, 100, n_embd), jnp.float32))

    print("KERNEL_OK")
</pallas_src>

<mosaic_0001>
module attributes {stable_mosaic.version = 11 : i64} {
  func.func @_ffwd_kernel(%arg0: i32, %arg1: memref<16x384xf32, #tpu.memory_space<vmem>>, %arg2: memref<384x1536xbf16, #tpu.memory_space<vmem>>, %arg3: memref<1x1536xf32, #tpu.memory_space<vmem>>, %arg4: memref<1536x384xbf16, #tpu.memory_space<vmem>>, %arg5: memref<1x384xf32, #tpu.memory_space<vmem>>, %arg6: memref<16x384xf32, #tpu.memory_space<vmem>>) attributes {dimension_semantics = [#tpu.dimension_semantics<parallel>], iteration_bounds = array<i64: 1>, scalar_prefetch = 0 : i64, scratch_operands = 0 : i64, tpu.core_type = #tpu.core_type<tc>, window_params = [{transform_indices = @transform_0, window_bounds = array<i64: 16, 384>}, {pipeline_mode = #tpu.pipeline_mode<synchronous>, transform_indices = @transform_1, window_bounds = array<i64: 384, 1536>}, {pipeline_mode = #tpu.pipeline_mode<synchronous>, transform_indices = @transform_2, window_bounds = array<i64: 1, 1536>}, {pipeline_mode = #tpu.pipeline_mode<synchronous>, transform_indices = @transform_3, window_bounds = array<i64: 1536, 384>}, {pipeline_mode = #tpu.pipeline_mode<synchronous>, transform_indices = @transform_4, window_bounds = array<i64: 1, 384>}, {transform_indices = @transform_5, window_bounds = array<i64: 16, 384>}]} {
    %c0 = arith.constant 0 : index
    %c0_0 = arith.constant 0 : index
    %0 = vector.load %arg1[%c0, %c0_0] : memref<16x384xf32, #tpu.memory_space<vmem>>, vector<16x384xf32>
    %1 = arith.truncf %0 : vector<16x384xf32> to vector<16x384xbf16>
    %cst = arith.constant 0.000000e+00 : f32
    %2 = vector.broadcast %cst : f32 to vector<16x384xf32>
    %c0_1 = arith.constant 0 : index
    %c0_2 = arith.constant 0 : index
    %3 = vector.load %arg2[%c0_1, %c0_2] : memref<384x1536xbf16, #tpu.memory_space<vmem>>, vector<384x512xbf16>
    %c0_3 = arith.constant 0 : index
    %c0_4 = arith.constant 0 : index
    %4 = vector.load %arg3[%c0_3, %c0_4] : memref<1x1536xf32, #tpu.memory_space<vmem>>, vector<1x512xf32>
    %c0_5 = arith.constant 0 : index
    %c0_6 = arith.constant 0 : index
    %5 = vector.load %arg4[%c0_5, %c0_6] : memref<1536x384xbf16, #tpu.memory_space<vmem>>, vector<512x384xbf16>
    %cst_7 = arith.constant dense<0.000000e+00> : vector<16x512xf32>
    %6 = tpu.matmul %1, %3, %cst_7 {dimension_numbers = #tpu.dot_dimension_numbers<[1], [0], [0], [1], [0, 0, 1, 1], [], []>} : vector<16x384xbf16>, vector<384x512xbf16>, vector<16x512xf32> -> vector<16x512xf32>
    %7 = vector.broadcast %4 : vector<1x512xf32> to vector<16x512xf32>
    %8 = arith.addf %6, %7 : vector<16x512xf32>
    %cst_8 = arith.constant 0.000000e+00 : f32
    %9 = vector.broadcast %cst_8 : f32 to vector<16x512xf32>
    %10 = arith.maximumf %8, %9 : vector<16x512xf32>
    %11 = arith.truncf %10 : vector<16x512xf32> to vector<16x512xbf16>
    %cst_9 = arith.constant dense<0.000000e+00> : vector<16x384xf32>
    %12 = tpu.matmul %11, %5, %cst_9 {dimension_numbers = #tpu.dot_dimension_numbers<[1], [0], [0], [1], [0, 0, 1, 1], [], []>} : vector<16x512xbf16>, vector<512x384xbf16>, vector<16x384xf32> -> vector<16x384xf32>
    %13 = arith.addf %2, %12 : vector<16x384xf32>
    %c0_10 = arith.constant 0 : index
    %c512 = arith.constant 512 : index
    %14 = vector.load %arg2[%c0_10, %c512] : memref<384x1536xbf16, #tpu.memory_space<vmem>>, vector<384x512xbf16>
    %c0_11 = arith.constant 0 : index
    %c512_12 = arith.constant 512 : index
    %15 = vector.load %arg3[%c0_11, %c512_12] : memref<1x1536xf32, #tpu.memory_space<vmem>>, vector<1x512xf32>
    %c512_13 = arith.constant 512 : index
    %c0_14 = arith.constant 0 : index
    %16 = vector.load %arg4[%c512_13, %c0_14] : memref<1536x384xbf16, #tpu.memory_space<vmem>>, vector<512x384xbf16>
    %cst_15 = arith.constant dense<0.000000e+00> : vector<16x512xf32>
    %17 = tpu.matmul %1, %14, %cst_15 {dimension_numbers = #tpu.dot_dimension_numbers<[1], [0], [0], [1], [0, 0, 1, 1], [], []>} : vector<16x384xbf16>, vector<384x512xbf16>, vector<16x512xf32> -> vector<16x512xf32>
    %18 = vector.broadcast %15 : vector<1x512xf32> to vector<16x512xf32>
    %19 = arith.addf %17, %18 : vector<16x512xf32>
    %cst_16 = arith.constant 0.000000e+00 : f32
    %20 = vector.broadcast %cst_16 : f32 to vector<16x512xf32>
    %21 = arith.maximumf %19, %20 : vector<16x512xf32>
    %22 = arith.truncf %21 : vector<16x512xf32> to vector<16x512xbf16>
    %cst_17 = arith.constant dense<0.000000e+00> : vector<16x384xf32>
    %23 = tpu.matmul %22, %16, %cst_17 {dimension_numbers = #tpu.dot_dimension_numbers<[1], [0], [0], [1], [0, 0, 1, 1], [], []>} : vector<16x512xbf16>, vector<512x384xbf16>, vector<16x384xf32> -> vector<16x384xf32>
    %24 = arith.addf %13, %23 : vector<16x384xf32>
    %c0_18 = arith.constant 0 : index
    %c1024 = arith.constant 1024 : index
    %25 = vector.load %arg2[%c0_18, %c1024] : memref<384x1536xbf16, #tpu.memory_space<vmem>>, vector<384x512xbf16>
    %c0_19 = arith.constant 0 : index
    %c1024_20 = arith.constant 1024 : index
    %26 = vector.load %arg3[%c0_19, %c1024_20] : memref<1x1536xf32, #tpu.memory_space<vmem>>, vector<1x512xf32>
    %c1024_21 = arith.constant 1024 : index
    %c0_22 = arith.constant 0 : index
    %27 = vector.load %arg4[%c1024_21, %c0_22] : memref<1536x384xbf16, #tpu.memory_space<vmem>>, vector<512x384xbf16>
    %cst_23 = arith.constant dense<0.000000e+00> : vector<16x512xf32>
    %28 = tpu.matmul %1, %25, %cst_23 {dimension_numbers = #tpu.dot_dimension_numbers<[1], [0], [0], [1], [0, 0, 1, 1], [], []>} : vector<16x384xbf16>, vector<384x512xbf16>, vector<16x512xf32> -> vector<16x512xf32>
    %29 = vector.broadcast %26 : vector<1x512xf32> to vector<16x512xf32>
    %30 = arith.addf %28, %29 : vector<16x512xf32>
    %cst_24 = arith.constant 0.000000e+00 : f32
    %31 = vector.broadcast %cst_24 : f32 to vector<16x512xf32>
    %32 = arith.maximumf %30, %31 : vector<16x512xf32>
    %33 = arith.truncf %32 : vector<16x512xf32> to vector<16x512xbf16>
    %cst_25 = arith.constant dense<0.000000e+00> : vector<16x384xf32>
    %34 = tpu.matmul %33, %27, %cst_25 {dimension_numbers = #tpu.dot_dimension_numbers<[1], [0], [0], [1], [0, 0, 1, 1], [], []>} : vector<16x512xbf16>, vector<512x384xbf16>, vector<16x384xf32> -> vector<16x384xf32>
    %35 = arith.addf %24, %34 : vector<16x384xf32>
    %c0_26 = arith.constant 0 : index
    %c0_27 = arith.constant 0 : index
    %36 = vector.load %arg5[%c0_26, %c0_27] : memref<1x384xf32, #tpu.memory_space<vmem>>, vector<1x384xf32>
    %37 = vector.broadcast %36 : vector<1x384xf32> to vector<16x384xf32>
    %38 = arith.addf %35, %37 : vector<16x384xf32>
    %c0_28 = arith.constant 0 : index
    %c0_29 = arith.constant 0 : index
    %39 = vector.load %arg6[%c0_28, %c0_29] : memref<16x384xf32, #tpu.memory_space<vmem>>, vector<16x384xf32>
    tpu.vector_store %arg6[%c0_28, %c0_29], %38 {strides = array<i32>} : memref<16x384xf32, #tpu.memory_space<vmem>>, vector<16x384xf32>,
    return
  }
  func.func @transform_0(%arg0: i32) -> (i32, i32) {
    %c0_i32 = arith.constant 0 : i32
    %c0_i32_0 = arith.constant 0 : i32
    return %arg0, %c0_i32 : i32, i32
  }
  func.func @transform_1(%arg0: i32) -> (i32, i32) {
    %c0_i32 = arith.constant 0 : i32
    %c0_i32_0 = arith.constant 0 : i32
    %c0_i32_1 = arith.constant 0 : i32
    return %c0_i32, %c0_i32_0 : i32, i32
  }
  func.func @transform_2(%arg0: i32) -> (i32, i32) {
    %c0_i32 = arith.constant 0 : i32
    %c0_i32_0 = arith.constant 0 : i32
    %c0_i32_1 = arith.constant 0 : i32
    return %c0_i32, %c0_i32_0 : i32, i32
  }
  func.func @transform_3(%arg0: i32) -> (i32, i32) {
    %c0_i32 = arith.constant 0 : i32
    %c0_i32_0 = arith.constant 0 : i32
    %c0_i32_1 = arith.constant 0 : i32
    return %c0_i32, %c0_i32_0 : i32, i32
  }
  func.func @transform_4(%arg0: i32) -> (i32, i32) {
    %c0_i32 = arith.constant 0 : i32
    %c0_i32_0 = arith.constant 0 : i32
    %c0_i32_1 = arith.constant 0 : i32
    return %c0_i32, %c0_i32_0 : i32, i32
  }
  func.func @transform_5(%arg0: i32) -> (i32, i32) {
    %c0_i32 = arith.constant 0 : i32
    %c0_i32_0 = arith.constant 0 : i32
    return %arg0, %c0_i32 : i32, i32
  }
}

</mosaic_0001>

<llo_original>
// kernel: feed_forward.1
$region0: #{feed_forward.1}
  #allocation0 [shape = 'u32[]', space=smem, size = 0x4, offset = 0x4, fixed_abs, tag = 'smem constant byte address 0x4 - core index']
  #allocation1 [shape = 'u32[144,128]{1,0:T(1,128)}', space=vmem, size = 0x12000, scoped, tag = 'internal scratch']
  %s0 = inlined_call_operand.hbm [shape: f32[16,384], index: 0, kind: input, shape index: {}]
  %s1 = inlined_call_operand.hbm [shape: bf16[384,1536], index: 1, kind: input, shape index: {}]
  %s2 = inlined_call_operand.hbm [shape: f32[1,1536], index: 2, kind: input, shape index: {}]
  %s3 = inlined_call_operand.hbm [shape: bf16[1536,384], index: 3, kind: input, shape index: {}]
  %s4 = inlined_call_operand.hbm [shape: f32[1,384], index: 4, kind: input, shape index: {}]
  %s5 = inlined_call_operand.hbm [shape: f32[16,384], index: 5, kind: output, shape index: {}]
  %s6 = sld [smem:[#allocation0]]
  $region50: #{feed_forward.1} parent=0
    _
  %s8 = ssub.s32 1, %s6
  %s9 = scalar_select 0, %s8, %s6
  $region1: #{feed_forward.1} parent=0
    #allocation2 [shape = 'u8[24576]{0}', space=vmem, size = 0x6000, scoped, tag = 'input window, operand 0, single buffered']
    #allocation3 [shape = 's32[1]{0}', space=sflag, size = 0x4, scoped, tag = 'scoped memory for feed_forward.1']
    #allocation4 [shape = 's32[1]{0}', space=sflag, size = 0x4, scoped, tag = 'scoped memory for feed_forward.1']
    #allocation5 [shape = 'u8[1179648]{0}', space=vmem, size = 0x120000, scoped, tag = 'input window, operand 1, single buffered']
    #allocation6 [shape = 's32[1]{0}', space=sflag, size = 0x4, scoped, tag = 'scoped memory for feed_forward.1']
    #allocation7 [shape = 'u8[6144]{0}', space=vmem, size = 0x1800, scoped, tag = 'input window, operand 2, single buffered']
    #allocation8 [shape = 'u8[1179648]{0}', space=vmem, size = 0x120000, scoped, tag = 'input window, operand 3, single buffered']
    #allocation9 [shape = 's32[1]{0}', space=sflag, size = 0x4, scoped, tag = 'scoped memory for feed_forward.1']
    #allocation10 [shape = 'u8[1536]{0}', space=vmem, size = 0x800, scoped, tag = 'input window, operand 4, single buffered']
    #allocation11 [shape = 'u8[24576]{0}', space=vmem, size = 0x6000, scoped, tag = 'output window, operand 0, single buffered']
    %10 = vsyncpa [#allocation3], 0
    %11 = vsyncpa [#allocation6], 0
    %12 = vsyncpa [#allocation9], 0
    %13 = vsyncpa [#allocation4], 0
    // Predicated region
    $region2: #{feed_forward.1} parent=1 // pred_check
      _
    $region3: #{feed_forward.1} parent=1 // pred_check_branch
      %15 = sbr.rel (0) target = $region5
    $region4: #{feed_forward.1} parent=1 // pred_region
      %s17 = ssub.s32 768, 768
      %18 = vsyncadd [#allocation3], %s17
      %s19 = sshll.u32 [#allocation2], 4
      %s20 = int_to_ptr.vmem [resolvable:$true] %s19
      %25 = dma.hbm_to_vmem [thread:$0]  %s0, 768, %s20, [#allocation3], 384, 384, 24
    $region5: #{feed_forward.1} parent=1 // pred_fallthru
      _
    // Predicated region
    $region6: #{feed_forward.1} parent=1 // pred_check
      _
    $region7: #{feed_forward.1} parent=1 // pred_check_branch
      %27 = sbr.rel (0) target = $region9
    $region8: #{feed_forward.1} parent=1 // pred_region
      %s29 = ssub.s32 36864, 36864
      %30 = vsyncadd [#allocation6], %s29
      %s31 = sshll.u32 [#allocation5], 4
      %s32 = int_to_ptr.vmem [resolvable:$true] %s31
      %37 = dma.hbm_to_vmem [thread:$0]  %s1, 36864, %s32, [#allocation6], 768, 768, 48
    $region9: #{feed_forward.1} parent=1 // pred_fallthru
      _
    // Predicated region
    $region10: #{feed_forward.1} parent=1 // pred_check
      _
    $region11: #{feed_forward.1} parent=1 // pred_check_branch
      %39 = sbr.rel (0) target = $region13
    $region12: #{feed_forward.1} parent=1 // pred_region
      %s41 = ssub.s32 192, 192
      %42 = vsyncadd [#allocation6], %s41
      %s44 = sshll.u32 [#allocation7], 4
      %s45 = int_to_ptr.vmem [resolvable:$true] %s44
      %47 = dma.hbm_to_vmem [thread:$0]  %s2, 192, %s45, [#allocation6]
    $region13: #{feed_forward.1} parent=1 // pred_fallthru
      _
    // Predicated region
    $region14: #{feed_forward.1} parent=1 // pred_check
      _
    $region15: #{feed_forward.1} parent=1 // pred_check_branch
      %49 = sbr.rel (0) target = $region17
    $region16: #{feed_forward.1} parent=1 // pred_region
      %s51 = ssub.s32 36864, 36864
      %52 = vsyncadd [#allocation9], %s51
      %s53 = sshll.u32 [#allocation8], 4
      %s54 = int_to_ptr.vmem [resolvable:$true] %s53
      %59 = dma.hbm_to_vmem [thread:$0]  %s3, 36864, %s54, [#allocation9], 192, 192, 12
    $region17: #{feed_forward.1} parent=1 // pred_fallthru
      _
    // Predicated region
    $region18: #{feed_forward.1} parent=1 // pred_check
      _
    $region19: #{feed_forward.1} parent=1 // pred_check_branch
      %61 = sbr.rel (0) target = $region21
    $region20: #{feed_forward.1} parent=1 // pred_region
      %s63 = ssub.s32 48, 48
      %64 = vsyncadd [#allocation9], %s63
      %s66 = sshll.u32 [#allocation10], 4
      %s67 = int_to_ptr.vmem [resolvable:$true] %s66
      %69 = dma.hbm_to_vmem [thread:$0]  %s4, 48, %s67, [#allocation9]
    $region21: #{feed_forward.1} parent=1 // pred_fallthru
      _
    // Predicated region
    $region22: #{feed_forward.1} parent=1 // pred_check
      _
    $region23: #{feed_forward.1} parent=1 // pred_check_branch
      %71 = sbr.rel (0) target = $region25
    $region24: #{feed_forward.1} parent=1 // pred_region
      %72 = dma.done [#allocation3], 768
    $region25: #{feed_forward.1} parent=1 // pred_fallthru
      _
    // Predicated region
    $region26: #{feed_forward.1} parent=1 // pred_check
      _
    $region27: #{feed_forward.1} parent=1 // pred_check_branch
      %74 = sbr.rel (0) target = $region29
    $region28: #{feed_forward.1} parent=1 // pred_region
      %75 = dma.done [#allocation6], 36864
    $region29: #{feed_forward.1} parent=1 // pred_fallthru
      _
    // Predicated region
    $region30: #{feed_forward.1} parent=1 // pred_check
      _
    $region31: #{feed_forward.1} parent=1 // pred_check_branch
      %77 = sbr.rel (0) target = $region33
    $region32: #{feed_forward.1} parent=1 // pred_region
      %78 = dma.done [#allocation6], 192
    $region33: #{feed_forward.1} parent=1 // pred_fallthru
      _
    // Predicated region
    $region34: #{feed_forward.1} parent=1 // pred_check
      _
    $region35: #{feed_forward.1} parent=1 // pred_check_branch
      %80 = sbr.rel (0) target = $region37
    $region36: #{feed_forward.1} parent=1 // pred_region
      %81 = dma.done [#allocation9], 36864
    $region37: #{feed_forward.1} parent=1 // pred_fallthru
      _
    // Predicated region
    $region38: #{feed_forward.1} parent=1 // pred_check
      _
    $region39: #{feed_forward.1} parent=1 // pred_check_branch
      %83 = sbr.rel (0) target = $region41
    $region40: #{feed_forward.1} parent=1 // pred_region
      %84 = dma.done [#allocation9], 48
    $region41: #{feed_forward.1} parent=1 // pred_fallthru
      _
    %v86 = vld [vmem:[#allocation2] sm:$0xff]
    %v87 = vld [vmem:[#allocation2 + $0x8] sm:$0xff]
    %v88 = vld [vmem:[#allocation2 + $0x10] sm:$0xff]
    %v89 = vld [vmem:[#allocation2 + $0x18] sm:$0xff]
    %v90 = vld [vmem:[#allocation2 + $0x20] sm:$0xff]
    %v91 = vld [vmem:[#allocation2 + $0x28] sm:$0xff]
    %v92 = vpack.c.bf16 %v89, %v86
    %v93 = vpack.c.bf16 %v90, %v87
    %v94 = vpack.c.bf16 %v91, %v88
    %v95 = vld [vmem:[#allocation5] sm:$0xff]
    %v96 = vld [vmem:[#allocation5 + $0x8] sm:$0xff]
    %v97 = vld [vmem:[#allocation5 + $0x30] sm:$0xff]
    %v98 = vld [vmem:[#allocation5 + $0x38] sm:$0xff]
    %v99 = vld [vmem:[#allocation5 + $0x60] sm:$0xff]
    %v100 = vld [vmem:[#allocation5 + $0x68] sm:$0xff]
    %v101 = vld [vmem:[#allocation5 + $0x90] sm:$0xff]
    %v102 = vld [vmem:[#allocation5 + $0x98] sm:$0xff]
    %v103 = vld [vmem:[#allocation5 + $0xc0] sm:$0xff]
    %v104 = vld [vmem:[#allocation5 + $0xc8] sm:$0xff]
    %v105 = vld [vmem:[#allocation5 + $0xf0] sm:$0xff]
    %v106 = vld [vmem:[#allocation5 + $0xf8] sm:$0xff]
    %v107 = vld [vmem:[#allocation5 + $0x120] sm:$0xff]
    %v108 = vld [vmem:[#allocation5 + $0x128] sm:$0xff]
    %v109 = vld [vmem:[#allocation5 + $0x150] sm:$0xff]
    %v110 = vld [vmem:[#allocation5 + $0x158] sm:$0xff]
    %v111 = vld [vmem:[#allocation5 + $0x180] sm:$0xff]
    %v112 = vld [vmem:[#allocation5 + $0x188] sm:$0xff]
    %v113 = vld [vmem:[#allocation5 + $0x1b0] sm:$0xff]
    %v114 = vld [vmem:[#allocation5 + $0x1b8] sm:$0xff]
    %v115 = vld [vmem:[#allocation5 + $0x1e0] sm:$0xff]
    %v116 = vld [vmem:[#allocation5 + $0x1e8] sm:$0xff]
    %v117 = vld [vmem:[#allocation5 + $0x210] sm:$0xff]
    %v118 = vld [vmem:[#allocation5 + $0x218] sm:$0xff]
    %v119 = vld [vmem:[#allocation5 + $0x240] sm:$0xff]
    %v120 = vld [vmem:[#allocation5 + $0x248] sm:$0xff]
    %v121 = vld [vmem:[#allocation5 + $0x270] sm:$0xff]
    %v122 = vld [vmem:[#allocation5 + $0x278] sm:$0xff]
    %v123 = vld [vmem:[#allocation5 + $0x2a0] sm:$0xff]
    %v124 = vld [vmem:[#allocation5 + $0x2a8] sm:$0xff]
    %v125 = vld [vmem:[#allocation5 + $0x2d0] sm:$0xff]
    %v126 = vld [vmem:[#allocation5 + $0x2d8] sm:$0xff]
    %v127 = vld [vmem:[#allocation5 + $0x300] sm:$0xff]
    %v128 = vld [vmem:[#allocation5 + $0x308] sm:$0xff]
    %v129 = vld [vmem:[#allocation5 + $0x330] sm:$0xff]
    %v130 = vld [vmem:[#allocation5 + $0x338] sm:$0xff]
    %v131 = vld [vmem:[#allocation5 + $0x360] sm:$0xff]
    %v132 = vld [vmem:[#allocation5 + $0x368] sm:$0xff]
    %v133 = vld [vmem:[#allocation5 + $0x390] sm:$0xff]
    %v134 = vld [vmem:[#allocation5 + $0x398] sm:$0xff]
    %v135 = vld [vmem:[#allocation5 + $0x3c0] sm:$0xff]
    %v136 = vld [vmem:[#allocation5 + $0x3c8] sm:$0xff]
    %v137 = vld [vmem:[#allocation5 + $0x3f0] sm:$0xff]
    %v138 = vld [vmem:[#allocation5 + $0x3f8] sm:$0xff]
    %v139 = vld [vmem:[#allocation5 + $0x420] sm:$0xff]
    %v140 = vld [vmem:[#allocation5 + $0x428] sm:$0xff]
    %v141 = vld [vmem:[#allocation5 + $0x450] sm:$0xff]
    %v142 = vld [vmem:[#allocation5 + $0x458] sm:$0xff]
    %v143 = vld [vmem:[#allocation5 + $0x480] sm:$0xff]
    %v144 = vld [vmem:[#allocation5 + $0x488] sm:$0xff]
    %v145 = vld [vmem:[#allocation5 + $0x4b0] sm:$0xff]
    %v146 = vld [vmem:[#allocation5 + $0x4b8] sm:$0xff]
    %v147 = vld [vmem:[#allocation5 + $0x4e0] sm:$0xff]
    %v148 = vld [vmem:[#allocation5 + $0x4e8] sm:$0xff]
    %v149 = vld [vmem:[#allocation5 + $0x510] sm:$0xff]
    %v150 = vld [vmem:[#allocation5 + $0x518] sm:$0xff]
    %v151 = vld [vmem:[#allocation5 + $0x540] sm:$0xff]
    %v152 = vld [vmem:[#allocation5 + $0x548] sm:$0xff]
    %v153 = vld [vmem:[#allocation5 + $0x570] sm:$0xff]
    %v154 = vld [vmem:[#allocation5 + $0x578] sm:$0xff]
    %v155 = vld [vmem:[#allocation5 + $0x5a0] sm:$0xff]
    %v156 = vld [vmem:[#allocation5 + $0x5a8] sm:$0xff]
    %v157 = vld [vmem:[#allocation5 + $0x5d0] sm:$0xff]
    %v158 = vld [vmem:[#allocation5 + $0x5d8] sm:$0xff]
    %v159 = vld [vmem:[#allocation5 + $0x600] sm:$0xff]
    %v160 = vld [vmem:[#allocation5 + $0x608] sm:$0xff]
    %v161 = vld [vmem:[#allocation5 + $0x630] sm:$0xff]
    %v162 = vld [vmem:[#allocation5 + $0x638] sm:$0xff]
    %v163 = vld [vmem:[#allocation5 + $0x660] sm:$0xff]
    %v164 = vld [vmem:[#allocation5 + $0x668] sm:$0xff]
    %v165 = vld [vmem:[#allocation5 + $0x690] sm:$0xff]
    %v166 = vld [vmem:[#allocation5 + $0x698] sm:$0xff]
    %v167 = vld [vmem:[#allocation5 + $0x6c0] sm:$0xff]
    %v168 = vld [vmem:[#allocation5 + $0x6c8] sm:$0xff]
    %v169 = vld [vmem:[#allocation5 + $0x6f0] sm:$0xff]
    %v170 = vld [vmem:[#allocation5 + $0x6f8] sm:$0xff]
    %v171 = vld [vmem:[#allocation5 + $0x720] sm:$0xff]
    %v172 = vld [vmem:[#allocation5 + $0x728] sm:$0xff]
    %v173 = vld [vmem:[#allocation5 + $0x750] sm:$0xff]
    %v174 = vld [vmem:[#allocation5 + $0x758] sm:$0xff]
    %v175 = vld [vmem:[#allocation5 + $0x780] sm:$0xff]
    %v176 = vld [vmem:[#allocation5 + $0x788] sm:$0xff]
    %v177 = vld [vmem:[#allocation5 + $0x7b0] sm:$0xff]
    %v178 = vld [vmem:[#allocation5 + $0x7b8] sm:$0xff]
    %v179 = vld [vmem:[#allocation5 + $0x7e0] sm:$0xff]
    %v180 = vld [vmem:[#allocation5 + $0x7e8] sm:$0xff]
    %v181 = vld [vmem:[#allocation5 + $0x810] sm:$0xff]
    %v182 = vld [vmem:[#allocation5 + $0x818] sm:$0xff]
    %v183 = vld [vmem:[#allocation5 + $0x840] sm:$0xff]
    %v184 = vld [vmem:[#allocation5 + $0x848] sm:$0xff]
    %v185 = vld [vmem:[#allocation5 + $0x870] sm:$0xff]
    %v186 = vld [vmem:[#allocation5 + $0x878] sm:$0xff]
    %v187 = vld [vmem:[#allocation5 + $0x8a0] sm:$0xff]
    %v188 = vld [vmem:[#allocation5 + $0x8a8] sm:$0xff]
    %v189 = vld [vmem:[#allocation5 + $0x8d0] sm:$0xff]
    %v190 = vld [vmem:[#allocation5 + $0x8d8] sm:$0xff]
    %v191 = vld [vmem:[#allocation7] sm:$0xf]
    %v192 = vld [vmem:[#allocation8] sm:$0xff]
    %v193 = vld [vmem:[#allocation8 + $0x8] sm:$0xf]
    %v194 = vld [vmem:[#allocation8 + $0xc] sm:$0xff]
    %v195 = vld [vmem:[#allocation8 + $0x14] sm:$0xf]
    %v196 = vld [vmem:[#allocation8 + $0x18] sm:$0xff]
    %v197 = vld [vmem:[#allocation8 + $0x20] sm:$0xf]
    %v198 = vld [vmem:[#allocation8 + $0x24] sm:$0xff]
    %v199 = vld [vmem:[#allocation8 + $0x2c] sm:$0xf]
    %v200 = vld [vmem:[#allocation8 + $0x30] sm:$0xff]
    %v201 = vld [vmem:[#allocation8 + $0x38] sm:$0xf]
    %v202 = vld [vmem:[#allocation8 + $0x3c] sm:$0xff]
    %v203 = vld [vmem:[#allocation8 + $0x44] sm:$0xf]
    %v204 = vld [vmem:[#allocation8 + $0x48] sm:$0xff]
    %v205 = vld [vmem:[#allocation8 + $0x50] sm:$0xf]
    %v206 = vld [vmem:[#allocation8 + $0x54] sm:$0xff]
    %v207 = vld [vmem:[#allocation8 + $0x5c] sm:$0xf]
    %v208 = vld [vmem:[#allocation8 + $0x60] sm:$0xff]
    %v209 = vld [vmem:[#allocation8 + $0x68] sm:$0xf]
    %v210 = vld [vmem:[#allocation8 + $0x6c] sm:$0xff]
    %v211 = vld [vmem:[#allocation8 + $0x74] sm:$0xf]
    %v212 = vld [vmem:[#allocation8 + $0x78] sm:$0xff]
    %v213 = vld [vmem:[#allocation8 + $0x80] sm:$0xf]
    %v214 = vld [vmem:[#allocation8 + $0x84] sm:$0xff]
    %v215 = vld [vmem:[#allocation8 + $0x8c] sm:$0xf]
    %v216 = vld [vmem:[#allocation8 + $0x90] sm:$0xff]
    %v217 = vld [vmem:[#allocation8 + $0x98] sm:$0xf]
    %v218 = vld [vmem:[#allocation8 + $0x9c] sm:$0xff]
    %v219 = vld [vmem:[#allocation8 + $0xa4] sm:$0xf]
    %v220 = vld [vmem:[#allocation8 + $0xa8] sm:$0xff]
    %v221 = vld [vmem:[#allocation8 + $0xb0] sm:$0xf]
    %v222 = vld [vmem:[#allocation8 + $0xb4] sm:$0xff]
    %v223 = vld [vmem:[#allocation8 + $0xbc] sm:$0xf]
    %v224 = vld [vmem:[#allocation8 + $0xc0] sm:$0xff]
    %v225 = vld [vmem:[#allocation8 + $0xc8] sm:$0xf]
    %v226 = vld [vmem:[#allocation8 + $0xcc] sm:$0xff]
    %v227 = vld [vmem:[#allocation8 + $0xd4] sm:$0xf]
    %v228 = vld [vmem:[#allocation8 + $0xd8] sm:$0xff]
    %v229 = vld [vmem:[#allocation8 + $0xe0] sm:$0xf]
    %v230 = vld [vmem:[#allocation8 + $0xe4] sm:$0xff]
    %v231 = vld [vmem:[#allocation8 + $0xec] sm:$0xf]
    %v232 = vld [vmem:[#allocation8 + $0xf0] sm:$0xff]
    %v233 = vld [vmem:[#allocation8 + $0xf8] sm:$0xf]
    %v234 = vld [vmem:[#allocation8 + $0xfc] sm:$0xff]
    %v235 = vld [vmem:[#allocation8 + $0x104] sm:$0xf]
    %v236 = vld [vmem:[#allocation8 + $0x108] sm:$0xff]
    %v237 = vld [vmem:[#allocation8 + $0x110] sm:$0xf]
    %v238 = vld [vmem:[#allocation8 + $0x114] sm:$0xff]
    %v239 = vld [vmem:[#allocation8 + $0x11c] sm:$0xf]
    %v240 = vld [vmem:[#allocation8 + $0x120] sm:$0xff]
    %v241 = vld [vmem:[#allocation8 + $0x128] sm:$0xf]
    %v242 = vld [vmem:[#allocation8 + $0x12c] sm:$0xff]
    %v243 = vld [vmem:[#allocation8 + $0x134] sm:$0xf]
    %v244 = vld [vmem:[#allocation8 + $0x138] sm:$0xff]
    %v245 = vld [vmem:[#allocation8 + $0x140] sm:$0xf]
    %v246 = vld [vmem:[#allocation8 + $0x144] sm:$0xff]
    %v247 = vld [vmem:[#allocation8 + $0x14c] sm:$0xf]
    %v248 = vld [vmem:[#allocation8 + $0x150] sm:$0xff]
    %v249 = vld [vmem:[#allocation8 + $0x158] sm:$0xf]
    %v250 = vld [vmem:[#allocation8 + $0x15c] sm:$0xff]
    %v251 = vld [vmem:[#allocation8 + $0x164] sm:$0xf]
    %v252 = vld [vmem:[#allocation8 + $0x168] sm:$0xff]
    %v253 = vld [vmem:[#allocation8 + $0x170] sm:$0xf]
    %v254 = vld [vmem:[#allocation8 + $0x174] sm:$0xff]
    %v255 = vld [vmem:[#allocation8 + $0x17c] sm:$0xf]
    %v256 = vld [vmem:[#allocation8 + $0x180] sm:$0xff]
    %v257 = vld [vmem:[#allocation8 + $0x188] sm:$0xf]
    %v258 = vld [vmem:[#allocation8 + $0x18c] sm:$0xff]
    %v259 = vld [vmem:[#allocation8 + $0x194] sm:$0xf]
    %v260 = vld [vmem:[#allocation8 + $0x198] sm:$0xff]
    %v261 = vld [vmem:[#allocation8 + $0x1a0] sm:$0xf]
    %v262 = vld [vmem:[#allocation8 + $0x1a4] sm:$0xff]
    %v263 = vld [vmem:[#allocation8 + $0x1ac] sm:$0xf]
    %v264 = vld [vmem:[#allocation8 + $0x1b0] sm:$0xff]
    %v265 = vld [vmem:[#allocation8 + $0x1b8] sm:$0xf]
    %v266 = vld [vmem:[#allocation8 + $0x1bc] sm:$0xff]
    %v267 = vld [vmem:[#allocation8 + $0x1c4] sm:$0xf]
    %v268 = vld [vmem:[#allocation8 + $0x1c8] sm:$0xff]
    %v269 = vld [vmem:[#allocation8 + $0x1d0] sm:$0xf]
    %v270 = vld [vmem:[#allocation8 + $0x1d4] sm:$0xff]
    %v271 = vld [vmem:[#allocation8 + $0x1dc] sm:$0xf]
    %v272 = vld [vmem:[#allocation8 + $0x1e0] sm:$0xff]
    %v273 = vld [vmem:[#allocation8 + $0x1e8] sm:$0xf]
    %v274 = vld [vmem:[#allocation8 + $0x1ec] sm:$0xff]
    %v275 = vld [vmem:[#allocation8 + $0x1f4] sm:$0xf]
    %v276 = vld [vmem:[#allocation8 + $0x1f8] sm:$0xff]
    %v277 = vld [vmem:[#allocation8 + $0x200] sm:$0xf]
    %v278 = vld [vmem:[#allocation8 + $0x204] sm:$0xff]
    %v279 = vld [vmem:[#allocation8 + $0x20c] sm:$0xf]
    %v280 = vld [vmem:[#allocation8 + $0x210] sm:$0xff]
    %v281 = vld [vmem:[#allocation8 + $0x218] sm:$0xf]
    %v282 = vld [vmem:[#allocation8 + $0x21c] sm:$0xff]
    %v283 = vld [vmem:[#allocation8 + $0x224] sm:$0xf]
    %v284 = vld [vmem:[#allocation8 + $0x228] sm:$0xff]
    %v285 = vld [vmem:[#allocation8 + $0x230] sm:$0xf]
    %v286 = vld [vmem:[#allocation8 + $0x234] sm:$0xff]
    %v287 = vld [vmem:[#allocation8 + $0x23c] sm:$0xf]
    %v288 = vld [vmem:[#allocation8 + $0x240] sm:$0xff]
    %v289 = vld [vmem:[#allocation8 + $0x248] sm:$0xf]
    %v290 = vld [vmem:[#allocation8 + $0x24c] sm:$0xff]
    %v291 = vld [vmem:[#allocation8 + $0x254] sm:$0xf]
    %v292 = vld [vmem:[#allocation8 + $0x258] sm:$0xff]
    %v293 = vld [vmem:[#allocation8 + $0x260] sm:$0xf]
    %v294 = vld [vmem:[#allocation8 + $0x264] sm:$0xff]
    %v295 = vld [vmem:[#allocation8 + $0x26c] sm:$0xf]
    %v296 = vld [vmem:[#allocation8 + $0x270] sm:$0xff]
    %v297 = vld [vmem:[#allocation8 + $0x278] sm:$0xf]
    %v298 = vld [vmem:[#allocation8 + $0x27c] sm:$0xff]
    %v299 = vld [vmem:[#allocation8 + $0x284] sm:$0xf]
    %v300 = vld [vmem:[#allocation8 + $0x288] sm:$0xff]
    %v301 = vld [vmem:[#allocation8 + $0x290] sm:$0xf]
    %v302 = vld [vmem:[#allocation8 + $0x294] sm:$0xff]
    %v303 = vld [vmem:[#allocation8 + $0x29c] sm:$0xf]
    %v304 = vld [vmem:[#allocation8 + $0x2a0] sm:$0xff]
    %v305 = vld [vmem:[#allocation8 + $0x2a8] sm:$0xf]
    %v306 = vld [vmem:[#allocation8 + $0x2ac] sm:$0xff]
    %v307 = vld [vmem:[#allocation8 + $0x2b4] sm:$0xf]
    %v308 = vld [vmem:[#allocation8 + $0x2b8] sm:$0xff]
    %v309 = vld [vmem:[#allocation8 + $0x2c0] sm:$0xf]
    %v310 = vld [vmem:[#allocation8 + $0x2c4] sm:$0xff]
    %v311 = vld [vmem:[#allocation8 + $0x2cc] sm:$0xf]
    %v312 = vld [vmem:[#allocation8 + $0x2d0] sm:$0xff]
    %v313 = vld [vmem:[#allocation8 + $0x2d8] sm:$0xf]
    %v314 = vld [vmem:[#allocation8 + $0x2dc] sm:$0xff]
    %v315 = vld [vmem:[#allocation8 + $0x2e4] sm:$0xf]
    %v316 = vld [vmem:[#allocation8 + $0x2e8] sm:$0xff]
    %v317 = vld [vmem:[#allocation8 + $0x2f0] sm:$0xf]
    %v318 = vld [vmem:[#allocation8 + $0x2f4] sm:$0xff]
    %v319 = vld [vmem:[#allocation8 + $0x2fc] sm:$0xf]
    %v321 = vlaneseq
    %v322 = vshrl.u32 %v321, 7
    %v323 = vsub.s32 0, %v322
    %v324 = vrot.slane %v191, %v323
    %v325 = vlaneseq
    %v326 = vshrl.u32 %v325, 7
    %v327 = vsub.s32 1, %v326
    %v328 = vrot.slane %v191, %v327
    %v329 = vlaneseq
    %v330 = vshrl.u32 %v329, 7
    %v331 = vsub.s32 2, %v330
    %v332 = vrot.slane %v191, %v331
    %v333 = vlaneseq
    %v334 = vshrl.u32 %v333, 7
    %v335 = vsub.s32 3, %v334
    %v336 = vrot.slane %v191, %v335
    %v437 = vunpack.c.l.b16 %v95
    %v438 = vunpack.c.h.b16 %v95
    %v439 = vunpack.c.l.b16 %v96
    %v440 = vunpack.c.h.b16 %v96
    %v441 = vunpack.c.l.b16 %v97
    %v442 = vunpack.c.h.b16 %v97
    %v443 = vunpack.c.l.b16 %v98
    %v444 = vunpack.c.h.b16 %v98
    %v445 = vunpack.c.l.b16 %v99
    %v446 = vunpack.c.h.b16 %v99
    %v447 = vunpack.c.l.b16 %v100
    %v448 = vunpack.c.h.b16 %v100
    %v449 = vunpack.c.l.b16 %v101
    %v450 = vunpack.c.h.b16 %v101
    %v451 = vunpack.c.l.b16 %v102
    %v452 = vunpack.c.h.b16 %v102
    %v453 = vunpack.c.l.b16 %v103
    %v454 = vunpack.c.h.b16 %v103
    %v455 = vunpack.c.l.b16 %v104
    %v456 = vunpack.c.h.b16 %v104
    %v457 = vunpack.c.l.b16 %v105
    %v458 = vunpack.c.h.b16 %v105
    %v459 = vunpack.c.l.b16 %v106
    %v460 = vunpack.c.h.b16 %v106
    %v461 = vunpack.c.l.b16 %v107
    %v462 = vunpack.c.h.b16 %v107
    %v463 = vunpack.c.l.b16 %v108
    %v464 = vunpack.c.h.b16 %v108
    %v465 = vunpack.c.l.b16 %v109
    %v466 = vunpack.c.h.b16 %v109
    %v467 = vunpack.c.l.b16 %v110
    %v468 = vunpack.c.h.b16 %v110
    %v469 = vunpack.c.l.b16 %v111
    %v470 = vunpack.c.h.b16 %v111
    %v471 = vunpack.c.l.b16 %v112
    %v472 = vunpack.c.h.b16 %v112
    %v473 = vunpack.c.l.b16 %v113
    %v474 = vunpack.c.h.b16 %v113
    %v475 = vunpack.c.l.b16 %v114
    %v476 = vunpack.c.h.b16 %v114
    %v477 = vunpack.c.l.b16 %v115
    %v478 = vunpack.c.h.b16 %v115
    %v479 = vunpack.c.l.b16 %v116
    %v480 = vunpack.c.h.b16 %v116
    %v481 = vunpack.c.l.b16 %v117
    %v482 = vunpack.c.h.b16 %v117
    %v483 = vunpack.c.l.b16 %v118
    %v484 = vunpack.c.h.b16 %v118
    %v485 = vunpack.c.l.b16 %v119
    %v486 = vunpack.c.h.b16 %v119
    %v487 = vunpack.c.l.b16 %v120
    %v488 = vunpack.c.h.b16 %v120
    %v489 = vunpack.c.l.b16 %v121
    %v490 = vunpack.c.h.b16 %v121
    %v491 = vunpack.c.l.b16 %v122
    %v492 = vunpack.c.h.b16 %v122
    %v493 = vunpack.c.l.b16 %v123
    %v494 = vunpack.c.h.b16 %v123
    %v495 = vunpack.c.l.b16 %v124
    %v496 = vunpack.c.h.b16 %v124
    %v497 = vunpack.c.l.b16 %v125
    %v498 = vunpack.c.h.b16 %v125
    %v499 = vunpack.c.l.b16 %v126
    %v500 = vunpack.c.h.b16 %v126
    %v501 = vunpack.c.l.b16 %v127
    %v502 = vunpack.c.h.b16 %v127
    %v503 = vunpack.c.l.b16 %v128
    %v504 = vunpack.c.h.b16 %v128
    %v505 = vunpack.c.l.b16 %v129
    %v506 = vunpack.c.h.b16 %v129
    %v507 = vunpack.c.l.b16 %v130
    %v508 = vunpack.c.h.b16 %v130
    %v509 = vunpack.c.l.b16 %v131
    %v510 = vunpack.c.h.b16 %v131
    %v511 = vunpack.c.l.b16 %v132
    %v512 = vunpack.c.h.b16 %v132
    %v513 = vunpack.c.l.b16 %v133
    %v514 = vunpack.c.h.b16 %v133
    %v515 = vunpack.c.l.b16 %v134
    %v516 = vunpack.c.h.b16 %v134
    %v517 = vunpack.c.l.b16 %v135
    %v518 = vunpack.c.h.b16 %v135
    %v519 = vunpack.c.l.b16 %v136
    %v520 = vunpack.c.h.b16 %v136
    %v521 = vunpack.c.l.b16 %v137
    %v522 = vunpack.c.h.b16 %v137
    %v523 = vunpack.c.l.b16 %v138
    %v524 = vunpack.c.h.b16 %v138
    %v525 = vunpack.c.l.b16 %v139
    %v526 = vunpack.c.h.b16 %v139
    %v527 = vunpack.c.l.b16 %v140
    %v528 = vunpack.c.h.b16 %v140
    %v529 = vunpack.c.l.b16 %v141
    %v530 = vunpack.c.h.b16 %v141
    %v531 = vunpack.c.l.b16 %v142
    %v532 = vunpack.c.h.b16 %v142
    %v533 = vunpack.c.l.b16 %v143
    %v534 = vunpack.c.h.b16 %v143
    %v535 = vunpack.c.l.b16 %v144
    %v536 = vunpack.c.h.b16 %v144
    %v537 = vunpack.c.l.b16 %v145
    %v538 = vunpack.c.h.b16 %v145
    %v539 = vunpack.c.l.b16 %v146
    %v540 = vunpack.c.h.b16 %v146
    %v541 = vunpack.c.l.b16 %v147
    %v542 = vunpack.c.h.b16 %v147
    %v543 = vunpack.c.l.b16 %v148
    %v544 = vunpack.c.h.b16 %v148
    %v545 = vunpack.c.l.b16 %v149
    %v546 = vunpack.c.h.b16 %v149
    %v547 = vunpack.c.l.b16 %v150
    %v548 = vunpack.c.h.b16 %v150
    %v549 = vunpack.c.l.b16 %v151
    %v550 = vunpack.c.h.b16 %v151
    %v551 = vunpack.c.l.b16 %v152
    %v552 = vunpack.c.h.b16 %v152
    %v553 = vunpack.c.l.b16 %v153
    %v554 = vunpack.c.h.b16 %v153
    %v555 = vunpack.c.l.b16 %v154
    %v556 = vunpack.c.h.b16 %v154
    %v557 = vunpack.c.l.b16 %v155
    %v558 = vunpack.c.h.b16 %v155
    %v559 = vunpack.c.l.b16 %v156
    %v560 = vunpack.c.h.b16 %v156
    %v561 = vunpack.c.l.b16 %v157
    %v562 = vunpack.c.h.b16 %v157
    %v563 = vunpack.c.l.b16 %v158
    %v564 = vunpack.c.h.b16 %v158
    %v565 = vunpack.c.l.b16 %v159
    %v566 = vunpack.c.h.b16 %v159
    %v567 = vunpack.c.l.b16 %v160
    %v568 = vunpack.c.h.b16 %v160
    %v569 = vunpack.c.l.b16 %v161
    %v570 = vunpack.c.h.b16 %v161
    %v571 = vunpack.c.l.b16 %v162
    %v572 = vunpack.c.h.b16 %v162
    %v573 = vunpack.c.l.b16 %v163
    %v574 = vunpack.c.h.b16 %v163
    %v575 = vunpack.c.l.b16 %v164
    %v576 = vunpack.c.h.b16 %v164
    %v577 = vunpack.c.l.b16 %v165
    %v578 = vunpack.c.h.b16 %v165
    %v579 = vunpack.c.l.b16 %v166
    %v580 = vunpack.c.h.b16 %v166
    %v581 = vunpack.c.l.b16 %v167
    %v582 = vunpack.c.h.b16 %v167
    %v583 = vunpack.c.l.b16 %v168
    %v584 = vunpack.c.h.b16 %v168
    %v585 = vunpack.c.l.b16 %v169
    %v586 = vunpack.c.h.b16 %v169
    %v587 = vunpack.c.l.b16 %v170
    %v588 = vunpack.c.h.b16 %v170
    %v589 = vunpack.c.l.b16 %v171
    %v590 = vunpack.c.h.b16 %v171
    %v591 = vunpack.c.l.b16 %v172
    %v592 = vunpack.c.h.b16 %v172
    %v593 = vunpack.c.l.b16 %v173
    %v594 = vunpack.c.h.b16 %v173
    %v595 = vunpack.c.l.b16 %v174
    %v596 = vunpack.c.h.b16 %v174
    %v597 = vunpack.c.l.b16 %v175
    %v598 = vunpack.c.h.b16 %v175
    %v599 = vunpack.c.l.b16 %v176
    %v600 = vunpack.c.h.b16 %v176
    %v601 = vunpack.c.l.b16 %v177
    %v602 = vunpack.c.h.b16 %v177
    %v603 = vunpack.c.l.b16 %v178
    %v604 = vunpack.c.h.b16 %v178
    %v605 = vunpack.c.l.b16 %v179
    %v606 = vunpack.c.h.b16 %v179
    %v607 = vunpack.c.l.b16 %v180
    %v608 = vunpack.c.h.b16 %v180
    %v609 = vunpack.c.l.b16 %v181
    %v610 = vunpack.c.h.b16 %v181
    %v611 = vunpack.c.l.b16 %v182
    %v612 = vunpack.c.h.b16 %v182
    %v613 = vunpack.c.l.b16 %v183
    %v614 = vunpack.c.h.b16 %v183
    %v615 = vunpack.c.l.b16 %v184
    %v616 = vunpack.c.h.b16 %v184
    %v617 = vunpack.c.l.b16 %v185
    %v618 = vunpack.c.h.b16 %v185
    %v619 = vunpack.c.l.b16 %v186
    %v620 = vunpack.c.h.b16 %v186
    %v621 = vunpack.c.l.b16 %v187
    %v622 = vunpack.c.h.b16 %v187
    %v623 = vunpack.c.l.b16 %v188
    %v624 = vunpack.c.h.b16 %v188
    %v625 = vunpack.c.l.b16 %v189
    %v626 = vunpack.c.h.b16 %v189
    %v627 = vunpack.c.l.b16 %v190
    %v628 = vunpack.c.h.b16 %v190
    %v629 = vpack.c.b16 %v441, %v437
    %v630 = vpack.c.b16 %v442, %v438
    %v631 = vpack.c.b16 %v443, %v439
    %v632 = vpack.c.b16 %v444, %v440
    %v633 = vpack.c.b16 %v449, %v445
    %v634 = vpack.c.b16 %v450, %v446
    %v635 = vpack.c.b16 %v451, %v447
    %v636 = vpack.c.b16 %v452, %v448
    %v637 = vpack.c.b16 %v457, %v453
    %v638 = vpack.c.b16 %v458, %v454
    %v639 = vpack.c.b16 %v459, %v455
    %v640 = vpack.c.b16 %v460, %v456
    %v641 = vpack.c.b16 %v465, %v461
    %v642 = vpack.c.b16 %v466, %v462
    %v643 = vpack.c.b16 %v467, %v463
    %v644 = vpack.c.b16 %v468, %v464
    %v645 = vpack.c.b16 %v473, %v469
    %v646 = vpack.c.b16 %v474, %v470
    %v647 = vpack.c.b16 %v475, %v471
    %v648 = vpack.c.b16 %v476, %v472
    %v649 = vpack.c.b16 %v481, %v477
    %v650 = vpack.c.b16 %v482, %v478
    %v651 = vpack.c.b16 %v483, %v479
    %v652 = vpack.c.b16 %v484, %v480
    %v653 = vpack.c.b16 %v489, %v485
    %v654 = vpack.c.b16 %v490, %v486
    %v655 = vpack.c.b16 %v491, %v487
    %v656 = vpack.c.b16 %v492, %v488
    %v657 = vpack.c.b16 %v497, %v493
    %v658 = vpack.c.b16 %v498, %v494
    %v659 = vpack.c.b16 %v499, %v495
    %v660 = vpack.c.b16 %v500, %v496
    %v661 = vpack.c.b16 %v505, %v501
    %v662 = vpack.c.b16 %v506, %v502
    %v663 = vpack.c.b16 %v507, %v503
    %v664 = vpack.c.b16 %v508, %v504
    %v665 = vpack.c.b16 %v513, %v509
    %v666 = vpack.c.b16 %v514, %v510
    %v667 = vpack.c.b16 %v515, %v511
    %v668 = vpack.c.b16 %v516, %v512
    %v669 = vpack.c.b16 %v521, %v517
    %v670 = vpack.c.b16 %v522, %v518
    %v671 = vpack.c.b16 %v523, %v519
    %v672 = vpack.c.b16 %v524, %v520
    %v673 = vpack.c.b16 %v529, %v525
    %v674 = vpack.c.b16 %v530, %v526
    %v675 = vpack.c.b16 %v531, %v527
    %v676 = vpack.c.b16 %v532, %v528
    %v677 = vpack.c.b16 %v537, %v533
    %v678 = vpack.c.b16 %v538, %v534
    %v679 = vpack.c.b16 %v539, %v535
    %v680 = vpack.c.b16 %v540, %v536
    %v681 = vpack.c.b16 %v545, %v541
    %v682 = vpack.c.b16 %v546, %v542
    %v683 = vpack.c.b16 %v547, %v543
    %v684 = vpack.c.b16 %v548, %v544
    %v685 = vpack.c.b16 %v553, %v549
    %v686 = vpack.c.b16 %v554, %v550
    %v687 = vpack.c.b16 %v555, %v551
    %v688 = vpack.c.b16 %v556, %v552
    %v689 = vpack.c.b16 %v561, %v557
    %v690 = vpack.c.b16 %v562, %v558
    %v691 = vpack.c.b16 %v563, %v559
    %v692 = vpack.c.b16 %v564, %v560
    %v693 = vpack.c.b16 %v569, %v565
    %v694 = vpack.c.b16 %v570, %v566
    %v695 = vpack.c.b16 %v571, %v567
    %v696 = vpack.c.b16 %v572, %v568
    %v697 = vpack.c.b16 %v577, %v573
    %v698 = vpack.c.b16 %v578, %v574
    %v699 = vpack.c.b16 %v579, %v575
    %v700 = vpack.c.b16 %v580, %v576
    %v701 = vpack.c.b16 %v585, %v581
    %v702 = vpack.c.b16 %v586, %v582
    %v703 = vpack.c.b16 %v587, %v583
    %v704 = vpack.c.b16 %v588, %v584
    %v705 = vpack.c.b16 %v593, %v589
    %v706 = vpack.c.b16 %v594, %v590
    %v707 = vpack.c.b16 %v595, %v591
    %v708 = vpack.c.b16 %v596, %v592
    %v709 = vpack.c.b16 %v601, %v597
    %v710 = vpack.c.b16 %v602, %v598
    %v711 = vpack.c.b16 %v603, %v599
    %v712 = vpack.c.b16 %v604, %v600
    %v713 = vpack.c.b16 %v609, %v605
    %v714 = vpack.c.b16 %v610, %v606
    %v715 = vpack.c.b16 %v611, %v607
    %v716 = vpack.c.b16 %v612, %v608
    %v717 = vpack.c.b16 %v617, %v613
    %v718 = vpack.c.b16 %v618, %v614
    %v719 = vpack.c.b16 %v619, %v615
    %v720 = vpack.c.b16 %v620, %v616
    %v721 = vpack.c.b16 %v625, %v621
    %v722 = vpack.c.b16 %v626, %v622
    %v723 = vpack.c.b16 %v627, %v623
    %v724 = vpack.c.b16 %v628, %v624
    %821 = vmatprep.subr.bf16.mxu0 %v630
    %822 = vmatpush1.bf16.msra.mxu0 %v629
    %823 = vmatprep.subr.bf16.mxu0 %v634
    %824 = vmatpush1.bf16.msra.mxu0 %v633
    %825 = vmatprep.subr.bf16.mxu0 %v638
    %826 = vmatpush1.bf16.msra.mxu0 %v637
    %827 = vmatprep.subr.bf16.mxu0 %v642
    %828 = vmatpush1.bf16.msra.mxu0 %v641
    %829 = vmatprep.subr.bf16.mxu0 %v646
    %830 = vmatpush1.bf16.msra.mxu0 %v645
    %831 = vmatprep.subr.bf16.mxu0 %v650
    %832 = vmatpush1.bf16.msra.mxu0 %v649
    %833 = vmatprep.subr.bf16.mxu0 %v654
    %834 = vmatpush1.bf16.msra.mxu0 %v653
    %835 = vmatprep.subr.bf16.mxu0 %v658
    %836 = vmatpush1.bf16.msra.mxu0 %v657
    %837 = vmatprep.subr.bf16.mxu0 %v662
    %838 = vmatpush1.bf16.msra.mxu0 %v661
    %839 = vmatprep.subr.bf16.mxu0 %v666
    %840 = vmatpush1.bf16.msra.mxu0 %v665
    %841 = vmatprep.subr.bf16.mxu0 %v670
    %842 = vmatpush1.bf16.msra.mxu0 %v669
    %843 = vmatprep.subr.bf16.mxu0 %v674
    %844 = vmatpush1.bf16.msra.mxu0 %v673
    %845 = vmatprep.subr.bf16.mxu0 %v678
    %846 = vmatpush1.bf16.msra.mxu0 %v677
    %847 = vmatprep.subr.bf16.mxu0 %v682
    %848 = vmatpush1.bf16.msra.mxu0 %v681
    %849 = vmatprep.subr.bf16.mxu0 %v686
    %850 = vmatpush1.bf16.msra.mxu0 %v685
    %851 = vmatprep.subr.bf16.mxu0 %v690
    %852 = vmatpush1.bf16.msra.mxu0 %v689
    %853 = vmatprep.mubr.bf16.mxu0 %v93
    %854 = vmatmul.mubr.bf16.gmra.mrb[0].mxu0 %v92
    %v855 = vpop.f32.mrb[0].mxu0
    %v856 = vadd.f32 %v324, %v855
    %v857 = vpop.f32.mrb[0].mxu0
    %v858 = vadd.f32 %v328, %v857
    %v859 = vpop.f32.mrb[0].mxu0
    %v860 = vadd.f32 %v324, %v859
    %v861 = vpop.f32.mrb[0].mxu0
    %v862 = vadd.f32 %v328, %v861
    %863 = vdwg.mxu0
    %864 = vmatprep.subr.bf16.mxu0 %v694
    %865 = vmatpush1.bf16.msra.mxu0 %v693
    %866 = vmatprep.subr.bf16.mxu0 %v698
    %867 = vmatpush1.bf16.msra.mxu0 %v697
    %868 = vmatprep.subr.bf16.mxu0 %v702
    %869 = vmatpush1.bf16.msra.mxu0 %v701
    %870 = vmatprep.subr.bf16.mxu0 %v706
    %871 = vmatpush1.bf16.msra.mxu0 %v705
    %872 = vmatprep.subr.bf16.mxu0 %v710
    %873 = vmatpush1.bf16.msra.mxu0 %v709
    %874 = vmatprep.subr.bf16.mxu0 %v714
    %875 = vmatpush1.bf16.msra.mxu0 %v713
    %876 = vmatprep.subr.bf16.mxu0 %v718
    %877 = vmatpush1.bf16.msra.mxu0 %v717
    %878 = vmatprep.subr.bf16.mxu0 %v722
    %879 = vmatpush1.bf16.msra.mxu0 %v721
    %880 = vmatprep.subr.bf16.mxu0 0
    %881 = vmatpush1.bf16.msra.mxu0 0
    %882 = vmatprep.subr.bf16.mxu0 0
    %883 = vmatpush1.bf16.msra.mxu0 0
    %884 = vmatprep.subr.bf16.mxu0 0
    %885 = vmatpush1.bf16.msra.mxu0 0
    %886 = vmatprep.subr.bf16.mxu0 0
    %887 = vmatpush1.bf16.msra.mxu0 0
    %888 = vmatprep.subr.bf16.mxu0 0
    %889 = vmatpush1.bf16.msra.mxu0 0
    %890 = vmatprep.subr.bf16.mxu0 0
    %891 = vmatpush1.bf16.msra.mxu0 0
    %892 = vmatprep.subr.bf16.mxu0 0
    %893 = vmatpush1.bf16.msra.mxu0 0
    %894 = vmatprep.subr.bf16.mxu0 0
    %895 = vmatpush1.bf16.msra.mxu0 0
    %896 = vmatprep.mubr.bf16.mxu0 0
    %897 = vmatmul.mubr.bf16.gmra.mrb[0].mxu0 %v94
    %v898 = vpop.f32.mrb[0].mxu0
    %v899 = vadd.f32 %v856, %v898
    %v900 = vpop.f32.mrb[0].mxu0
    %v901 = vadd.f32 %v858, %v900
    %v902 = vpop.f32.mrb[0].mxu0
    %v903 = vadd.f32 %v860, %v902
    %v904 = vpop.f32.mrb[0].mxu0
    %v905 = vadd.f32 %v862, %v904
    %906 = vdwg.mxu0
    %907 = vmatprep.subr.bf16.mxu0 %v632
    %908 = vmatpush1.bf16.msra.mxu0 %v631
    %909 = vmatprep.subr.bf16.mxu0 %v636
    %910 = vmatpush1.bf16.msra.mxu0 %v635
    %911 = vmatprep.subr.bf16.mxu0 %v640
    %912 = vmatpush1.bf16.msra.mxu0 %v639
    %913 = vmatprep.subr.bf16.mxu0 %v644
    %914 = vmatpush1.bf16.msra.mxu0 %v643
    %915 = vmatprep.subr.bf16.mxu0 %v648
    %916 = vmatpush1.bf16.msra.mxu0 %v647
    %917 = vmatprep.subr.bf16.mxu0 %v652
    %918 = vmatpush1.bf16.msra.mxu0 %v651
    %919 = vmatprep.subr.bf16.mxu0 %v656
    %920 = vmatpush1.bf16.msra.mxu0 %v655
    %921 = vmatprep.subr.bf16.mxu0 %v660
    %922 = vmatpush1.bf16.msra.mxu0 %v659
    %923 = vmatprep.subr.bf16.mxu0 %v664
    %924 = vmatpush1.bf16.msra.mxu0 %v663
    %925 = vmatprep.subr.bf16.mxu0 %v668
    %926 = vmatpush1.bf16.msra.mxu0 %v667
    %927 = vmatprep.subr.bf16.mxu0 %v672
    %928 = vmatpush1.bf16.msra.mxu0 %v671
    %929 = vmatprep.subr.bf16.mxu0 %v676
    %930 = vmatpush1.bf16.msra.mxu0 %v675
    %931 = vmatprep.subr.bf16.mxu0 %v680
    %932 = vmatpush1.bf16.msra.mxu0 %v679
    %933 = vmatprep.subr.bf16.mxu0 %v684
    %934 = vmatpush1.bf16.msra.mxu0 %v683
    %935 = vmatprep.subr.bf16.mxu0 %v688
    %936 = vmatpush1.bf16.msra.mxu0 %v687
    %937 = vmatprep.subr.bf16.mxu0 %v692
    %938 = vmatpush1.bf16.msra.mxu0 %v691
    %939 = vmatprep.mubr.bf16.mxu0 %v93
    %940 = vmatmul.mubr.bf16.gmra.mrb[0].mxu0 %v92
    %v941 = vpop.f32.mrb[0].mxu0
    %v942 = vadd.f32 %v332, %v941
    %v943 = vpop.f32.mrb[0].mxu0
    %v944 = vadd.f32 %v336, %v943
    %v945 = vpop.f32.mrb[0].mxu0
    %v946 = vadd.f32 %v332, %v945
    %v947 = vpop.f32.mrb[0].mxu0
    %v948 = vadd.f32 %v336, %v947
    %949 = vdwg.mxu0
    %950 = vmatprep.subr.bf16.mxu0 %v696
    %951 = vmatpush1.bf16.msra.mxu0 %v695
    %952 = vmatprep.subr.bf16.mxu0 %v700
    %953 = vmatpush1.bf16.msra.mxu0 %v699
    %954 = vmatprep.subr.bf16.mxu0 %v704
    %955 = vmatpush1.bf16.msra.mxu0 %v703
    %956 = vmatprep.subr.bf16.mxu0 %v708
    %957 = vmatpush1.bf16.msra.mxu0 %v707
    %958 = vmatprep.subr.bf16.mxu0 %v712
    %959 = vmatpush1.bf16.msra.mxu0 %v711
    %960 = vmatprep.subr.bf16.mxu0 %v716
    %961 = vmatpush1.bf16.msra.mxu0 %v715
    %962 = vmatprep.subr.bf16.mxu0 %v720
    %963 = vmatpush1.bf16.msra.mxu0 %v719
    %964 = vmatprep.subr.bf16.mxu0 %v724
    %965 = vmatpush1.bf16.msra.mxu0 %v723
    %966 = vmatprep.subr.bf16.mxu0 0
    %967 = vmatpush1.bf16.msra.mxu0 0
    %968 = vmatprep.subr.bf16.mxu0 0
    %969 = vmatpush1.bf16.msra.mxu0 0
    %970 = vmatprep.subr.bf16.mxu0 0
    %971 = vmatpush1.bf16.msra.mxu0 0
    %972 = vmatprep.subr.bf16.mxu0 0
    %973 = vmatpush1.bf16.msra.mxu0 0
    %974 = vmatprep.subr.bf16.mxu0 0
    %975 = vmatpush1.bf16.msra.mxu0 0
    %976 = vmatprep.subr.bf16.mxu0 0
    %977 = vmatpush1.bf16.msra.mxu0 0
    %978 = vmatprep.subr.bf16.mxu0 0
    %979 = vmatpush1.bf16.msra.mxu0 0
    %980 = vmatprep.subr.bf16.mxu0 0
    %981 = vmatpush1.bf16.msra.mxu0 0
    %982 = vmatprep.mubr.bf16.mxu0 0
    %983 = vmatmul.mubr.bf16.gmra.mrb[0].mxu0 %v94
    %v984 = vpop.f32.mrb[0].mxu0
    %v985 = vadd.f32 %v942, %v984
    %v986 = vpop.f32.mrb[0].mxu0
    %v987 = vadd.f32 %v944, %v986
    %v988 = vpop.f32.mrb[0].mxu0
    %v989 = vadd.f32 %v946, %v988
    %v990 = vpop.f32.mrb[0].mxu0
    %v991 = vadd.f32 %v948, %v990
    %992 = vdwg.mxu0
    %v993 = vmax.f32 %v899, 0.0
    %v994 = vmax.f32 %v901, 0.0
    %v995 = vmax.f32 %v985, 0.0
    %v996 = vmax.f32 %v987, 0.0
    %v997 = vmax.f32 %v903, 0.0
    %v998 = vmax.f32 %v905, 0.0
    %v999 = vmax.f32 %v989, 0.0
    %v1000 = vmax.f32 %v991, 0.0
    %v1001 = vpack.c.bf16 %v997, %v993
    %v1002 = vpack.c.bf16 %v998, %v994
    %v1003 = vpack.c.bf16 %v999, %v995
    %v1004 = vpack.c.bf16 %v1000, %v996
    %v1005 = vld [vmem:[#allocation5 + $0x10] sm:$0xff]
    %v1006 = vld [vmem:[#allocation5 + $0x18] sm:$0xff]
    %v1007 = vld [vmem:[#allocation5 + $0x40] sm:$0xff]
    %v1008 = vld [vmem:[#allocation5 + $0x48] sm:$0xff]
    %v1009 = vld [vmem:[#allocation5 + $0x70] sm:$0xff]
    %v1010 = vld [vmem:[#allocation5 + $0x78] sm:$0xff]
    %v1011 = vld [vmem:[#allocation5 + $0xa0] sm:$0xff]
    %v1012 = vld [vmem:[#allocation5 + $0xa8] sm:$0xff]
    %v1013 = vld [vmem:[#allocation5 + $0xd0] sm:$0xff]
    %v1014 = vld [vmem:[#allocation5 + $0xd8] sm:$0xff]
    %v1015 = vld [vmem:[#allocation5 + $0x100] sm:$0xff]
    %v1016 = vld [vmem:[#allocation5 + $0x108] sm:$0xff]
    %v1017 = vld [vmem:[#allocation5 + $0x130] sm:$0xff]
    %v1018 = vld [vmem:[#allocation5 + $0x138] sm:$0xff]
    %v1019 = vld [vmem:[#allocation5 + $0x160] sm:$0xff]
    %v1020 = vld [vmem:[#allocation5 + $0x168] sm:$0xff]
    %v1021 = vld [vmem:[#allocation5 + $0x190] sm:$0xff]
    %v1022 = vld [vmem:[#allocation5 + $0x198] sm:$0xff]
    %v1023 = vld [vmem:[#allocation5 + $0x1c0] sm:$0xff]
    %v1024 = vld [vmem:[#allocation5 + $0x1c8] sm:$0xff]
    %v1025 = vld [vmem:[#allocation5 + $0x1f0] sm:$0xff]
    %v1026 = vld [vmem:[#allocation5 + $0x1f8] sm:$0xff]
    %v1027 = vld [vmem:[#allocation5 + $0x220] sm:$0xff]
    %v1028 = vld [vmem:[#allocation5 + $0x228] sm:$0xff]
    %v1029 = vld [vmem:[#allocation5 + $0x250] sm:$0xff]
    %v1030 = vld [vmem:[#allocation5 + $0x258] sm:$0xff]
    %v1031 = vld [vmem:[#allocation5 + $0x280] sm:$0xff]
    %v1032 = vld [vmem:[#allocation5 + $0x288] sm:$0xff]
    %v1033 = vld [vmem:[#allocation5 + $0x2b0] sm:$0xff]
    %v1034 = vld [vmem:[#allocation5 + $0x2b8] sm:$0xff]
    %v1035 = vld [vmem:[#allocation5 + $0x2e0] sm:$0xff]
    %v1036 = vld [vmem:[#allocation5 + $0x2e8] sm:$0xff]
    %v1037 = vld [vmem:[#allocation5 + $0x310] sm:$0xff]
    %v1038 = vld [vmem:[#allocation5 + $0x318] sm:$0xff]
    %v1039 = vld [vmem:[#allocation5 + $0x340] sm:$0xff]
    %v1040 = vld [vmem:[#allocation5 + $0x348] sm:$0xff]
    %v1041 = vld [vmem:[#allocation5 + $0x370] sm:$0xff]
    %v1042 = vld [vmem:[#allocation5 + $0x378] sm:$0xff]
    %v1043 = vld [vmem:[#allocation5 + $0x3a0] sm:$0xff]
    %v1044 = vld [vmem:[#allocation5 + $0x3a8] sm:$0xff]
    %v1045 = vld [vmem:[#allocation5 + $0x3d0] sm:$0xff]
    %v1046 = vld [vmem:[#allocation5 + $0x3d8] sm:$0xff]
    %v1047 = vld [vmem:[#allocation5 + $0x400] sm:$0xff]
    %v1048 = vld [vmem:[#allocation5 + $0x408] sm:$0xff]
    %v1049 = vld [vmem:[#allocation5 + $0x430] sm:$0xff]
    %v1050 = vld [vmem:[#allocation5 + $0x438] sm:$0xff]
    %v1051 = vld [vmem:[#allocation5 + $0x460] sm:$0xff]
    %v1052 = vld [vmem:[#allocation5 + $0x468] sm:$0xff]
    %v1053 = vld [vmem:[#allocation5 + $0x490] sm:$0xff]
    %v1054 = vld [vmem:[#allocation5 + $0x498] sm:$0xff]
    %v1055 = vld [vmem:[#allocation5 + $0x4c0] sm:$0xff]
    %v1056 = vld [vmem:[#allocation5 + $0x4c8] sm:$0xff]
    %v1057 = vld [vmem:[#allocation5 + $0x4f0] sm:$0xff]
    %v1058 = vld [vmem:[#allocation5 + $0x4f8] sm:$0xff]
    %v1059 = vld [vmem:[#allocation5 + $0x520] sm:$0xff]
    %v1060 = vld [vmem:[#allocation5 + $0x528] sm:$0xff]
    %v1061 = vld [vmem:[#allocation5 + $0x550] sm:$0xff]
    %v1062 = vld [vmem:[#allocation5 + $0x558] sm:$0xff]
    %v1063 = vld [vmem:[#allocation5 + $0x580] sm:$0xff]
    %v1064 = vld [vmem:[#allocation5 + $0x588] sm:$0xff]
    %v1065 = vld [vmem:[#allocation5 + $0x5b0] sm:$0xff]
    %v1066 = vld [vmem:[#allocation5 + $0x5b8] sm:$0xff]
    %v1067 = vld [vmem:[#allocation5 + $0x5e0] sm:$0xff]
    %v1068 = vld [vmem:[#allocation5 + $0x5e8] sm:$0xff]
    %v1069 = vld [vmem:[#allocation5 + $0x610] sm:$0xff]
    %v1070 = vld [vmem:[#allocation5 + $0x618] sm:$0xff]
    %v1071 = vld [vmem:[#allocation5 + $0x640] sm:$0xff]
    %v1072 = vld [vmem:[#allocation5 + $0x648] sm:$0xff]
    %v1073 = vld [vmem:[#allocation5 + $0x670] sm:$0xff]
    %v1074 = vld [vmem:[#allocation5 + $0x678] sm:$0xff]
    %v1075 = vld [vmem:[#allocation5 + $0x6a0] sm:$0xff]
    %v1076 = vld [vmem:[#allocation5 + $0x6a8] sm:$0xff]
    %v1077 = vld [vmem:[#allocation5 + $0x6d0] sm:$0xff]
    %v1078 = vld [vmem:[#allocation5 + $0x6d8] sm:$0xff]
    %v1079 = vld [vmem:[#allocation5 + $0x700] sm:$0xff]
    %v1080 = vld [vmem:[#allocation5 + $0x708] sm:$0xff]
    %v1081 = vld [vmem:[#allocation5 + $0x730] sm:$0xff]
    %v1082 = vld [vmem:[#allocation5 + $0x738] sm:$0xff]
    %v1083 = vld [vmem:[#allocation5 + $0x760] sm:$0xff]
    %v1084 = vld [vmem:[#allocation5 + $0x768] sm:$0xff]
    %v1085 = vld [vmem:[#allocation5 + $0x790] sm:$0xff]
    %v1086 = vld [vmem:[#allocation5 + $0x798] sm:$0xff]
    %v1087 = vld [vmem:[#allocation5 + $0x7c0] sm:$0xff]
    %v1088 = vld [vmem:[#allocation5 + $0x7c8] sm:$0xff]
    %v1089 = vld [vmem:[#allocation5 + $0x7f0] sm:$0xff]
    %v1090 = vld [vmem:[#allocation5 + $0x7f8] sm:$0xff]
    %v1091 = vld [vmem:[#allocation5 + $0x820] sm:$0xff]
    %v1092 = vld [vmem:[#allocation5 + $0x828] sm:$0xff]
    %v1093 = vld [vmem:[#allocation5 + $0x850] sm:$0xff]
    %v1094 = vld [vmem:[#allocation5 + $0x858] sm:$0xff]
    %v1095 = vld [vmem:[#allocation5 + $0x880] sm:$0xff]
    %v1096 = vld [vmem:[#allocation5 + $0x888] sm:$0xff]
    %v1097 = vld [vmem:[#allocation5 + $0x8b0] sm:$0xff]
    %v1098 = vld [vmem:[#allocation5 + $0x8b8] sm:$0xff]
    %v1099 = vld [vmem:[#allocation5 + $0x8e0] sm:$0xff]
    %v1100 = vld [vmem:[#allocation5 + $0x8e8] sm:$0xff]
    %v1101 = vld [vmem:[#allocation7 + $0x4] sm:$0xf]
    %v1102 = vld [vmem:[#allocation8 + $0x300] sm:$0xff]
    %v1103 = vld [vmem:[#allocation8 + $0x308] sm:$0xf]
    %v1104 = vld [vmem:[#allocation8 + $0x30c] sm:$0xff]
    %v1105 = vld [vmem:[#allocation8 + $0x314] sm:$0xf]
    %v1106 = vld [vmem:[#allocation8 + $0x318] sm:$0xff]
    %v1107 = vld [vmem:[#allocation8 + $0x320] sm:$0xf]
    %v1108 = vld [vmem:[#allocation8 + $0x324] sm:$0xff]
    %v1109 = vld [vmem:[#allocation8 + $0x32c] sm:$0xf]
    %v1110 = vld [vmem:[#allocation8 + $0x330] sm:$0xff]
    %v1111 = vld [vmem:[#allocation8 + $0x338] sm:$0xf]
    %v1112 = vld [vmem:[#allocation8 + $0x33c] sm:$0xff]
    %v1113 = vld [vmem:[#allocation8 + $0x344] sm:$0xf]
    %v1114 = vld [vmem:[#allocation8 + $0x348] sm:$0xff]
    %v1115 = vld [vmem:[#allocation8 + $0x350] sm:$0xf]
    %v1116 = vld [vmem:[#allocation8 + $0x354] sm:$0xff]
    %v1117 = vld [vmem:[#allocation8 + $0x35c] sm:$0xf]
    %v1118 = vld [vmem:[#allocation8 + $0x360] sm:$0xff]
    %v1119 = vld [vmem:[#allocation8 + $0x368] sm:$0xf]
    %v1120 = vld [vmem:[#allocation8 + $0x36c] sm:$0xff]
    %v1121 = vld [vmem:[#allocation8 + $0x374] sm:$0xf]
    %v1122 = vld [vmem:[#allocation8 + $0x378] sm:$0xff]
    %v1123 = vld [vmem:[#allocation8 + $0x380] sm:$0xf]
    %v1124 = vld [vmem:[#allocation8 + $0x384] sm:$0xff]
    %v1125 = vld [vmem:[#allocation8 + $0x38c] sm:$0xf]
    %v1126 = vld [vmem:[#allocation8 + $0x390] sm:$0xff]
    %v1127 = vld [vmem:[#allocation8 + $0x398] sm:$0xf]
    %v1128 = vld [vmem:[#allocation8 + $0x39c] sm:$0xff]
    %v1129 = vld [vmem:[#allocation8 + $0x3a4] sm:$0xf]
    %v1130 = vld [vmem:[#allocation8 + $0x3a8] sm:$0xff]
    %v1131 = vld [vmem:[#allocation8 + $0x3b0] sm:$0xf]
    %v1132 = vld [vmem:[#allocation8 + $0x3b4] sm:$0xff]
    %v1133 = vld [vmem:[#allocation8 + $0x3bc] sm:$0xf]
    %v1134 = vld [vmem:[#allocation8 + $0x3c0] sm:$0xff]
    %v1135 = vld [vmem:[#allocation8 + $0x3c8] sm:$0xf]
    %v1136 = vld [vmem:[#allocation8 + $0x3cc] sm:$0xff]
    %v1137 = vld [vmem:[#allocation8 + $0x3d4] sm:$0xf]
    %v1138 = vld [vmem:[#allocation8 + $0x3d8] sm:$0xff]
    %v1139 = vld [vmem:[#allocation8 + $0x3e0] sm:$0xf]
    %v1140 = vld [vmem:[#allocation8 + $0x3e4] sm:$0xff]
    %v1141 = vld [vmem:[#allocation8 + $0x3ec] sm:$0xf]
    %v1142 = vld [vmem:[#allocation8 + $0x3f0] sm:$0xff]
    %v1143 = vld [vmem:[#allocation8 + $0x3f8] sm:$0xf]
    %v1144 = vld [vmem:[#allocation8 + $0x3fc] sm:$0xff]
    %v1145 = vld [vmem:[#allocation8 + $0x404] sm:$0xf]
    %v1146 = vld [vmem:[#allocation8 + $0x408] sm:$0xff]
    %v1147 = vld [vmem:[#allocation8 + $0x410] sm:$0xf]
    %v1148 = vld [vmem:[#allocation8 + $0x414] sm:$0xff]
    %v1149 = vld [vmem:[#allocation8 + $0x41c] sm:$0xf]
    %v1150 = vld [vmem:[#allocation8 + $0x420] sm:$0xff]
    %v1151 = vld [vmem:[#allocation8 + $0x428] sm:$0xf]
    %v1152 = vld [vmem:[#allocation8 + $0x42c] sm:$0xff]
    %v1153 = vld [vmem:[#allocation8 + $0x434] sm:$0xf]
    %v1154 = vld [vmem:[#allocation8 + $0x438] sm:$0xff]
    %v1155 = vld [vmem:[#allocation8 + $0x440] sm:$0xf]
    %v1156 = vld [vmem:[#allocation8 + $0x444] sm:$0xff]
    %v1157 = vld [vmem:[#allocation8 + $0x44c] sm:$0xf]
    %v1158 = vld [vmem:[#allocation8 + $0x450] sm:$0xff]
    %v1159 = vld [vmem:[#allocation8 + $0x458] sm:$0xf]
    %v1160 = vld [vmem:[#allocation8 + $0x45c] sm:$0xff]
    %v1161 = vld [vmem:[#allocation8 + $0x464] sm:$0xf]
    %v1162 = vld [vmem:[#allocation8 + $0x468] sm:$0xff]
    %v1163 = vld [vmem:[#allocation8 + $0x470] sm:$0xf]
    %v1164 = vld [vmem:[#allocation8 + $0x474] sm:$0xff]
    %v1165 = vld [vmem:[#allocation8 + $0x47c] sm:$0xf]
    %v1166 = vld [vmem:[#allocation8 + $0x480] sm:$0xff]
    %v1167 = vld [vmem:[#allocation8 + $0x488] sm:$0xf]
    %v1168 = vld [vmem:[#allocation8 + $0x48c] sm:$0xff]
    %v1169 = vld [vmem:[#allocation8 + $0x494] sm:$0xf]
    %v1170 = vld [vmem:[#allocation8 + $0x498] sm:$0xff]
    %v1171 = vld [vmem:[#allocation8 + $0x4a0] sm:$0xf]
    %v1172 = vld [vmem:[#allocation8 + $0x4a4] sm:$0xff]
    %v1173 = vld [vmem:[#allocation8 + $0x4ac] sm:$0xf]
    %v1174 = vld [vmem:[#allocation8 + $0x4b0] sm:$0xff]
    %v1175 = vld [vmem:[#allocation8 + $0x4b8] sm:$0xf]
    %v1176 = vld [vmem:[#allocation8 + $0x4bc] sm:$0xff]
    %v1177 = vld [vmem:[#allocation8 + $0x4c4] sm:$0xf]
    %v1178 = vld [vmem:[#allocation8 + $0x4c8] sm:$0xff]
    %v1179 = vld [vmem:[#allocation8 + $0x4d0] sm:$0xf]
    %v1180 = vld [vmem:[#allocation8 + $0x4d4] sm:$0xff]
    %v1181 = vld [vmem:[#allocation8 + $0x4dc] sm:$0xf]
    %v1182 = vld [vmem:[#allocation8 + $0x4e0] sm:$0xff]
    %v1183 = vld [vmem:[#allocation8 + $0x4e8] sm:$0xf]
    %v1184 = vld [vmem:[#allocation8 + $0x4ec] sm:$0xff]
    %v1185 = vld [vmem:[#allocation8 + $0x4f4] sm:$0xf]
    %v1186 = vld [vmem:[#allocation8 + $0x4f8] sm:$0xff]
    %v1187 = vld [vmem:[#allocation8 + $0x500] sm:$0xf]
    %v1188 = vld [vmem:[#allocation8 + $0x504] sm:$0xff]
    %v1189 = vld [vmem:[#allocation8 + $0x50c] sm:$0xf]
    %v1190 = vld [vmem:[#allocation8 + $0x510] sm:$0xff]
    %v1191 = vld [vmem:[#allocation8 + $0x518] sm:$0xf]
    %v1192 = vld [vmem:[#allocation8 + $0x51c] sm:$0xff]
    %v1193 = vld [vmem:[#allocation8 + $0x524] sm:$0xf]
    %v1194 = vld [vmem:[#allocation8 + $0x528] sm:$0xff]
    %v1195 = vld [vmem:[#allocation8 + $0x530] sm:$0xf]
    %v1196 = vld [vmem:[#allocation8 + $0x534] sm:$0xff]
    %v1197 = vld [vmem:[#allocation8 + $0x53c] sm:$0xf]
    %v1198 = vld [vmem:[#allocation8 + $0x540] sm:$0xff]
    %v1199 = vld [vmem:[#allocation8 + $0x548] sm:$0xf]
    %v1200 = vld [vmem:[#allocation8 + $0x54c] sm:$0xff]
    %v1201 = vld [vmem:[#allocation8 + $0x554] sm:$0xf]
    %v1202 = vld [vmem:[#allocation8 + $0x558] sm:$0xff]
    %v1203 = vld [vmem:[#allocation8 + $0x560] sm:$0xf]
    %v1204 = vld [vmem:[#allocation8 + $0x564] sm:$0xff]
    %v1205 = vld [vmem:[#allocation8 + $0x56c] sm:$0xf]
    %v1206 = vld [vmem:[#allocation8 + $0x570] sm:$0xff]
    %v1207 = vld [vmem:[#allocation8 + $0x578] sm:$0xf]
    %v1208 = vld [vmem:[#allocation8 + $0x57c] sm:$0xff]
    %v1209 = vld [vmem:[#allocation8 + $0x584] sm:$0xf]
    %v1210 = vld [vmem:[#allocation8 + $0x588] sm:$0xff]
    %v1211 = vld [vmem:[#allocation8 + $0x590] sm:$0xf]
    %v1212 = vld [vmem:[#allocation8 + $0x594] sm:$0xff]
    %v1213 = vld [vmem:[#allocation8 + $0x59c] sm:$0xf]
    %v1214 = vld [vmem:[#allocation8 + $0x5a0] sm:$0xff]
    %v1215 = vld [vmem:[#allocation8 + $0x5a8] sm:$0xf]
    %v1216 = vld [vmem:[#allocation8 + $0x5ac] sm:$0xff]
    %v1217 = vld [vmem:[#allocation8 + $0x5b4] sm:$0xf]
    %v1218 = vld [vmem:[#allocation8 + $0x5b8] sm:$0xff]
    %v1219 = vld [vmem:[#allocation8 + $0x5c0] sm:$0xf]
    %v1220 = vld [vmem:[#allocation8 + $0x5c4] sm:$0xff]
    %v1221 = vld [vmem:[#allocation8 + $0x5cc] sm:$0xf]
    %v1222 = vld [vmem:[#allocation8 + $0x5d0] sm:$0xff]
    %v1223 = vld [vmem:[#allocation8 + $0x5d8] sm:$0xf]
    %v1224 = vld [vmem:[#allocation8 + $0x5dc] sm:$0xff]
    %v1225 = vld [vmem:[#allocation8 + $0x5e4] sm:$0xf]
    %v1226 = vld [vmem:[#allocation8 + $0x5e8] sm:$0xff]
    %v1227 = vld [vmem:[#allocation8 + $0x5f0] sm:$0xf]
    %v1228 = vld [vmem:[#allocation8 + $0x5f4] sm:$0xff]
    %v1229 = vld [vmem:[#allocation8 + $0x5fc] sm:$0xf]
    %v1231 = vlaneseq
    %v1232 = vshrl.u32 %v1231, 7
    %v1233 = vsub.s32 0, %v1232
    %v1234 = vrot.slane %v1101, %v1233
    %v1235 = vlaneseq
    %v1236 = vshrl.u32 %v1235, 7
    %v1237 = vsub.s32 1, %v1236
    %v1238 = vrot.slane %v1101, %v1237
    %v1239 = vlaneseq
    %v1240 = vshrl.u32 %v1239, 7
    %v1241 = vsub.s32 2, %v1240
    %v1242 = vrot.slane %v1101, %v1241
    %v1243 = vlaneseq
    %v1244 = vshrl.u32 %v1243, 7
    %v1245 = vsub.s32 3, %v1244
    %v1246 = vrot.slane %v1101, %v1245
    %v1347 = vunpack.c.l.b16 %v1005
    %v1348 = vunpack.c.h.b16 %v1005
    %v1349 = vunpack.c.l.b16 %v1006
    %v1350 = vunpack.c.h.b16 %v1006
    %v1351 = vunpack.c.l.b16 %v1007
    %v1352 = vunpack.c.h.b16 %v1007
    %v1353 = vunpack.c.l.b16 %v1008
    %v1354 = vunpack.c.h.b16 %v1008
    %v1355 = vunpack.c.l.b16 %v1009
    %v1356 = vunpack.c.h.b16 %v1009
    %v1357 = vunpack.c.l.b16 %v1010
    %v1358 = vunpack.c.h.b16 %v1010
    %v1359 = vunpack.c.l.b16 %v1011
    %v1360 = vunpack.c.h.b16 %v1011
    %v1361 = vunpack.c.l.b16 %v1012
    %v1362 = vunpack.c.h.b16 %v1012
    %v1363 = vunpack.c.l.b16 %v1013
    %v1364 = vunpack.c.h.b16 %v1013
    %v1365 = vunpack.c.l.b16 %v1014
    %v1366 = vunpack.c.h.b16 %v1014
    %v1367 = vunpack.c.l.b16 %v1015
    %v1368 = vunpack.c.h.b16 %v1015
    %v1369 = vunpack.c.l.b16 %v1016
    %v1370 = vunpack.c.h.b16 %v1016
    %v1371 = vunpack.c.l.b16 %v1017
    %v1372 = vunpack.c.h.b16 %v1017
    %v1373 = vunpack.c.l.b16 %v1018
    %v1374 = vunpack.c.h.b16 %v1018
    %v1375 = vunpack.c.l.b16 %v1019
    %v1376 = vunpack.c.h.b16 %v1019
    %v1377 = vunpack.c.l.b16 %v1020
    %v1378 = vunpack.c.h.b16 %v1020
    %v1379 = vunpack.c.l.b16 %v1021
    %v1380 = vunpack.c.h.b16 %v1021
    %v1381 = vunpack.c.l.b16 %v1022
    %v1382 = vunpack.c.h.b16 %v1022
    %v1383 = vunpack.c.l.b16 %v1023
    %v1384 = vunpack.c.h.b16 %v1023
    %v1385 = vunpack.c.l.b16 %v1024
    %v1386 = vunpack.c.h.b16 %v1024
    %v1387 = vunpack.c.l.b16 %v1025
    %v1388 = vunpack.c.h.b16 %v1025
    %v1389 = vunpack.c.l.b16 %v1026
    %v1390 = vunpack.c.h.b16 %v1026
    %v1391 = vunpack.c.l.b16 %v1027
    %v1392 = vunpack.c.h.b16 %v1027
    %v1393 = vunpack.c.l.b16 %v1028
    %v1394 = vunpack.c.h.b16 %v1028
    %v1395 = vunpack.c.l.b16 %v1029
    %v1396 = vunpack.c.h.b16 %v1029
    %v1397 = vunpack.c.l.b16 %v1030
    %v1398 = vunpack.c.h.b16 %v1030
    %v1399 = vunpack.c.l.b16 %v1031
    %v1400 = vunpack.c.h.b16 %v1031
    %v1401 = vunpack.c.l.b16 %v1032
    %v1402 = vunpack.c.h.b16 %v1032
    %v1403 = vunpack.c.l.b16 %v1033
    %v1404 = vunpack.c.h.b16 %v1033
    %v1405 = vunpack.c.l.b16 %v1034
    %v1406 = vunpack.c.h.b16 %v1034
    %v1407 = vunpack.c.l.b16 %v1035
    %v1408 = vunpack.c.h.b16 %v1035
    %v1409 = vunpack.c.l.b16 %v1036
    %v1410 = vunpack.c.h.b16 %v1036
    %v1411 = vunpack.c.l.b16 %v1037
    %v1412 = vunpack.c.h.b16 %v1037
    %v1413 = vunpack.c.l.b16 %v1038
    %v1414 = vunpack.c.h.b16 %v1038
    %v1415 = vunpack.c.l.b16 %v1039
    %v1416 = vunpack.c.h.b16 %v1039
    %v1417 = vunpack.c.l.b16 %v1040
    %v1418 = vunpack.c.h.b16 %v1040
    %v1419 = vunpack.c.l.b16 %v1041
    %v1420 = vunpack.c.h.b16 %v1041
    %v1421 = vunpack.c.l.b16 %v1042
    %v1422 = vunpack.c.h.b16 %v1042
    %v1423 = vunpack.c.l.b16 %v1043
    %v1424 = vunpack.c.h.b16 %v1043
    %v1425 = vunpack.c.l.b16 %v1044
    %v1426 = vunpack.c.h.b16 %v1044
    %v1427 = vunpack.c.l.b16 %v1045
    %v1428 = vunpack.c.h.b16 %v1045
    %v1429 = vunpack.c.l.b16 %v1046
    %v1430 = vunpack.c.h.b16 %v1046
    %v1431 = vunpack.c.l.b16 %v1047
    %v1432 = vunpack.c.h.b16 %v1047
    %v1433 = vunpack.c.l.b16 %v1048
    %v1434 = vunpack.c.h.b16 %v1048
    %v1435 = vunpack.c.l.b16 %v1049
    %v1436 = vunpack.c.h.b16 %v1049
    %v1437 = vunpack.c.l.b16 %v1050
    %v1438 = vunpack.c.h.b16 %v1050
    %v1439 = vunpack.c.l.b16 %v1051
    %v1440 = vunpack.c.h.b16 %v1051
    %v1441 = vunpack.c.l.b16 %v1052
    %v1442 = vunpack.c.h.b16 %v1052
    %v1443 = vunpack.c.l.b16 %v1053
    %v1444 = vunpack.c.h.b16 %v1053
    %v1445 = vunpack.c.l.b16 %v1054
    %v1446 = vunpack.c.h.b16 %v1054
    %v1447 = vunpack.c.l.b16 %v1055
    %v1448 = vunpack.c.h.b16 %v1055
    %v1449 = vunpack.c.l.b16 %v1056
    %v1450 = vunpack.c.h.b16 %v1056
    %v1451 = vunpack.c.l.b16 %v1057
    %v1452 = vunpack.c.h.b16 %v1057
    %v1453 = vunpack.c.l.b16 %v1058
    %v1454 = vunpack.c.h.b16 %v1058
    %v1455 = vunpack.c.l.b16 %v1059
    %v1456 = vunpack.c.h.b16 %v1059
    %v1457 = vunpack.c.l.b16 %v1060
    %v1458 = vunpack.c.h.b16 %v1060
    %v1459 = vunpack.c.l.b16 %v1061
    %v1460 = vunpack.c.h.b16 %v1061
    %v1461 = vunpack.c.l.b16 %v1062
    %v1462 = vunpack.c.h.b16 %v1062
    %v1463 = vunpack.c.l.b16 %v1063
    %v1464 = vunpack.c.h.b16 %v1063
    %v1465 = vunpack.c.l.b16 %v1064
    %v1466 = vunpack.c.h.b16 %v1064
    %v1467 = vunpack.c.l.b16 %v1065
    %v1468 = vunpack.c.h.b16 %v1065
    %v1469 = vunpack.c.l.b16 %v1066
    %v1470 = vunpack.c.h.b16 %v1066
    %v1471 = vunpack.c.l.b16 %v1067
    %v1472 = vunpack.c.h.b16 %v1067
    %v1473 = vunpack.c.l.b16 %v1068
    %v1474 = vunpack.c.h.b16 %v1068
    %v1475 = vunpack.c.l.b16 %v1069
    %v1476 = vunpack.c.h.b16 %v1069
    %v1477 = vunpack.c.l.b16 %v1070
    %v1478 = vunpack.c.h.b16 %v1070
    %v1479 = vunpack.c.l.b16 %v1071
    %v1480 = vunpack.c.h.b16 %v1071
    %v1481 = vunpack.c.l.b16 %v1072
    %v1482 = vunpack.c.h.b16 %v1072
    %v1483 = vunpack.c.l.b16 %v1073
    %v1484 = vunpack.c.h.b16 %v1073
    %v1485 = vunpack.c.l.b16 %v1074
    %v1486 = vunpack.c.h.b16 %v1074
    %v1487 = vunpack.c.l.b16 %v1075
    %v1488 = vunpack.c.h.b16 %v1075
    %v1489 = vunpack.c.l.b16 %v1076
    %v1490 = vunpack.c.h.b16 %v1076
    %v1491 = vunpack.c.l.b16 %v1077
    %v1492 = vunpack.c.h.b16 %v1077
    %v1493 = vunpack.c.l.b16 %v1078
    %v1494 = vunpack.c.h.b16 %v1078
    %v1495 = vunpack.c.l.b16 %v1079
    %v1496 = vunpack.c.h.b16 %v1079
    %v1497 = vunpack.c.l.b16 %v1080
    %v1498 = vunpack.c.h.b16 %v1080
    %v1499 = vunpack.c.l.b16 %v1081
    %v1500 = vunpack.c.h.b16 %v1081
    %v1501 = vunpack.c.l.b16 %v1082
    %v1502 = vunpack.c.h.b16 %v1082
    %v1503 = vunpack.c.l.b16 %v1083
    %v1504 = vunpack.c.h.b16 %v1083
    %v1505 = vunpack.c.l.b16 %v1084
    %v1506 = vunpack.c.h.b16 %v1084
    %v1507 = vunpack.c.l.b16 %v1085
    %v1508 = vunpack.c.h.b16 %v1085
    %v1509 = vunpack.c.l.b16 %v1086
    %v1510 = vunpack.c.h.b16 %v1086
    %v1511 = vunpack.c.l.b16 %v1087
    %v1512 = vunpack.c.h.b16 %v1087
    %v1513 = vunpack.c.l.b16 %v1088
    %v1514 = vunpack.c.h.b16 %v1088
    %v1515 = vunpack.c.l.b16 %v1089
    %v1516 = vunpack.c.h.b16 %v1089
    %v1517 = vunpack.c.l.b16 %v1090
    %v1518 = vunpack.c.h.b16 %v1090
    %v1519 = vunpack.c.l.b16 %v1091
    %v1520 = vunpack.c.h.b16 %v1091
    %v1521 = vunpack.c.l.b16 %v1092
    %v1522 = vunpack.c.h.b16 %v1092
    %v1523 = vunpack.c.l.b16 %v1093
    %v1524 = vunpack.c.h.b16 %v1093
    %v1525 = vunpack.c.l.b16 %v1094
    %v1526 = vunpack.c.h.b16 %v1094
    %v1527 = vunpack.c.l.b16 %v1095
    %v1528 = vunpack.c.h.b16 %v1095
    %v1529 = vunpack.c.l.b16 %v1096
    %v1530 = vunpack.c.h.b16 %v1096
    %v1531 = vunpack.c.l.b16 %v1097
    %v1532 = vunpack.c.h.b16 %v1097
    %v1533 = vunpack.c.l.b16 %v1098
    %v1534 = vunpack.c.h.b16 %v1098
    %v1535 = vunpack.c.l.b16 %v1099
    %v1536 = vunpack.c.h.b16 %v1099
    %v1537 = vunpack.c.l.b16 %v1100
    %v1538 = vunpack.c.h.b16 %v1100
    %v1539 = vpack.c.b16 %v1351, %v1347
    %v1540 = vpack.c.b16 %v1352, %v1348
    %v1541 = vpack.c.b16 %v1353, %v1349
    %v1542 = vpack.c.b16 %v1354, %v1350
    %v1543 = vpack.c.b16 %v1359, %v1355
    %v1544 = vpack.c.b16 %v1360, %v1356
    %v1545 = vpack.c.b16 %v1361, %v1357
    %v1546 = vpack.c.b16 %v1362, %v1358
    %v1547 = vpack.c.b16 %v1367, %v1363
    %v1548 = vpack.c.b16 %v1368, %v1364
    %v1549 = vpack.c.b16 %v1369, %v1365
    %v1550 = vpack.c.b16 %v1370, %v1366
    %v1551 = vpack.c.b16 %v1375, %v1371
    %v1552 = vpack.c.b16 %v1376, %v1372
    %v1553 = vpack.c.b16 %v1377, %v1373
    %v1554 = vpack.c.b16 %v1378, %v1374
    %v1555 = vpack.c.b16 %v1383, %v1379
    %v1556 = vpack.c.b16 %v1384, %v1380
    %v1557 = vpack.c.b16 %v1385, %v1381
    %v1558 = vpack.c.b16 %v1386, %v1382
    %v1559 = vpack.c.b16 %v1391, %v1387
    %v1560 = vpack.c.b16 %v1392, %v1388
    %v1561 = vpack.c.b16 %v1393, %v1389
    %v1562 = vpack.c.b16 %v1394, %v1390
    %v1563 = vpack.c.b16 %v1399, %v1395
    %v1564 = vpack.c.b16 %v1400, %v1396
    %v1565 = vpack.c.b16 %v1401, %v1397
    %v1566 = vpack.c.b16 %v1402, %v1398
    %v1567 = vpack.c.b16 %v1407, %v1403
    %v1568 = vpack.c.b16 %v1408, %v1404
    %v1569 = vpack.c.b16 %v1409, %v1405
    %v1570 = vpack.c.b16 %v1410, %v1406
    %v1571 = vpack.c.b16 %v1415, %v1411
    %v1572 = vpack.c.b16 %v1416, %v1412
    %v1573 = vpack.c.b16 %v1417, %v1413
    %v1574 = vpack.c.b16 %v1418, %v1414
    %v1575 = vpack.c.b16 %v1423, %v1419
    %v1576 = vpack.c.b16 %v1424, %v1420
    %v1577 = vpack.c.b16 %v1425, %v1421
    %v1578 = vpack.c.b16 %v1426, %v1422
    %v1579 = vpack.c.b16 %v1431, %v1427
    %v1580 = vpack.c.b16 %v1432, %v1428
    %v1581 = vpack.c.b16 %v1433, %v1429
    %v1582 = vpack.c.b16 %v1434, %v1430
    %v1583 = vpack.c.b16 %v1439, %v1435
    %v1584 = vpack.c.b16 %v1440, %v1436
    %v1585 = vpack.c.b16 %v1441, %v1437
    %v1586 = vpack.c.b16 %v1442, %v1438
    %v1587 = vpack.c.b16 %v1447, %v1443
    %v1588 = vpack.c.b16 %v1448, %v1444
    %v1589 = vpack.c.b16 %v1449, %v1445
    %v1590 = vpack.c.b16 %v1450, %v1446
    %v1591 = vpack.c.b16 %v1455, %v1451
    %v1592 = vpack.c.b16 %v1456, %v1452
    %v1593 = vpack.c.b16 %v1457, %v1453
    %v1594 = vpack.c.b16 %v1458, %v1454
    %v1595 = vpack.c.b16 %v1463, %v1459
    %v1596 = vpack.c.b16 %v1464, %v1460
    %v1597 = vpack.c.b16 %v1465, %v1461
    %v1598 = vpack.c.b16 %v1466, %v1462
    %v1599 = vpack.c.b16 %v1471, %v1467
    %v1600 = vpack.c.b16 %v1472, %v1468
    %v1601 = vpack.c.b16 %v1473, %v1469
    %v1602 = vpack.c.b16 %v1474, %v1470
    %v1603 = vpack.c.b16 %v1479, %v1475
    %v1604 = vpack.c.b16 %v1480, %v1476
    %v1605 = vpack.c.b16 %v1481, %v1477
    %v1606 = vpack.c.b16 %v1482, %v1478
    %v1607 = vpack.c.b16 %v1487, %v1483
    %v1608 = vpack.c.b16 %v1488, %v1484
    %v1609 = vpack.c.b16 %v1489, %v1485
    %v1610 = vpack.c.b16 %v1490, %v1486
    %v1611 = vpack.c.b16 %v1495, %v1491
    %v1612 = vpack.c.b16 %v1496, %v1492
    %v1613 = vpack.c.b16 %v1497, %v1493
    %v1614 = vpack.c.b16 %v1498, %v1494
    %v1615 = vpack.c.b16 %v1503, %v1499
    %v1616 = vpack.c.b16 %v1504, %v1500
    %v1617 = vpack.c.b16 %v1505, %v1501
    %v1618 = vpack.c.b16 %v1506, %v1502
    %v1619 = vpack.c.b16 %v1511, %v1507
    %v1620 = vpack.c.b16 %v1512, %v1508
    %v1621 = vpack.c.b16 %v1513, %v1509
    %v1622 = vpack.c.b16 %v1514, %v1510
    %v1623 = vpack.c.b16 %v1519, %v1515
    %v1624 = vpack.c.b16 %v1520, %v1516
    %v1625 = vpack.c.b16 %v1521, %v1517
    %v1626 = vpack.c.b16 %v1522, %v1518
    %v1627 = vpack.c.b16 %v1527, %v1523
    %v1628 = vpack.c.b16 %v1528, %v1524
    %v1629 = vpack.c.b16 %v1529, %v1525
    %v1630 = vpack.c.b16 %v1530, %v1526
    %v1631 = vpack.c.b16 %v1535, %v1531
    %v1632 = vpack.c.b16 %v1536, %v1532
    %v1633 = vpack.c.b16 %v1537, %v1533
    %v1634 = vpack.c.b16 %v1538, %v1534
    %1731 = vmatprep.subr.bf16.mxu0 %v1540
    %1732 = vmatpush1.bf16.msra.mxu0 %v1539
    %1733 = vmatprep.subr.bf16.mxu0 %v1544
    %1734 = vmatpush1.bf16.msra.mxu0 %v1543
    %1735 = vmatprep.subr.bf16.mxu0 %v1548
    %1736 = vmatpush1.bf16.msra.mxu0 %v1547
    %1737 = vmatprep.subr.bf16.mxu0 %v1552
    %1738 = vmatpush1.bf16.msra.mxu0 %v1551
    %1739 = vmatprep.subr.bf16.mxu0 %v1556
    %1740 = vmatpush1.bf16.msra.mxu0 %v1555
    %1741 = vmatprep.subr.bf16.mxu0 %v1560
    %1742 = vmatpush1.bf16.msra.mxu0 %v1559
    %1743 = vmatprep.subr.bf16.mxu0 %v1564
    %1744 = vmatpush1.bf16.msra.mxu0 %v1563
    %1745 = vmatprep.subr.bf16.mxu0 %v1568
    %1746 = vmatpush1.bf16.msra.mxu0 %v1567
    %1747 = vmatprep.subr.bf16.mxu0 %v1572
    %1748 = vmatpush1.bf16.msra.mxu0 %v1571
    %1749 = vmatprep.subr.bf16.mxu0 %v1576
    %1750 = vmatpush1.bf16.msra.mxu0 %v1575
    %1751 = vmatprep.subr.bf16.mxu0 %v1580
    %1752 = vmatpush1.bf16.msra.mxu0 %v1579
    %1753 = vmatprep.subr.bf16.mxu0 %v1584
    %1754 = vmatpush1.bf16.msra.mxu0 %v1583
    %1755 = vmatprep.subr.bf16.mxu0 %v1588
    %1756 = vmatpush1.bf16.msra.mxu0 %v1587
    %1757 = vmatprep.subr.bf16.mxu0 %v1592
    %1758 = vmatpush1.bf16.msra.mxu0 %v1591
    %1759 = vmatprep.subr.bf16.mxu0 %v1596
    %1760 = vmatpush1.bf16.msra.mxu0 %v1595
    %1761 = vmatprep.subr.bf16.mxu0 %v1600
    %1762 = vmatpush1.bf16.msra.mxu0 %v1599
    %1763 = vmatprep.mubr.bf16.mxu0 %v93
    %1764 = vmatmul.mubr.bf16.gmra.mrb[0].mxu0 %v92
    %v1765 = vpop.f32.mrb[0].mxu0
    %v1766 = vadd.f32 %v1234, %v1765
    %v1767 = vpop.f32.mrb[0].mxu0
    %v1768 = vadd.f32 %v1238, %v1767
    %v1769 = vpop.f32.mrb[0].mxu0
    %v1770 = vadd.f32 %v1234, %v1769
    %v1771 = vpop.f32.mrb[0].mxu0
    %v1772 = vadd.f32 %v1238, %v1771
    %1773 = vdwg.mxu0
    %1774 = vmatprep.subr.bf16.mxu0 %v1604
    %1775 = vmatpush1.bf16.msra.mxu0 %v1603
    %1776 = vmatprep.subr.bf16.mxu0 %v1608
    %1777 = vmatpush1.bf16.msra.mxu0 %v1607
    %1778 = vmatprep.subr.bf16.mxu0 %v1612
    %1779 = vmatpush1.bf16.msra.mxu0 %v1611
    %1780 = vmatprep.subr.bf16.mxu0 %v1616
    %1781 = vmatpush1.bf16.msra.mxu0 %v1615
    %1782 = vmatprep.subr.bf16.mxu0 %v1620
    %1783 = vmatpush1.bf16.msra.mxu0 %v1619
    %1784 = vmatprep.subr.bf16.mxu0 %v1624
    %1785 = vmatpush1.bf16.msra.mxu0 %v1623
    %1786 = vmatprep.subr.bf16.mxu0 %v1628
    %1787 = vmatpush1.bf16.msra.mxu0 %v1627
    %1788 = vmatprep.subr.bf16.mxu0 %v1632
    %1789 = vmatpush1.bf16.msra.mxu0 %v1631
    %1790 = vmatprep.subr.bf16.mxu0 0
    %1791 = vmatpush1.bf16.msra.mxu0 0
    %1792 = vmatprep.subr.bf16.mxu0 0
    %1793 = vmatpush1.bf16.msra.mxu0 0
    %1794 = vmatprep.subr.bf16.mxu0 0
    %1795 = vmatpush1.bf16.msra.mxu0 0
    %1796 = vmatprep.subr.bf16.mxu0 0
    %1797 = vmatpush1.bf16.msra.mxu0 0
    %1798 = vmatprep.subr.bf16.mxu0 0
    %1799 = vmatpush1.bf16.msra.mxu0 0
    %1800 = vmatprep.subr.bf16.mxu0 0
    %1801 = vmatpush1.bf16.msra.mxu0 0
    %1802 = vmatprep.subr.bf16.mxu0 0
    %1803 = vmatpush1.bf16.msra.mxu0 0
    %1804 = vmatprep.subr.bf16.mxu0 0
    %1805 = vmatpush1.bf16.msra.mxu0 0
    %1806 = vmatprep.mubr.bf16.mxu0 0
    %1807 = vmatmul.mubr.bf16.gmra.mrb[0].mxu0 %v94
    %v1808 = vpop.f32.mrb[0].mxu0
    %v1809 = vadd.f32 %v1766, %v1808
    %v1810 = vpop.f32.mrb[0].mxu0
    %v1811 = vadd.f32 %v1768, %v1810
    %v1812 = vpop.f32.mrb[0].mxu0
    %v1813 = vadd.f32 %v1770, %v1812
    %v1814 = vpop.f32.mrb[0].mxu0
    %v1815 = vadd.f32 %v1772, %v1814
    %1816 = vdwg.mxu0
    %1817 = vmatprep.subr.bf16.mxu0 %v1542
    %1818 = vmatpush1.bf16.msra.mxu0 %v1541
    %1819 = vmatprep.subr.bf16.mxu0 %v1546
    %1820 = vmatpush1.bf16.msra.mxu0 %v1545
    %1821 = vmatprep.subr.bf16.mxu0 %v1550
    %1822 = vmatpush1.bf16.msra.mxu0 %v1549
    %1823 = vmatprep.subr.bf16.mxu0 %v1554
    %1824 = vmatpush1.bf16.msra.mxu0 %v1553
    %1825 = vmatprep.subr.bf16.mxu0 %v1558
    %1826 = vmatpush1.bf16.msra.mxu0 %v1557
    %1827 = vmatprep.subr.bf16.mxu0 %v1562
    %1828 = vmatpush1.bf16.msra.mxu0 %v1561
    %1829 = vmatprep.subr.bf16.mxu0 %v1566
    %1830 = vmatpush1.bf16.msra.mxu0 %v1565
    %1831 = vmatprep.subr.bf16.mxu0 %v1570
    %1832 = vmatpush1.bf16.msra.mxu0 %v1569
    %1833 = vmatprep.subr.bf16.mxu0 %v1574
    %1834 = vmatpush1.bf16.msra.mxu0 %v1573
    %1835 = vmatprep.subr.bf16.mxu0 %v1578
    %1836 = vmatpush1.bf16.msra.mxu0 %v1577
    %1837 = vmatprep.subr.bf16.mxu0 %v1582
    %1838 = vmatpush1.bf16.msra.mxu0 %v1581
    %1839 = vmatprep.subr.bf16.mxu0 %v1586
    %1840 = vmatpush1.bf16.msra.mxu0 %v1585
    %1841 = vmatprep.subr.bf16.mxu0 %v1590
    %1842 = vmatpush1.bf16.msra.mxu0 %v1589
    %1843 = vmatprep.subr.bf16.mxu0 %v1594
    %1844 = vmatpush1.bf16.msra.mxu0 %v1593
    %1845 = vmatprep.subr.bf16.mxu0 %v1598
    %1846 = vmatpush1.bf16.msra.mxu0 %v1597
    %1847 = vmatprep.subr.bf16.mxu0 %v1602
    %1848 = vmatpush1.bf16.msra.mxu0 %v1601
    %1849 = vmatprep.mubr.bf16.mxu0 %v93
    %1850 = vmatmul.mubr.bf16.gmra.mrb[0].mxu0 %v92
    %v1851 = vpop.f32.mrb[0].mxu0
    %v1852 = vadd.f32 %v1242, %v1851
    %v1853 = vpop.f32.mrb[0].mxu0
    %v1854 = vadd.f32 %v1246, %v1853
    %v1855 = vpop.f32.mrb[0].mxu0
    %v1856 = vadd.f32 %v1242, %v1855
    %v1857 = vpop.f32.mrb[0].mxu0
    %v1858 = vadd.f32 %v1246, %v1857
    %1859 = vdwg.mxu0
    %1860 = vmatprep.subr.bf16.mxu0 %v1606
    %1861 = vmatpush1.bf16.msra.mxu0 %v1605
    %1862 = vmatprep.subr.bf16.mxu0 %v1610
    %1863 = vmatpush1.bf16.msra.mxu0 %v1609
    %1864 = vmatprep.subr.bf16.mxu0 %v1614
    %1865 = vmatpush1.bf16.msra.mxu0 %v1613
    %1866 = vmatprep.subr.bf16.mxu0 %v1618
    %1867 = vmatpush1.bf16.msra.mxu0 %v1617
    %1868 = vmatprep.subr.bf16.mxu0 %v1622
    %1869 = vmatpush1.bf16.msra.mxu0 %v1621
    %1870 = vmatprep.subr.bf16.mxu0 %v1626
    %1871 = vmatpush1.bf16.msra.mxu0 %v1625
    %1872 = vmatprep.subr.bf16.mxu0 %v1630
    %1873 = vmatpush1.bf16.msra.mxu0 %v1629
    %1874 = vmatprep.subr.bf16.mxu0 %v1634
    %1875 = vmatpush1.bf16.msra.mxu0 %v1633
    %1876 = vmatprep.subr.bf16.mxu0 0
    %1877 = vmatpush1.bf16.msra.mxu0 0
    %1878 = vmatprep.subr.bf16.mxu0 0
    %1879 = vmatpush1.bf16.msra.mxu0 0
    %1880 = vmatprep.subr.bf16.mxu0 0
    %1881 = vmatpush1.bf16.msra.mxu0 0
    %1882 = vmatprep.subr.bf16.mxu0 0
    %1883 = vmatpush1.bf16.msra.mxu0 0
    %1884 = vmatprep.subr.bf16.mxu0 0
    %1885 = vmatpush1.bf16.msra.mxu0 0
    %1886 = vmatprep.subr.bf16.mxu0 0
    %1887 = vmatpush1.bf16.msra.mxu0 0
    %1888 = vmatprep.subr.bf16.mxu0 0
    %1889 = vmatpush1.bf16.msra.mxu0 0
    %1890 = vmatprep.subr.bf16.mxu0 0
    %1891 = vmatpush1.bf16.msra.mxu0 0
    %1892 = vmatprep.mubr.bf16.mxu0 0
    %1893 = vmatmul.mubr.bf16.gmra.mrb[0].mxu0 %v94
    %v1894 = vpop.f32.mrb[0].mxu0
    %v1895 = vadd.f32 %v1852, %v1894
    %v1896 = vpop.f32.mrb[0].mxu0
    %v1897 = vadd.f32 %v1854, %v1896
    %v1898 = vpop.f32.mrb[0].mxu0
    %v1899 = vadd.f32 %v1856, %v1898
    %v1900 = vpop.f32.mrb[0].mxu0
    %v1901 = vadd.f32 %v1858, %v1900
    %1902 = vdwg.mxu0
    %v1903 = vmax.f32 %v1809, 0.0
    %v1904 = vmax.f32 %v1811, 0.0
    %v1905 = vmax.f32 %v1895, 0.0
    %v1906 = vmax.f32 %v1897, 0.0
    %v1907 = vmax.f32 %v1813, 0.0
    %v1908 = vmax.f32 %v1815, 0.0
    %v1909 = vmax.f32 %v1899, 0.0
    %v1910 = vmax.f32 %v1901, 0.0
    %v1911 = vpack.c.bf16 %v1907, %v1903
    %v1912 = vpack.c.bf16 %v1908, %v1904
    %v1913 = vpack.c.bf16 %v1909, %v1905
    %v1914 = vpack.c.bf16 %v1910, %v1906
    %v2043 = vunpack.c.l.b16 %v1102
    %v2044 = vunpack.c.h.b16 %v1102
    %v2045 = vunpack.c.l.b16 %v1103
    %v2046 = vunpack.c.l.b16 %v1104
    %v2047 = vunpack.c.h.b16 %v1104
    %v2048 = vunpack.c.l.b16 %v1105
    %v2049 = vunpack.c.l.b16 %v1106
    %v2050 = vunpack.c.h.b16 %v1106
    %v2051 = vunpack.c.l.b16 %v1107
    %v2052 = vunpack.c.l.b16 %v1108
    %v2053 = vunpack.c.h.b16 %v1108
    %v2054 = vunpack.c.l.b16 %v1109
    %v2055 = vunpack.c.l.b16 %v1110
    %v2056 = vunpack.c.h.b16 %v1110
    %v2057 = vunpack.c.l.b16 %v1111
    %v2058 = vunpack.c.l.b16 %v1112
    %v2059 = vunpack.c.h.b16 %v1112
    %v2060 = vunpack.c.l.b16 %v1113
    %v2061 = vunpack.c.l.b16 %v1114
    %v2062 = vunpack.c.h.b16 %v1114
    %v2063 = vunpack.c.l.b16 %v1115
    %v2064 = vunpack.c.l.b16 %v1116
    %v2065 = vunpack.c.h.b16 %v1116
    %v2066 = vunpack.c.l.b16 %v1117
    %v2067 = vunpack.c.l.b16 %v1118
    %v2068 = vunpack.c.h.b16 %v1118
    %v2069 = vunpack.c.l.b16 %v1119
    %v2070 = vunpack.c.l.b16 %v1120
    %v2071 = vunpack.c.h.b16 %v1120
    %v2072 = vunpack.c.l.b16 %v1121
    %v2073 = vunpack.c.l.b16 %v1122
    %v2074 = vunpack.c.h.b16 %v1122
    %v2075 = vunpack.c.l.b16 %v1123
    %v2076 = vunpack.c.l.b16 %v1124
    %v2077 = vunpack.c.h.b16 %v1124
    %v2078 = vunpack.c.l.b16 %v1125
    %v2079 = vunpack.c.l.b16 %v1126
    %v2080 = vunpack.c.h.b16 %v1126
    %v2081 = vunpack.c.l.b16 %v1127
    %v2082 = vunpack.c.l.b16 %v1128
    %v2083 = vunpack.c.h.b16 %v1128
    %v2084 = vunpack.c.l.b16 %v1129
    %v2085 = vunpack.c.l.b16 %v1130
    %v2086 = vunpack.c.h.b16 %v1130
    %v2087 = vunpack.c.l.b16 %v1131
    %v2088 = vunpack.c.l.b16 %v1132
    %v2089 = vunpack.c.h.b16 %v1132
    %v2090 = vunpack.c.l.b16 %v1133
    %v2091 = vunpack.c.l.b16 %v1134
    %v2092 = vunpack.c.h.b16 %v1134
    %v2093 = vunpack.c.l.b16 %v1135
    %v2094 = vunpack.c.l.b16 %v1136
    %v2095 = vunpack.c.h.b16 %v1136
    %v2096 = vunpack.c.l.b16 %v1137
    %v2097 = vunpack.c.l.b16 %v1138
    %v2098 = vunpack.c.h.b16 %v1138
    %v2099 = vunpack.c.l.b16 %v1139
    %v2100 = vunpack.c.l.b16 %v1140
    %v2101 = vunpack.c.h.b16 %v1140
    %v2102 = vunpack.c.l.b16 %v1141
    %v2103 = vunpack.c.l.b16 %v1142
    %v2104 = vunpack.c.h.b16 %v1142
    %v2105 = vunpack.c.l.b16 %v1143
    %v2106 = vunpack.c.l.b16 %v1144
    %v2107 = vunpack.c.h.b16 %v1144
    %v2108 = vunpack.c.l.b16 %v1145
    %v2109 = vunpack.c.l.b16 %v1146
    %v2110 = vunpack.c.h.b16 %v1146
    %v2111 = vunpack.c.l.b16 %v1147
    %v2112 = vunpack.c.l.b16 %v1148
    %v2113 = vunpack.c.h.b16 %v1148
    %v2114 = vunpack.c.l.b16 %v1149
    %v2115 = vunpack.c.l.b16 %v1150
    %v2116 = vunpack.c.h.b16 %v1150
    %v2117 = vunpack.c.l.b16 %v1151
    %v2118 = vunpack.c.l.b16 %v1152
    %v2119 = vunpack.c.h.b16 %v1152
    %v2120 = vunpack.c.l.b16 %v1153
    %v2121 = vunpack.c.l.b16 %v1154
    %v2122 = vunpack.c.h.b16 %v1154
    %v2123 = vunpack.c.l.b16 %v1155
    %v2124 = vunpack.c.l.b16 %v1156
    %v2125 = vunpack.c.h.b16 %v1156
    %v2126 = vunpack.c.l.b16 %v1157
    %v2127 = vunpack.c.l.b16 %v1158
    %v2128 = vunpack.c.h.b16 %v1158
    %v2129 = vunpack.c.l.b16 %v1159
    %v2130 = vunpack.c.l.b16 %v1160
    %v2131 = vunpack.c.h.b16 %v1160
    %v2132 = vunpack.c.l.b16 %v1161
    %v2133 = vunpack.c.l.b16 %v1162
    %v2134 = vunpack.c.h.b16 %v1162
    %v2135 = vunpack.c.l.b16 %v1163
    %v2136 = vunpack.c.l.b16 %v1164
    %v2137 = vunpack.c.h.b16 %v1164
    %v2138 = vunpack.c.l.b16 %v1165
    %v2139 = vunpack.c.l.b16 %v1166
    %v2140 = vunpack.c.h.b16 %v1166
    %v2141 = vunpack.c.l.b16 %v1167
    %v2142 = vunpack.c.l.b16 %v1168
    %v2143 = vunpack.c.h.b16 %v1168
    %v2144 = vunpack.c.l.b16 %v1169
    %v2145 = vunpack.c.l.b16 %v1170
    %v2146 = vunpack.c.h.b16 %v1170
    %v2147 = vunpack.c.l.b16 %v1171
    %v2148 = vunpack.c.l.b16 %v1172
    %v2149 = vunpack.c.h.b16 %v1172
    %v2150 = vunpack.c.l.b16 %v1173
    %v2151 = vunpack.c.l.b16 %v1174
    %v2152 = vunpack.c.h.b16 %v1174
    %v2153 = vunpack.c.l.b16 %v1175
    %v2154 = vunpack.c.l.b16 %v1176
    %v2155 = vunpack.c.h.b16 %v1176
    %v2156 = vunpack.c.l.b16 %v1177
    %v2157 = vunpack.c.l.b16 %v1178
    %v2158 = vunpack.c.h.b16 %v1178
    %v2159 = vunpack.c.l.b16 %v1179
    %v2160 = vunpack.c.l.b16 %v1180
    %v2161 = vunpack.c.h.b16 %v1180
    %v2162 = vunpack.c.l.b16 %v1181
    %v2163 = vunpack.c.l.b16 %v1182
    %v2164 = vunpack.c.h.b16 %v1182
    %v2165 = vunpack.c.l.b16 %v1183
    %v2166 = vunpack.c.l.b16 %v1184
    %v2167 = vunpack.c.h.b16 %v1184
    %v2168 = vunpack.c.l.b16 %v1185
    %v2169 = vunpack.c.l.b16 %v1186
    %v2170 = vunpack.c.h.b16 %v1186
    %v2171 = vunpack.c.l.b16 %v1187
    %v2172 = vunpack.c.l.b16 %v1188
    %v2173 = vunpack.c.h.b16 %v1188
    %v2174 = vunpack.c.l.b16 %v1189
    %v2175 = vunpack.c.l.b16 %v1190
    %v2176 = vunpack.c.h.b16 %v1190
    %v2177 = vunpack.c.l.b16 %v1191
    %v2178 = vunpack.c.l.b16 %v1192
    %v2179 = vunpack.c.h.b16 %v1192
    %v2180 = vunpack.c.l.b16 %v1193
    %v2181 = vunpack.c.l.b16 %v1194
    %v2182 = vunpack.c.h.b16 %v1194
    %v2183 = vunpack.c.l.b16 %v1195
    %v2184 = vunpack.c.l.b16 %v1196
    %v2185 = vunpack.c.h.b16 %v1196
    %v2186 = vunpack.c.l.b16 %v1197
    %v2187 = vunpack.c.l.b16 %v1198
    %v2188 = vunpack.c.h.b16 %v1198
    %v2189 = vunpack.c.l.b16 %v1199
    %v2190 = vunpack.c.l.b16 %v1200
    %v2191 = vunpack.c.h.b16 %v1200
    %v2192 = vunpack.c.l.b16 %v1201
    %v2193 = vunpack.c.l.b16 %v1202
    %v2194 = vunpack.c.h.b16 %v1202
    %v2195 = vunpack.c.l.b16 %v1203
    %v2196 = vunpack.c.l.b16 %v1204
    %v2197 = vunpack.c.h.b16 %v1204
    %v2198 = vunpack.c.l.b16 %v1205
    %v2199 = vunpack.c.l.b16 %v1206
    %v2200 = vunpack.c.h.b16 %v1206
    %v2201 = vunpack.c.l.b16 %v1207
    %v2202 = vunpack.c.l.b16 %v1208
    %v2203 = vunpack.c.h.b16 %v1208
    %v2204 = vunpack.c.l.b16 %v1209
    %v2205 = vunpack.c.l.b16 %v1210
    %v2206 = vunpack.c.h.b16 %v1210
    %v2207 = vunpack.c.l.b16 %v1211
    %v2208 = vunpack.c.l.b16 %v1212
    %v2209 = vunpack.c.h.b16 %v1212
    %v2210 = vunpack.c.l.b16 %v1213
    %v2211 = vunpack.c.l.b16 %v1214
    %v2212 = vunpack.c.h.b16 %v1214
    %v2213 = vunpack.c.l.b16 %v1215
    %v2214 = vunpack.c.l.b16 %v1216
    %v2215 = vunpack.c.h.b16 %v1216
    %v2216 = vunpack.c.l.b16 %v1217
    %v2217 = vunpack.c.l.b16 %v1218
    %v2218 = vunpack.c.h.b16 %v1218
    %v2219 = vunpack.c.l.b16 %v1219
    %v2220 = vunpack.c.l.b16 %v1220
    %v2221 = vunpack.c.h.b16 %v1220
    %v2222 = vunpack.c.l.b16 %v1221
    %v2223 = vunpack.c.l.b16 %v1222
    %v2224 = vunpack.c.h.b16 %v1222
    %v2225 = vunpack.c.l.b16 %v1223
    %v2226 = vunpack.c.l.b16 %v1224
    %v2227 = vunpack.c.h.b16 %v1224
    %v2228 = vunpack.c.l.b16 %v1225
    %v2229 = vunpack.c.l.b16 %v1226
    %v2230 = vunpack.c.h.b16 %v1226
    %v2231 = vunpack.c.l.b16 %v1227
    %v2232 = vunpack.c.l.b16 %v1228
    %v2233 = vunpack.c.h.b16 %v1228
    %v2234 = vunpack.c.l.b16 %v1229
    %v2235 = vpack.c.b16 %v2046, %v2043
    %v2236 = vpack.c.b16 %v2047, %v2044
    %v2237 = vpack.c.b16 %v2048, %v2045
    %v2238 = vpack.c.b16 %v2052, %v2049
    %v2239 = vpack.c.b16 %v2053, %v2050
    %v2240 = vpack.c.b16 %v2054, %v2051
    %v2241 = vpack.c.b16 %v2058, %v2055
    %v2242 = vpack.c.b16 %v2059, %v2056
    %v2243 = vpack.c.b16 %v2060, %v2057
    %v2244 = vpack.c.b16 %v2064, %v2061
    %v2245 = vpack.c.b16 %v2065, %v2062
    %v2246 = vpack.c.b16 %v2066, %v2063
    %v2247 = vpack.c.b16 %v2070, %v2067
    %v2248 = vpack.c.b16 %v2071, %v2068
    %v2249 = vpack.c.b16 %v2072, %v2069
    %v2250 = vpack.c.b16 %v2076, %v2073
    %v2251 = vpack.c.b16 %v2077, %v2074
    %v2252 = vpack.c.b16 %v2078, %v2075
    %v2253 = vpack.c.b16 %v2082, %v2079
    %v2254 = vpack.c.b16 %v2083, %v2080
    %v2255 = vpack.c.b16 %v2084, %v2081
    %v2256 = vpack.c.b16 %v2088, %v2085
    %v2257 = vpack.c.b16 %v2089, %v2086
    %v2258 = vpack.c.b16 %v2090, %v2087
    %v2259 = vpack.c.b16 %v2094, %v2091
    %v2260 = vpack.c.b16 %v2095, %v2092
    %v2261 = vpack.c.b16 %v2096, %v2093
    %v2262 = vpack.c.b16 %v2100, %v2097
    %v2263 = vpack.c.b16 %v2101, %v2098
    %v2264 = vpack.c.b16 %v2102, %v2099
    %v2265 = vpack.c.b16 %v2106, %v2103
    %v2266 = vpack.c.b16 %v2107, %v2104
    %v2267 = vpack.c.b16 %v2108, %v2105
    %v2268 = vpack.c.b16 %v2112, %v2109
    %v2269 = vpack.c.b16 %v2113, %v2110
    %v2270 = vpack.c.b16 %v2114, %v2111
    %v2271 = vpack.c.b16 %v2118, %v2115
    %v2272 = vpack.c.b16 %v2119, %v2116
    %v2273 = vpack.c.b16 %v2120, %v2117
    %v2274 = vpack.c.b16 %v2124, %v2121
    %v2275 = vpack.c.b16 %v2125, %v2122
    %v2276 = vpack.c.b16 %v2126, %v2123
    %v2277 = vpack.c.b16 %v2130, %v2127
    %v2278 = vpack.c.b16 %v2131, %v2128
    %v2279 = vpack.c.b16 %v2132, %v2129
    %v2280 = vpack.c.b16 %v2136, %v2133
    %v2281 = vpack.c.b16 %v2137, %v2134
    %v2282 = vpack.c.b16 %v2138, %v2135
    %v2283 = vpack.c.b16 %v2142, %v2139
    %v2284 = vpack.c.b16 %v2143, %v2140
    %v2285 = vpack.c.b16 %v2144, %v2141
    %v2286 = vpack.c.b16 %v2148, %v2145
    %v2287 = vpack.c.b16 %v2149, %v2146
    %v2288 = vpack.c.b16 %v2150, %v2147
    %v2289 = vpack.c.b16 %v2154, %v2151
    %v2290 = vpack.c.b16 %v2155, %v2152
    %v2291 = vpack.c.b16 %v2156, %v2153
    %v2292 = vpack.c.b16 %v2160, %v2157
    %v2293 = vpack.c.b16 %v2161, %v2158
    %v2294 = vpack.c.b16 %v2162, %v2159
    %v2295 = vpack.c.b16 %v2166, %v2163
    %v2296 = vpack.c.b16 %v2167, %v2164
    %v2297 = vpack.c.b16 %v2168, %v2165
    %v2298 = vpack.c.b16 %v2172, %v2169
    %v2299 = vpack.c.b16 %v2173, %v2170
    %v2300 = vpack.c.b16 %v2174, %v2171
    %v2301 = vpack.c.b16 %v2178, %v2175
    %v2302 = vpack.c.b16 %v2179, %v2176
    %v2303 = vpack.c.b16 %v2180, %v2177
    %v2304 = vpack.c.b16 %v2184, %v2181
    %v2305 = vpack.c.b16 %v2185, %v2182
    %v2306 = vpack.c.b16 %v2186, %v2183
    %v2307 = vpack.c.b16 %v2190, %v2187
    %v2308 = vpack.c.b16 %v2191, %v2188
    %v2309 = vpack.c.b16 %v2192, %v2189
    %v2310 = vpack.c.b16 %v2196, %v2193
    %v2311 = vpack.c.b16 %v2197, %v2194
    %v2312 = vpack.c.b16 %v2198, %v2195
    %v2313 = vpack.c.b16 %v2202, %v2199
    %v2314 = vpack.c.b16 %v2203, %v2200
    %v2315 = vpack.c.b16 %v2204, %v2201
    %v2316 = vpack.c.b16 %v2208, %v2205
    %v2317 = vpack.c.b16 %v2209, %v2206
    %v2318 = vpack.c.b16 %v2210, %v2207
    %v2319 = vpack.c.b16 %v2214, %v2211
    %v2320 = vpack.c.b16 %v2215, %v2212
    %v2321 = vpack.c.b16 %v2216, %v2213
    %v2322 = vpack.c.b16 %v2220, %v2217
    %v2323 = vpack.c.b16 %v2221, %v2218
    %v2324 = vpack.c.b16 %v2222, %v2219
    %v2325 = vpack.c.b16 %v2226, %v2223
    %v2326 = vpack.c.b16 %v2227, %v2224
    %v2327 = vpack.c.b16 %v2228, %v2225
    %v2328 = vpack.c.b16 %v2232, %v2229
    %v2329 = vpack.c.b16 %v2233, %v2230
    %v2330 = vpack.c.b16 %v2234, %v2231
    %2427 = vmatprep.subr.bf16.mxu0 %v2236
    %2428 = vmatpush1.bf16.msra.mxu0 %v2235
    %2429 = vmatprep.subr.bf16.mxu0 %v2239
    %2430 = vmatpush1.bf16.msra.mxu0 %v2238
    %2431 = vmatprep.subr.bf16.mxu0 %v2242
    %2432 = vmatpush1.bf16.msra.mxu0 %v2241
    %2433 = vmatprep.subr.bf16.mxu0 %v2245
    %2434 = vmatpush1.bf16.msra.mxu0 %v2244
    %2435 = vmatprep.subr.bf16.mxu0 %v2248
    %2436 = vmatpush1.bf16.msra.mxu0 %v2247
    %2437 = vmatprep.subr.bf16.mxu0 %v2251
    %2438 = vmatpush1.bf16.msra.mxu0 %v2250
    %2439 = vmatprep.subr.bf16.mxu0 %v2254
    %2440 = vmatpush1.bf16.msra.mxu0 %v2253
    %2441 = vmatprep.subr.bf16.mxu0 %v2257
    %2442 = vmatpush1.bf16.msra.mxu0 %v2256
    %2443 = vmatprep.subr.bf16.mxu0 %v2260
    %2444 = vmatpush1.bf16.msra.mxu0 %v2259
    %2445 = vmatprep.subr.bf16.mxu0 %v2263
    %2446 = vmatpush1.bf16.msra.mxu0 %v2262
    %2447 = vmatprep.subr.bf16.mxu0 %v2266
    %2448 = vmatpush1.bf16.msra.mxu0 %v2265
    %2449 = vmatprep.subr.bf16.mxu0 %v2269
    %2450 = vmatpush1.bf16.msra.mxu0 %v2268
    %2451 = vmatprep.subr.bf16.mxu0 %v2272
    %2452 = vmatpush1.bf16.msra.mxu0 %v2271
    %2453 = vmatprep.subr.bf16.mxu0 %v2275
    %2454 = vmatpush1.bf16.msra.mxu0 %v2274
    %2455 = vmatprep.subr.bf16.mxu0 %v2278
    %2456 = vmatpush1.bf16.msra.mxu0 %v2277
    %2457 = vmatprep.subr.bf16.mxu0 %v2281
    %2458 = vmatpush1.bf16.msra.mxu0 %v2280
    %2459 = vmatprep.mubr.bf16.mxu0 %v1912
    %2460 = vmatmul.mubr.bf16.gmra.mrb[0].mxu0 %v1911
    %v2461 = vpop.f32.mrb[0].mxu0
    %v2462 = vadd.f32 0.0, %v2461
    %v2463 = vpop.f32.mrb[0].mxu0
    %v2464 = vadd.f32 0.0, %v2463
    %v2465 = vpop.f32.mrb[0].mxu0
    %v2466 = vadd.f32 0.0, %v2465
    %v2467 = vpop.f32.mrb[0].mxu0
    %v2468 = vadd.f32 0.0, %v2467
    %2469 = vdwg.mxu0
    %2470 = vmatprep.subr.bf16.mxu0 %v2284
    %2471 = vmatpush1.bf16.msra.mxu0 %v2283
    %2472 = vmatprep.subr.bf16.mxu0 %v2287
    %2473 = vmatpush1.bf16.msra.mxu0 %v2286
    %2474 = vmatprep.subr.bf16.mxu0 %v2290
    %2475 = vmatpush1.bf16.msra.mxu0 %v2289
    %2476 = vmatprep.subr.bf16.mxu0 %v2293
    %2477 = vmatpush1.bf16.msra.mxu0 %v2292
    %2478 = vmatprep.subr.bf16.mxu0 %v2296
    %2479 = vmatpush1.bf16.msra.mxu0 %v2295
    %2480 = vmatprep.subr.bf16.mxu0 %v2299
    %2481 = vmatpush1.bf16.msra.mxu0 %v2298
    %2482 = vmatprep.subr.bf16.mxu0 %v2302
    %2483 = vmatpush1.bf16.msra.mxu0 %v2301
    %2484 = vmatprep.subr.bf16.mxu0 %v2305
    %2485 = vmatpush1.bf16.msra.mxu0 %v2304
    %2486 = vmatprep.subr.bf16.mxu0 %v2308
    %2487 = vmatpush1.bf16.msra.mxu0 %v2307
    %2488 = vmatprep.subr.bf16.mxu0 %v2311
    %2489 = vmatpush1.bf16.msra.mxu0 %v2310
    %2490 = vmatprep.subr.bf16.mxu0 %v2314
    %2491 = vmatpush1.bf16.msra.mxu0 %v2313
    %2492 = vmatprep.subr.bf16.mxu0 %v2317
    %2493 = vmatpush1.bf16.msra.mxu0 %v2316
    %2494 = vmatprep.subr.bf16.mxu0 %v2320
    %2495 = vmatpush1.bf16.msra.mxu0 %v2319
    %2496 = vmatprep.subr.bf16.mxu0 %v2323
    %2497 = vmatpush1.bf16.msra.mxu0 %v2322
    %2498 = vmatprep.subr.bf16.mxu0 %v2326
    %2499 = vmatpush1.bf16.msra.mxu0 %v2325
    %2500 = vmatprep.subr.bf16.mxu0 %v2329
    %2501 = vmatpush1.bf16.msra.mxu0 %v2328
    %2502 = vmatprep.mubr.bf16.mxu0 %v1914
    %2503 = vmatmul.mubr.bf16.gmra.mrb[0].mxu0 %v1913
    %v2504 = vpop.f32.mrb[0].mxu0
    %v2505 = vadd.f32 %v2462, %v2504
    %v2506 = vpop.f32.mrb[0].mxu0
    %v2507 = vadd.f32 %v2464, %v2506
    %v2508 = vpop.f32.mrb[0].mxu0
    %v2509 = vadd.f32 %v2466, %v2508
    %v2510 = vpop.f32.mrb[0].mxu0
    %v2511 = vadd.f32 %v2468, %v2510
    %2512 = vdwg.mxu0
    %2513 = vmatprep.subr.bf16.mxu0 0
    %2514 = vmatpush1.bf16.msra.mxu0 %v2237
    %2515 = vmatprep.subr.bf16.mxu0 0
    %2516 = vmatpush1.bf16.msra.mxu0 %v2240
    %2517 = vmatprep.subr.bf16.mxu0 0
    %2518 = vmatpush1.bf16.msra.mxu0 %v2243
    %2519 = vmatprep.subr.bf16.mxu0 0
    %2520 = vmatpush1.bf16.msra.mxu0 %v2246
    %2521 = vmatprep.subr.bf16.mxu0 0
    %2522 = vmatpush1.bf16.msra.mxu0 %v2249
    %2523 = vmatprep.subr.bf16.mxu0 0
    %2524 = vmatpush1.bf16.msra.mxu0 %v2252
    %2525 = vmatprep.subr.bf16.mxu0 0
    %2526 = vmatpush1.bf16.msra.mxu0 %v2255
    %2527 = vmatprep.subr.bf16.mxu0 0
    %2528 = vmatpush1.bf16.msra.mxu0 %v2258
    %2529 = vmatprep.subr.bf16.mxu0 0
    %2530 = vmatpush1.bf16.msra.mxu0 %v2261
    %2531 = vmatprep.subr.bf16.mxu0 0
    %2532 = vmatpush1.bf16.msra.mxu0 %v2264
    %2533 = vmatprep.subr.bf16.mxu0 0
    %2534 = vmatpush1.bf16.msra.mxu0 %v2267
    %2535 = vmatprep.subr.bf16.mxu0 0
    %2536 = vmatpush1.bf16.msra.mxu0 %v2270
    %2537 = vmatprep.subr.bf16.mxu0 0
    %2538 = vmatpush1.bf16.msra.mxu0 %v2273
    %2539 = vmatprep.subr.bf16.mxu0 0
    %2540 = vmatpush1.bf16.msra.mxu0 %v2276
    %2541 = vmatprep.subr.bf16.mxu0 0
    %2542 = vmatpush1.bf16.msra.mxu0 %v2279
    %2543 = vmatprep.subr.bf16.mxu0 0
    %2544 = vmatpush1.bf16.msra.mxu0 %v2282
    %2545 = vmatprep.mubr.bf16.mxu0 %v1912
    %2546 = vmatmul.mubr.bf16.gmra.mrb[0].mxu0 %v1911
    %v2547 = vpop.f32.mrb[0].mxu0
    %v2548 = vadd.f32 0.0, %v2547
    %v2549 = vpop.f32.mrb[0].mxu0
    %v2550 = vpop.f32.mrb[0].mxu0
    %v2551 = vadd.f32 0.0, %v2550
    %v2552 = vpop.f32.mrb[0].mxu0
    %2553 = vdwg.mxu0
    %2554 = vmatprep.subr.bf16.mxu0 0
    %2555 = vmatpush1.bf16.msra.mxu0 %v2285
    %2556 = vmatprep.subr.bf16.mxu0 0
    %2557 = vmatpush1.bf16.msra.mxu0 %v2288
    %2558 = vmatprep.subr.bf16.mxu0 0
    %2559 = vmatpush1.bf16.msra.mxu0 %v2291
    %2560 = vmatprep.subr.bf16.mxu0 0
    %2561 = vmatpush1.bf16.msra.mxu0 %v2294
    %2562 = vmatprep.subr.bf16.mxu0 0
    %2563 = vmatpush1.bf16.msra.mxu0 %v2297
    %2564 = vmatprep.subr.bf16.mxu0 0
    %2565 = vmatpush1.bf16.msra.mxu0 %v2300
    %2566 = vmatprep.subr.bf16.mxu0 0
    %2567 = vmatpush1.bf16.msra.mxu0 %v2303
    %2568 = vmatprep.subr.bf16.mxu0 0
    %2569 = vmatpush1.bf16.msra.mxu0 %v2306
    %2570 = vmatprep.subr.bf16.mxu0 0
    %2571 = vmatpush1.bf16.msra.mxu0 %v2309
    %2572 = vmatprep.subr.bf16.mxu0 0
    %2573 = vmatpush1.bf16.msra.mxu0 %v2312
    %2574 = vmatprep.subr.bf16.mxu0 0
    %2575 = vmatpush1.bf16.msra.mxu0 %v2315
    %2576 = vmatprep.subr.bf16.mxu0 0
    %2577 = vmatpush1.bf16.msra.mxu0 %v2318
    %2578 = vmatprep.subr.bf16.mxu0 0
    %2579 = vmatpush1.bf16.msra.mxu0 %v2321
    %2580 = vmatprep.subr.bf16.mxu0 0
    %2581 = vmatpush1.bf16.msra.mxu0 %v2324
    %2582 = vmatprep.subr.bf16.mxu0 0
    %2583 = vmatpush1.bf16.msra.mxu0 %v2327
    %2584 = vmatprep.subr.bf16.mxu0 0
    %2585 = vmatpush1.bf16.msra.mxu0 %v2330
    %2586 = vmatprep.mubr.bf16.mxu0 %v1914
    %2587 = vmatmul.mubr.bf16.gmra.mrb[0].mxu0 %v1913
    %v2588 = vpop.f32.mrb[0].mxu0
    %v2589 = vadd.f32 %v2548, %v2588
    %v2590 = vpop.f32.mrb[0].mxu0
    %v2591 = vpop.f32.mrb[0].mxu0
    %v2592 = vadd.f32 %v2551, %v2591
    %v2593 = vpop.f32.mrb[0].mxu0
    %2594 = vdwg.mxu0
    %v2723 = vunpack.c.l.b16 %v192
    %v2724 = vunpack.c.h.b16 %v192
    %v2725 = vunpack.c.l.b16 %v193
    %v2726 = vunpack.c.l.b16 %v194
    %v2727 = vunpack.c.h.b16 %v194
    %v2728 = vunpack.c.l.b16 %v195
    %v2729 = vunpack.c.l.b16 %v196
    %v2730 = vunpack.c.h.b16 %v196
    %v2731 = vunpack.c.l.b16 %v197
    %v2732 = vunpack.c.l.b16 %v198
    %v2733 = vunpack.c.h.b16 %v198
    %v2734 = vunpack.c.l.b16 %v199
    %v2735 = vunpack.c.l.b16 %v200
    %v2736 = vunpack.c.h.b16 %v200
    %v2737 = vunpack.c.l.b16 %v201
    %v2738 = vunpack.c.l.b16 %v202
    %v2739 = vunpack.c.h.b16 %v202
    %v2740 = vunpack.c.l.b16 %v203
    %v2741 = vunpack.c.l.b16 %v204
    %v2742 = vunpack.c.h.b16 %v204
    %v2743 = vunpack.c.l.b16 %v205
    %v2744 = vunpack.c.l.b16 %v206
    %v2745 = vunpack.c.h.b16 %v206
    %v2746 = vunpack.c.l.b16 %v207
    %v2747 = vunpack.c.l.b16 %v208
    %v2748 = vunpack.c.h.b16 %v208
    %v2749 = vunpack.c.l.b16 %v209
    %v2750 = vunpack.c.l.b16 %v210
    %v2751 = vunpack.c.h.b16 %v210
    %v2752 = vunpack.c.l.b16 %v211
    %v2753 = vunpack.c.l.b16 %v212
    %v2754 = vunpack.c.h.b16 %v212
    %v2755 = vunpack.c.l.b16 %v213
    %v2756 = vunpack.c.l.b16 %v214
    %v2757 = vunpack.c.h.b16 %v214
    %v2758 = vunpack.c.l.b16 %v215
    %v2759 = vunpack.c.l.b16 %v216
    %v2760 = vunpack.c.h.b16 %v216
    %v2761 = vunpack.c.l.b16 %v217
    %v2762 = vunpack.c.l.b16 %v218
    %v2763 = vunpack.c.h.b16 %v218
    %v2764 = vunpack.c.l.b16 %v219
    %v2765 = vunpack.c.l.b16 %v220
    %v2766 = vunpack.c.h.b16 %v220
    %v2767 = vunpack.c.l.b16 %v221
    %v2768 = vunpack.c.l.b16 %v222
    %v2769 = vunpack.c.h.b16 %v222
    %v2770 = vunpack.c.l.b16 %v223
    %v2771 = vunpack.c.l.b16 %v224
    %v2772 = vunpack.c.h.b16 %v224
    %v2773 = vunpack.c.l.b16 %v225
    %v2774 = vunpack.c.l.b16 %v226
    %v2775 = vunpack.c.h.b16 %v226
    %v2776 = vunpack.c.l.b16 %v227
    %v2777 = vunpack.c.l.b16 %v228
    %v2778 = vunpack.c.h.b16 %v228
    %v2779 = vunpack.c.l.b16 %v229
    %v2780 = vunpack.c.l.b16 %v230
    %v2781 = vunpack.c.h.b16 %v230
    %v2782 = vunpack.c.l.b16 %v231
    %v2783 = vunpack.c.l.b16 %v232
    %v2784 = vunpack.c.h.b16 %v232
    %v2785 = vunpack.c.l.b16 %v233
    %v2786 = vunpack.c.l.b16 %v234
    %v2787 = vunpack.c.h.b16 %v234
    %v2788 = vunpack.c.l.b16 %v235
    %v2789 = vunpack.c.l.b16 %v236
    %v2790 = vunpack.c.h.b16 %v236
    %v2791 = vunpack.c.l.b16 %v237
    %v2792 = vunpack.c.l.b16 %v238
    %v2793 = vunpack.c.h.b16 %v238
    %v2794 = vunpack.c.l.b16 %v239
    %v2795 = vunpack.c.l.b16 %v240
    %v2796 = vunpack.c.h.b16 %v240
    %v2797 = vunpack.c.l.b16 %v241
    %v2798 = vunpack.c.l.b16 %v242
    %v2799 = vunpack.c.h.b16 %v242
    %v2800 = vunpack.c.l.b16 %v243
    %v2801 = vunpack.c.l.b16 %v244
    %v2802 = vunpack.c.h.b16 %v244
    %v2803 = vunpack.c.l.b16 %v245
    %v2804 = vunpack.c.l.b16 %v246
    %v2805 = vunpack.c.h.b16 %v246
    %v2806 = vunpack.c.l.b16 %v247
    %v2807 = vunpack.c.l.b16 %v248
    %v2808 = vunpack.c.h.b16 %v248
    %v2809 = vunpack.c.l.b16 %v249
    %v2810 = vunpack.c.l.b16 %v250
    %v2811 = vunpack.c.h.b16 %v250
    %v2812 = vunpack.c.l.b16 %v251
    %v2813 = vunpack.c.l.b16 %v252
    %v2814 = vunpack.c.h.b16 %v252
    %v2815 = vunpack.c.l.b16 %v253
    %v2816 = vunpack.c.l.b16 %v254
    %v2817 = vunpack.c.h.b16 %v254
    %v2818 = vunpack.c.l.b16 %v255
    %v2819 = vunpack.c.l.b16 %v256
    %v2820 = vunpack.c.h.b16 %v256
    %v2821 = vunpack.c.l.b16 %v257
    %v2822 = vunpack.c.l.b16 %v258
    %v2823 = vunpack.c.h.b16 %v258
    %v2824 = vunpack.c.l.b16 %v259
    %v2825 = vunpack.c.l.b16 %v260
    %v2826 = vunpack.c.h.b16 %v260
    %v2827 = vunpack.c.l.b16 %v261
    %v2828 = vunpack.c.l.b16 %v262
    %v2829 = vunpack.c.h.b16 %v262
    %v2830 = vunpack.c.l.b16 %v263
    %v2831 = vunpack.c.l.b16 %v264
    %v2832 = vunpack.c.h.b16 %v264
    %v2833 = vunpack.c.l.b16 %v265
    %v2834 = vunpack.c.l.b16 %v266
    %v2835 = vunpack.c.h.b16 %v266
    %v2836 = vunpack.c.l.b16 %v267
    %v2837 = vunpack.c.l.b16 %v268
    %v2838 = vunpack.c.h.b16 %v268
    %v2839 = vunpack.c.l.b16 %v269
    %v2840 = vunpack.c.l.b16 %v270
    %v2841 = vunpack.c.h.b16 %v270
    %v2842 = vunpack.c.l.b16 %v271
    %v2843 = vunpack.c.l.b16 %v272
    %v2844 = vunpack.c.h.b16 %v272
    %v2845 = vunpack.c.l.b16 %v273
    %v2846 = vunpack.c.l.b16 %v274
    %v2847 = vunpack.c.h.b16 %v274
    %v2848 = vunpack.c.l.b16 %v275
    %v2849 = vunpack.c.l.b16 %v276
    %v2850 = vunpack.c.h.b16 %v276
    %v2851 = vunpack.c.l.b16 %v277
    %v2852 = vunpack.c.l.b16 %v278
    %v2853 = vunpack.c.h.b16 %v278
    %v2854 = vunpack.c.l.b16 %v279
    %v2855 = vunpack.c.l.b16 %v280
    %v2856 = vunpack.c.h.b16 %v280
    %v2857 = vunpack.c.l.b16 %v281
    %v2858 = vunpack.c.l.b16 %v282
    %v2859 = vunpack.c.h.b16 %v282
    %v2860 = vunpack.c.l.b16 %v283
    %v2861 = vunpack.c.l.b16 %v284
    %v2862 = vunpack.c.h.b16 %v284
    %v2863 = vunpack.c.l.b16 %v285
    %v2864 = vunpack.c.l.b16 %v286
    %v2865 = vunpack.c.h.b16 %v286
    %v2866 = vunpack.c.l.b16 %v287
    %v2867 = vunpack.c.l.b16 %v288
    %v2868 = vunpack.c.h.b16 %v288
    %v2869 = vunpack.c.l.b16 %v289
    %v2870 = vunpack.c.l.b16 %v290
    %v2871 = vunpack.c.h.b16 %v290
    %v2872 = vunpack.c.l.b16 %v291
    %v2873 = vunpack.c.l.b16 %v292
    %v2874 = vunpack.c.h.b16 %v292
    %v2875 = vunpack.c.l.b16 %v293
    %v2876 = vunpack.c.l.b16 %v294
    %v2877 = vunpack.c.h.b16 %v294
    %v2878 = vunpack.c.l.b16 %v295
    %v2879 = vunpack.c.l.b16 %v296
    %v2880 = vunpack.c.h.b16 %v296
    %v2881 = vunpack.c.l.b16 %v297
    %v2882 = vunpack.c.l.b16 %v298
    %v2883 = vunpack.c.h.b16 %v298
    %v2884 = vunpack.c.l.b16 %v299
    %v2885 = vunpack.c.l.b16 %v300
    %v2886 = vunpack.c.h.b16 %v300
    %v2887 = vunpack.c.l.b16 %v301
    %v2888 = vunpack.c.l.b16 %v302
    %v2889 = vunpack.c.h.b16 %v302
    %v2890 = vunpack.c.l.b16 %v303
    %v2891 = vunpack.c.l.b16 %v304
    %v2892 = vunpack.c.h.b16 %v304
    %v2893 = vunpack.c.l.b16 %v305
    %v2894 = vunpack.c.l.b16 %v306
    %v2895 = vunpack.c.h.b16 %v306
    %v2896 = vunpack.c.l.b16 %v307
    %v2897 = vunpack.c.l.b16 %v308
    %v2898 = vunpack.c.h.b16 %v308
    %v2899 = vunpack.c.l.b16 %v309
    %v2900 = vunpack.c.l.b16 %v310
    %v2901 = vunpack.c.h.b16 %v310
    %v2902 = vunpack.c.l.b16 %v311
    %v2903 = vunpack.c.l.b16 %v312
    %v2904 = vunpack.c.h.b16 %v312
    %v2905 = vunpack.c.l.b16 %v313
    %v2906 = vunpack.c.l.b16 %v314
    %v2907 = vunpack.c.h.b16 %v314
    %v2908 = vunpack.c.l.b16 %v315
    %v2909 = vunpack.c.l.b16 %v316
    %v2910 = vunpack.c.h.b16 %v316
    %v2911 = vunpack.c.l.b16 %v317
    %v2912 = vunpack.c.l.b16 %v318
    %v2913 = vunpack.c.h.b16 %v318
    %v2914 = vunpack.c.l.b16 %v319
    %v2915 = vpack.c.b16 %v2726, %v2723
    %v2916 = vpack.c.b16 %v2727, %v2724
    %v2917 = vpack.c.b16 %v2728, %v2725
    %v2918 = vpack.c.b16 %v2732, %v2729
    %v2919 = vpack.c.b16 %v2733, %v2730
    %v2920 = vpack.c.b16 %v2734, %v2731
    %v2921 = vpack.c.b16 %v2738, %v2735
    %v2922 = vpack.c.b16 %v2739, %v2736
    %v2923 = vpack.c.b16 %v2740, %v2737
    %v2924 = vpack.c.b16 %v2744, %v2741
    %v2925 = vpack.c.b16 %v2745, %v2742
    %v2926 = vpack.c.b16 %v2746, %v2743
    %v2927 = vpack.c.b16 %v2750, %v2747
    %v2928 = vpack.c.b16 %v2751, %v2748
    %v2929 = vpack.c.b16 %v2752, %v2749
    %v2930 = vpack.c.b16 %v2756, %v2753
    %v2931 = vpack.c.b16 %v2757, %v2754
    %v2932 = vpack.c.b16 %v2758, %v2755
    %v2933 = vpack.c.b16 %v2762, %v2759
    %v2934 = vpack.c.b16 %v2763, %v2760
    %v2935 = vpack.c.b16 %v2764, %v2761
    %v2936 = vpack.c.b16 %v2768, %v2765
    %v2937 = vpack.c.b16 %v2769, %v2766
    %v2938 = vpack.c.b16 %v2770, %v2767
    %v2939 = vpack.c.b16 %v2774, %v2771
    %v2940 = vpack.c.b16 %v2775, %v2772
    %v2941 = vpack.c.b16 %v2776, %v2773
    %v2942 = vpack.c.b16 %v2780, %v2777
    %v2943 = vpack.c.b16 %v2781, %v2778
    %v2944 = vpack.c.b16 %v2782, %v2779
    %v2945 = vpack.c.b16 %v2786, %v2783
    %v2946 = vpack.c.b16 %v2787, %v2784
    %v2947 = vpack.c.b16 %v2788, %v2785
    %v2948 = vpack.c.b16 %v2792, %v2789
    %v2949 = vpack.c.b16 %v2793, %v2790
    %v2950 = vpack.c.b16 %v2794, %v2791
    %v2951 = vpack.c.b16 %v2798, %v2795
    %v2952 = vpack.c.b16 %v2799, %v2796
    %v2953 = vpack.c.b16 %v2800, %v2797
    %v2954 = vpack.c.b16 %v2804, %v2801
    %v2955 = vpack.c.b16 %v2805, %v2802
    %v2956 = vpack.c.b16 %v2806, %v2803
    %v2957 = vpack.c.b16 %v2810, %v2807
    %v2958 = vpack.c.b16 %v2811, %v2808
    %v2959 = vpack.c.b16 %v2812, %v2809
    %v2960 = vpack.c.b16 %v2816, %v2813
    %v2961 = vpack.c.b16 %v2817, %v2814
    %v2962 = vpack.c.b16 %v2818, %v2815
    %v2963 = vpack.c.b16 %v2822, %v2819
    %v2964 = vpack.c.b16 %v2823, %v2820
    %v2965 = vpack.c.b16 %v2824, %v2821
    %v2966 = vpack.c.b16 %v2828, %v2825
    %v2967 = vpack.c.b16 %v2829, %v2826
    %v2968 = vpack.c.b16 %v2830, %v2827
    %v2969 = vpack.c.b16 %v2834, %v2831
    %v2970 = vpack.c.b16 %v2835, %v2832
    %v2971 = vpack.c.b16 %v2836, %v2833
    %v2972 = vpack.c.b16 %v2840, %v2837
    %v2973 = vpack.c.b16 %v2841, %v2838
    %v2974 = vpack.c.b16 %v2842, %v2839
    %v2975 = vpack.c.b16 %v2846, %v2843
    %v2976 = vpack.c.b16 %v2847, %v2844
    %v2977 = vpack.c.b16 %v2848, %v2845
    %v2978 = vpack.c.b16 %v2852, %v2849
    %v2979 = vpack.c.b16 %v2853, %v2850
    %v2980 = vpack.c.b16 %v2854, %v2851
    %v2981 = vpack.c.b16 %v2858, %v2855
    %v2982 = vpack.c.b16 %v2859, %v2856
    %v2983 = vpack.c.b16 %v2860, %v2857
    %v2984 = vpack.c.b16 %v2864, %v2861
    %v2985 = vpack.c.b16 %v2865, %v2862
    %v2986 = vpack.c.b16 %v2866, %v2863
    %v2987 = vpack.c.b16 %v2870, %v2867
    %v2988 = vpack.c.b16 %v2871, %v2868
    %v2989 = vpack.c.b16 %v2872, %v2869
    %v2990 = vpack.c.b16 %v2876, %v2873
    %v2991 = vpack.c.b16 %v2877, %v2874
    %v2992 = vpack.c.b16 %v2878, %v2875
    %v2993 = vpack.c.b16 %v2882, %v2879
    %v2994 = vpack.c.b16 %v2883, %v2880
    %v2995 = vpack.c.b16 %v2884, %v2881
    %v2996 = vpack.c.b16 %v2888, %v2885
    %v2997 = vpack.c.b16 %v2889, %v2886
    %v2998 = vpack.c.b16 %v2890, %v2887
    %v2999 = vpack.c.b16 %v2894, %v2891
    %v3000 = vpack.c.b16 %v2895, %v2892
    %v3001 = vpack.c.b16 %v2896, %v2893
    %v3002 = vpack.c.b16 %v2900, %v2897
    %v3003 = vpack.c.b16 %v2901, %v2898
    %v3004 = vpack.c.b16 %v2902, %v2899
    %v3005 = vpack.c.b16 %v2906, %v2903
    %v3006 = vpack.c.b16 %v2907, %v2904
    %v3007 = vpack.c.b16 %v2908, %v2905
    %v3008 = vpack.c.b16 %v2912, %v2909
    %v3009 = vpack.c.b16 %v2913, %v2910
    %v3010 = vpack.c.b16 %v2914, %v2911
    %3107 = vmatprep.subr.bf16.mxu0 %v2916
    %3108 = vmatpush1.bf16.msra.mxu0 %v2915
    %3109 = vmatprep.subr.bf16.mxu0 %v2919
    %3110 = vmatpush1.bf16.msra.mxu0 %v2918
    %3111 = vmatprep.subr.bf16.mxu0 %v2922
    %3112 = vmatpush1.bf16.msra.mxu0 %v2921
    %3113 = vmatprep.subr.bf16.mxu0 %v2925
    %3114 = vmatpush1.bf16.msra.mxu0 %v2924
    %3115 = vmatprep.subr.bf16.mxu0 %v2928
    %3116 = vmatpush1.bf16.msra.mxu0 %v2927
    %3117 = vmatprep.subr.bf16.mxu0 %v2931
    %3118 = vmatpush1.bf16.msra.mxu0 %v2930
    %3119 = vmatprep.subr.bf16.mxu0 %v2934
    %3120 = vmatpush1.bf16.msra.mxu0 %v2933
    %3121 = vmatprep.subr.bf16.mxu0 %v2937
    %3122 = vmatpush1.bf16.msra.mxu0 %v2936
    %3123 = vmatprep.subr.bf16.mxu0 %v2940
    %3124 = vmatpush1.bf16.msra.mxu0 %v2939
    %3125 = vmatprep.subr.bf16.mxu0 %v2943
    %3126 = vmatpush1.bf16.msra.mxu0 %v2942
    %3127 = vmatprep.subr.bf16.mxu0 %v2946
    %3128 = vmatpush1.bf16.msra.mxu0 %v2945
    %3129 = vmatprep.subr.bf16.mxu0 %v2949
    %3130 = vmatpush1.bf16.msra.mxu0 %v2948
    %3131 = vmatprep.subr.bf16.mxu0 %v2952
    %3132 = vmatpush1.bf16.msra.mxu0 %v2951
    %3133 = vmatprep.subr.bf16.mxu0 %v2955
    %3134 = vmatpush1.bf16.msra.mxu0 %v2954
    %3135 = vmatprep.subr.bf16.mxu0 %v2958
    %3136 = vmatpush1.bf16.msra.mxu0 %v2957
    %3137 = vmatprep.subr.bf16.mxu0 %v2961
    %3138 = vmatpush1.bf16.msra.mxu0 %v2960
    %3139 = vmatprep.mubr.bf16.mxu0 %v1002
    %3140 = vmatmul.mubr.bf16.gmra.mrb[0].mxu0 %v1001
    %v3141 = vpop.f32.mrb[0].mxu0
    %v3142 = vadd.f32 %v2505, %v3141
    %v3143 = vpop.f32.mrb[0].mxu0
    %v3144 = vadd.f32 %v2507, %v3143
    %v3145 = vpop.f32.mrb[0].mxu0
    %v3146 = vadd.f32 %v2509, %v3145
    %v3147 = vpop.f32.mrb[0].mxu0
    %v3148 = vadd.f32 %v2511, %v3147
    %3149 = vdwg.mxu0
    %3150 = vmatprep.subr.bf16.mxu0 %v2964
    %3151 = vmatpush1.bf16.msra.mxu0 %v2963
    %3152 = vmatprep.subr.bf16.mxu0 %v2967
    %3153 = vmatpush1.bf16.msra.mxu0 %v2966
    %3154 = vmatprep.subr.bf16.mxu0 %v2970
    %3155 = vmatpush1.bf16.msra.mxu0 %v2969
    %3156 = vmatprep.subr.bf16.mxu0 %v2973
    %3157 = vmatpush1.bf16.msra.mxu0 %v2972
    %3158 = vmatprep.subr.bf16.mxu0 %v2976
    %3159 = vmatpush1.bf16.msra.mxu0 %v2975
    %3160 = vmatprep.subr.bf16.mxu0 %v2979
    %3161 = vmatpush1.bf16.msra.mxu0 %v2978
    %3162 = vmatprep.subr.bf16.mxu0 %v2982
    %3163 = vmatpush1.bf16.msra.mxu0 %v2981
    %3164 = vmatprep.subr.bf16.mxu0 %v2985
    %3165 = vmatpush1.bf16.msra.mxu0 %v2984
    %3166 = vmatprep.subr.bf16.mxu0 %v2988
    %3167 = vmatpush1.bf16.msra.mxu0 %v2987
    %3168 = vmatprep.subr.bf16.mxu0 %v2991
    %3169 = vmatpush1.bf16.msra.mxu0 %v2990
    %3170 = vmatprep.subr.bf16.mxu0 %v2994
    %3171 = vmatpush1.bf16.msra.mxu0 %v2993
    %3172 = vmatprep.subr.bf16.mxu0 %v2997
    %3173 = vmatpush1.bf16.msra.mxu0 %v2996
    %3174 = vmatprep.subr.bf16.mxu0 %v3000
    %3175 = vmatpush1.bf16.msra.mxu0 %v2999
    %3176 = vmatprep.subr.bf16.mxu0 %v3003
    %3177 = vmatpush1.bf16.msra.mxu0 %v3002
    %3178 = vmatprep.subr.bf16.mxu0 %v3006
    %3179 = vmatpush1.bf16.msra.mxu0 %v3005
    %3180 = vmatprep.subr.bf16.mxu0 %v3009
    %3181 = vmatpush1.bf16.msra.mxu0 %v3008
    %3182 = vmatprep.mubr.bf16.mxu0 %v1004
    %3183 = vmatmul.mubr.bf16.gmra.mrb[0].mxu0 %v1003
    %v3184 = vpop.f32.mrb[0].mxu0
    %v3185 = vadd.f32 %v3142, %v3184
    %v3186 = vpop.f32.mrb[0].mxu0
    %v3187 = vadd.f32 %v3144, %v3186
    %v3188 = vpop.f32.mrb[0].mxu0
    %v3189 = vadd.f32 %v3146, %v3188
    %v3190 = vpop.f32.mrb[0].mxu0
    %v3191 = vadd.f32 %v3148, %v3190
    %3192 = vdwg.mxu0
    %3193 = vmatprep.subr.bf16.mxu0 0
    %3194 = vmatpush1.bf16.msra.mxu0 %v2917
    %3195 = vmatprep.subr.bf16.mxu0 0
    %3196 = vmatpush1.bf16.msra.mxu0 %v2920
    %3197 = vmatprep.subr.bf16.mxu0 0
    %3198 = vmatpush1.bf16.msra.mxu0 %v2923
    %3199 = vmatprep.subr.bf16.mxu0 0
    %3200 = vmatpush1.bf16.msra.mxu0 %v2926
    %3201 = vmatprep.subr.bf16.mxu0 0
    %3202 = vmatpush1.bf16.msra.mxu0 %v2929
    %3203 = vmatprep.subr.bf16.mxu0 0
    %3204 = vmatpush1.bf16.msra.mxu0 %v2932
    %3205 = vmatprep.subr.bf16.mxu0 0
    %3206 = vmatpush1.bf16.msra.mxu0 %v2935
    %3207 = vmatprep.subr.bf16.mxu0 0
    %3208 = vmatpush1.bf16.msra.mxu0 %v2938
    %3209 = vmatprep.subr.bf16.mxu0 0
    %3210 = vmatpush1.bf16.msra.mxu0 %v2941
    %3211 = vmatprep.subr.bf16.mxu0 0
    %3212 = vmatpush1.bf16.msra.mxu0 %v2944
    %3213 = vmatprep.subr.bf16.mxu0 0
    %3214 = vmatpush1.bf16.msra.mxu0 %v2947
    %3215 = vmatprep.subr.bf16.mxu0 0
    %3216 = vmatpush1.bf16.msra.mxu0 %v2950
    %3217 = vmatprep.subr.bf16.mxu0 0
    %3218 = vmatpush1.bf16.msra.mxu0 %v2953
    %3219 = vmatprep.subr.bf16.mxu0 0
    %3220 = vmatpush1.bf16.msra.mxu0 %v2956
    %3221 = vmatprep.subr.bf16.mxu0 0
    %3222 = vmatpush1.bf16.msra.mxu0 %v2959
    %3223 = vmatprep.subr.bf16.mxu0 0
    %3224 = vmatpush1.bf16.msra.mxu0 %v2962
    %3225 = vmatprep.mubr.bf16.mxu0 %v1002
    %3226 = vmatmul.mubr.bf16.gmra.mrb[0].mxu0 %v1001
    %v3227 = vpop.f32.mrb[0].mxu0
    %v3228 = vadd.f32 %v2589, %v3227
    %v3229 = vpop.f32.mrb[0].mxu0
    %v3230 = vpop.f32.mrb[0].mxu0
    %v3231 = vadd.f32 %v2592, %v3230
    %v3232 = vpop.f32.mrb[0].mxu0
    %3233 = vdwg.mxu0
    %3234 = vmatprep.subr.bf16.mxu0 0
    %3235 = vmatpush1.bf16.msra.mxu0 %v2965
    %3236 = vmatprep.subr.bf16.mxu0 0
    %3237 = vmatpush1.bf16.msra.mxu0 %v2968
    %3238 = vmatprep.subr.bf16.mxu0 0
    %3239 = vmatpush1.bf16.msra.mxu0 %v2971
    %3240 = vmatprep.subr.bf16.mxu0 0
    %3241 = vmatpush1.bf16.msra.mxu0 %v2974
    %3242 = vmatprep.subr.bf16.mxu0 0
    %3243 = vmatpush1.bf16.msra.mxu0 %v2977
    %3244 = vmatprep.subr.bf16.mxu0 0
    %3245 = vmatpush1.bf16.msra.mxu0 %v2980
    %3246 = vmatprep.subr.bf16.mxu0 0
    %3247 = vmatpush1.bf16.msra.mxu0 %v2983
    %3248 = vmatprep.subr.bf16.mxu0 0
    %3249 = vmatpush1.bf16.msra.mxu0 %v2986
    %3250 = vmatprep.subr.bf16.mxu0 0
    %3251 = vmatpush1.bf16.msra.mxu0 %v2989
    %3252 = vmatprep.subr.bf16.mxu0 0
    %3253 = vmatpush1.bf16.msra.mxu0 %v2992
    %3254 = vmatprep.subr.bf16.mxu0 0
    %3255 = vmatpush1.bf16.msra.mxu0 %v2995
    %3256 = vmatprep.subr.bf16.mxu0 0
    %3257 = vmatpush1.bf16.msra.mxu0 %v2998
    %3258 = vmatprep.subr.bf16.mxu0 0
    %3259 = vmatpush1.bf16.msra.mxu0 %v3001
    %3260 = vmatprep.subr.bf16.mxu0 0
    %3261 = vmatpush1.bf16.msra.mxu0 %v3004
    %3262 = vmatprep.subr.bf16.mxu0 0
    %3263 = vmatpush1.bf16.msra.mxu0 %v3007
    %3264 = vmatprep.subr.bf16.mxu0 0
    %3265 = vmatpush1.bf16.msra.mxu0 %v3010
    %3266 = vmatprep.mubr.bf16.mxu0 %v1004
    %3267 = vmatmul.mubr.bf16.gmra.mrb[0].mxu0 %v1003
    %v3268 = vpop.f32.mrb[0].mxu0
    %v3269 = vadd.f32 %v3228, %v3268
    %v3270 = vpop.f32.mrb[0].mxu0
    %v3271 = vpop.f32.mrb[0].mxu0
    %v3272 = vadd.f32 %v3231, %v3271
    %v3273 = vpop.f32.mrb[0].mxu0
    %3274 = vdwg.mxu0
    %v3275 = vld [vmem:[#allocation5 + $0x20] sm:$0xff]
    %v3276 = vld [vmem:[#allocation5 + $0x28] sm:$0xff]
    %v3277 = vld [vmem:[#allocation5 + $0x50] sm:$0xff]
    %v3278 = vld [vmem:[#allocation5 + $0x58] sm:$0xff]
    %v3279 = vld [vmem:[#allocation5 + $0x80] sm:$0xff]
    %v3280 = vld [vmem:[#allocation5 + $0x88] sm:$0xff]
    %v3281 = vld [vmem:[#allocation5 + $0xb0] sm:$0xff]
    %v3282 = vld [vmem:[#allocation5 + $0xb8] sm:$0xff]
    %v3283 = vld [vmem:[#allocation5 + $0xe0] sm:$0xff]
    %v3284 = vld [vmem:[#allocation5 + $0xe8] sm:$0xff]
    %v3285 = vld [vmem:[#allocation5 + $0x110] sm:$0xff]
    %v3286 = vld [vmem:[#allocation5 + $0x118] sm:$0xff]
    %v3287 = vld [vmem:[#allocation5 + $0x140] sm:$0xff]
    %v3288 = vld [vmem:[#allocation5 + $0x148] sm:$0xff]
    %v3289 = vld [vmem:[#allocation5 + $0x170] sm:$0xff]
    %v3290 = vld [vmem:[#allocation5 + $0x178] sm:$0xff]
    %v3291 = vld [vmem:[#allocation5 + $0x1a0] sm:$0xff]
    %v3292 = vld [vmem:[#allocation5 + $0x1a8] sm:$0xff]
    %v3293 = vld [vmem:[#allocation5 + $0x1d0] sm:$0xff]
    %v3294 = vld [vmem:[#allocation5 + $0x1d8] sm:$0xff]
    %v3295 = vld [vmem:[#allocation5 + $0x200] sm:$0xff]
    %v3296 = vld [vmem:[#allocation5 + $0x208] sm:$0xff]
    %v3297 = vld [vmem:[#allocation5 + $0x230] sm:$0xff]
    %v3298 = vld [vmem:[#allocation5 + $0x238] sm:$0xff]
    %v3299 = vld [vmem:[#allocation5 + $0x260] sm:$0xff]
    %v3300 = vld [vmem:[#allocation5 + $0x268] sm:$0xff]
    %v3301 = vld [vmem:[#allocation5 + $0x290] sm:$0xff]
    %v3302 = vld [vmem:[#allocation5 + $0x298] sm:$0xff]
    %v3303 = vld [vmem:[#allocation5 + $0x2c0] sm:$0xff]
    %v3304 = vld [vmem:[#allocation5 + $0x2c8] sm:$0xff]
    %v3305 = vld [vmem:[#allocation5 + $0x2f0] sm:$0xff]
    %v3306 = vld [vmem:[#allocation5 + $0x2f8] sm:$0xff]
    %v3307 = vld [vmem:[#allocation5 + $0x320] sm:$0xff]
    %v3308 = vld [vmem:[#allocation5 + $0x328] sm:$0xff]
    %v3309 = vld [vmem:[#allocation5 + $0x350] sm:$0xff]
    %v3310 = vld [vmem:[#allocation5 + $0x358] sm:$0xff]
    %v3311 = vld [vmem:[#allocation5 + $0x380] sm:$0xff]
    %v3312 = vld [vmem:[#allocation5 + $0x388] sm:$0xff]
    %v3313 = vld [vmem:[#allocation5 + $0x3b0] sm:$0xff]
    %v3314 = vld [vmem:[#allocation5 + $0x3b8] sm:$0xff]
    %v3315 = vld [vmem:[#allocation5 + $0x3e0] sm:$0xff]
    %v3316 = vld [vmem:[#allocation5 + $0x3e8] sm:$0xff]
    %v3317 = vld [vmem:[#allocation5 + $0x410] sm:$0xff]
    %v3318 = vld [vmem:[#allocation5 + $0x418] sm:$0xff]
    %v3319 = vld [vmem:[#allocation5 + $0x440] sm:$0xff]
    %v3320 = vld [vmem:[#allocation5 + $0x448] sm:$0xff]
    %v3321 = vld [vmem:[#allocation5 + $0x470] sm:$0xff]
    %v3322 = vld [vmem:[#allocation5 + $0x478] sm:$0xff]
    %v3323 = vld [vmem:[#allocation5 + $0x4a0] sm:$0xff]
    %v3324 = vld [vmem:[#allocation5 + $0x4a8] sm:$0xff]
    %v3325 = vld [vmem:[#allocation5 + $0x4d0] sm:$0xff]
    %v3326 = vld [vmem:[#allocation5 + $0x4d8] sm:$0xff]
    %v3327 = vld [vmem:[#allocation5 + $0x500] sm:$0xff]
    %v3328 = vld [vmem:[#allocation5 + $0x508] sm:$0xff]
    %v3329 = vld [vmem:[#allocation5 + $0x530] sm:$0xff]
    %v3330 = vld [vmem:[#allocation5 + $0x538] sm:$0xff]
    %v3331 = vld [vmem:[#allocation5 + $0x560] sm:$0xff]
    %v3332 = vld [vmem:[#allocation5 + $0x568] sm:$0xff]
    %v3333 = vld [vmem:[#allocation5 + $0x590] sm:$0xff]
    %v3334 = vld [vmem:[#allocation5 + $0x598] sm:$0xff]
    %v3335 = vld [vmem:[#allocation5 + $0x5c0] sm:$0xff]
    %v3336 = vld [vmem:[#allocation5 + $0x5c8] sm:$0xff]
    %v3337 = vld [vmem:[#allocation5 + $0x5f0] sm:$0xff]
    %v3338 = vld [vmem:[#allocation5 + $0x5f8] sm:$0xff]
    %v3339 = vld [vmem:[#allocation5 + $0x620] sm:$0xff]
    %v3340 = vld [vmem:[#allocation5 + $0x628] sm:$0xff]
    %v3341 = vld [vmem:[#allocation5 + $0x650] sm:$0xff]
    %v3342 = vld [vmem:[#allocation5 + $0x658] sm:$0xff]
    %v3343 = vld [vmem:[#allocation5 + $0x680] sm:$0xff]
    %v3344 = vld [vmem:[#allocation5 + $0x688] sm:$0xff]
    %v3345 = vld [vmem:[#allocation5 + $0x6b0] sm:$0xff]
    %v3346 = vld [vmem:[#allocation5 + $0x6b8] sm:$0xff]
    %v3347 = vld [vmem:[#allocation5 + $0x6e0] sm:$0xff]
    %v3348 = vld [vmem:[#allocation5 + $0x6e8] sm:$0xff]
    %v3349 = vld [vmem:[#allocation5 + $0x710] sm:$0xff]
    %v3350 = vld [vmem:[#allocation5 + $0x718] sm:$0xff]
    %v3351 = vld [vmem:[#allocation5 + $0x740] sm:$0xff]
    %v3352 = vld [vmem:[#allocation5 + $0x748] sm:$0xff]
    %v3353 = vld [vmem:[#allocation5 + $0x770] sm:$0xff]
    %v3354 = vld [vmem:[#allocation5 + $0x778] sm:$0xff]
    %v3355 = vld [vmem:[#allocation5 + $0x7a0] sm:$0xff]
    %v3356 = vld [vmem:[#allocation5 + $0x7a8] sm:$0xff]
    %v3357 = vld [vmem:[#allocation5 + $0x7d0] sm:$0xff]
    %v3358 = vld [vmem:[#allocation5 + $0x7d8] sm:$0xff]
    %v3359 = vld [vmem:[#allocation5 + $0x800] sm:$0xff]
    %v3360 = vld [vmem:[#allocation5 + $0x808] sm:$0xff]
    %v3361 = vld [vmem:[#allocation5 + $0x830] sm:$0xff]
    %v3362 = vld [vmem:[#allocation5 + $0x838] sm:$0xff]
    %v3363 = vld [vmem:[#allocation5 + $0x860] sm:$0xff]
    %v3364 = vld [vmem:[#allocation5 + $0x868] sm:$0xff]
    %v3365 = vld [vmem:[#allocation5 + $0x890] sm:$0xff]
    %v3366 = vld [vmem:[#allocation5 + $0x898] sm:$0xff]
    %v3367 = vld [vmem:[#allocation5 + $0x8c0] sm:$0xff]
    %v3368 = vld [vmem:[#allocation5 + $0x8c8] sm:$0xff]
    %v3369 = vld [vmem:[#allocation5 + $0x8f0] sm:$0xff]
    %v3370 = vld [vmem:[#allocation5 + $0x8f8] sm:$0xff]
    %v3371 = vld [vmem:[#allocation7 + $0x8] sm:$0xf]
    %v3372 = vld [vmem:[#allocation8 + $0x600] sm:$0xff]
    %v3373 = vld [vmem:[#allocation8 + $0x608] sm:$0xf]
    %v3374 = vld [vmem:[#allocation8 + $0x60c] sm:$0xff]
    %v3375 = vld [vmem:[#allocation8 + $0x614] sm:$0xf]
    %v3376 = vld [vmem:[#allocation8 + $0x618] sm:$0xff]
    %v3377 = vld [vmem:[#allocation8 + $0x620] sm:$0xf]
    %v3378 = vld [vmem:[#allocation8 + $0x624] sm:$0xff]
    %v3379 = vld [vmem:[#allocation8 + $0x62c] sm:$0xf]
    %v3380 = vld [vmem:[#allocation8 + $0x630] sm:$0xff]
    %v3381 = vld [vmem:[#allocation8 + $0x638] sm:$0xf]
    %v3382 = vld [vmem:[#allocation8 + $0x63c] sm:$0xff]
    %v3383 = vld [vmem:[#allocation8 + $0x644] sm:$0xf]
    %v3384 = vld [vmem:[#allocation8 + $0x648] sm:$0xff]
    %v3385 = vld [vmem:[#allocation8 + $0x650] sm:$0xf]
    %v3386 = vld [vmem:[#allocation8 + $0x654] sm:$0xff]
    %v3387 = vld [vmem:[#allocation8 + $0x65c] sm:$0xf]
    %v3388 = vld [vmem:[#allocation8 + $0x660] sm:$0xff]
    %v3389 = vld [vmem:[#allocation8 + $0x668] sm:$0xf]
    %v3390 = vld [vmem:[#allocation8 + $0x66c] sm:$0xff]
    %v3391 = vld [vmem:[#allocation8 + $0x674] sm:$0xf]
    %v3392 = vld [vmem:[#allocation8 + $0x678] sm:$0xff]
    %v3393 = vld [vmem:[#allocation8 + $0x680] sm:$0xf]
    %v3394 = vld [vmem:[#allocation8 + $0x684] sm:$0xff]
    %v3395 = vld [vmem:[#allocation8 + $0x68c] sm:$0xf]
    %v3396 = vld [vmem:[#allocation8 + $0x690] sm:$0xff]
    %v3397 = vld [vmem:[#allocation8 + $0x698] sm:$0xf]
    %v3398 = vld [vmem:[#allocation8 + $0x69c] sm:$0xff]
    %v3399 = vld [vmem:[#allocation8 + $0x6a4] sm:$0xf]
    %v3400 = vld [vmem:[#allocation8 + $0x6a8] sm:$0xff]
    %v3401 = vld [vmem:[#allocation8 + $0x6b0] sm:$0xf]
    %v3402 = vld [vmem:[#allocation8 + $0x6b4] sm:$0xff]
    %v3403 = vld [vmem:[#allocation8 + $0x6bc] sm:$0xf]
    %v3404 = vld [vmem:[#allocation8 + $0x6c0] sm:$0xff]
    %v3405 = vld [vmem:[#allocation8 + $0x6c8] sm:$0xf]
    %v3406 = vld [vmem:[#allocation8 + $0x6cc] sm:$0xff]
    %v3407 = vld [vmem:[#allocation8 + $0x6d4] sm:$0xf]
    %v3408 = vld [vmem:[#allocation8 + $0x6d8] sm:$0xff]
    %v3409 = vld [vmem:[#allocation8 + $0x6e0] sm:$0xf]
    %v3410 = vld [vmem:[#allocation8 + $0x6e4] sm:$0xff]
    %v3411 = vld [vmem:[#allocation8 + $0x6ec] sm:$0xf]
    %v3412 = vld [vmem:[#allocation8 + $0x6f0] sm:$0xff]
    %v3413 = vld [vmem:[#allocation8 + $0x6f8] sm:$0xf]
    %v3414 = vld [vmem:[#allocation8 + $0x6fc] sm:$0xff]
    %v3415 = vld [vmem:[#allocation8 + $0x704] sm:$0xf]
    %v3416 = vld [vmem:[#allocation8 + $0x708] sm:$0xff]
    %v3417 = vld [vmem:[#allocation8 + $0x710] sm:$0xf]
    %v3418 = vld [vmem:[#allocation8 + $0x714] sm:$0xff]
    %v3419 = vld [vmem:[#allocation8 + $0x71c] sm:$0xf]
    %v3420 = vld [vmem:[#allocation8 + $0x720] sm:$0xff]
    %v3421 = vld [vmem:[#allocation8 + $0x728] sm:$0xf]
    %v3422 = vld [vmem:[#allocation8 + $0x72c] sm:$0xff]
    %v3423 = vld [vmem:[#allocation8 + $0x734] sm:$0xf]
    %v3424 = vld [vmem:[#allocation8 + $0x738] sm:$0xff]
    %v3425 = vld [vmem:[#allocation8 + $0x740] sm:$0xf]
    %v3426 = vld [vmem:[#allocation8 + $0x744] sm:$0xff]
    %v3427 = vld [vmem:[#allocation8 + $0x74c] sm:$0xf]
    %v3428 = vld [vmem:[#allocation8 + $0x750] sm:$0xff]
    %v3429 = vld [vmem:[#allocation8 + $0x758] sm:$0xf]
    %v3430 = vld [vmem:[#allocation8 + $0x75c] sm:$0xff]
    %v3431 = vld [vmem:[#allocation8 + $0x764] sm:$0xf]
    %v3432 = vld [vmem:[#allocation8 + $0x768] sm:$0xff]
    %v3433 = vld [vmem:[#allocation8 + $0x770] sm:$0xf]
    %v3434 = vld [vmem:[#allocation8 + $0x774] sm:$0xff]
    %v3435 = vld [vmem:[#allocation8 + $0x77c] sm:$0xf]
    %v3436 = vld [vmem:[#allocation8 + $0x780] sm:$0xff]
    %v3437 = vld [vmem:[#allocation8 + $0x788] sm:$0xf]
    %v3438 = vld [vmem:[#allocation8 + $0x78c] sm:$0xff]
    %v3439 = vld [vmem:[#allocation8 + $0x794] sm:$0xf]
    %v3440 = vld [vmem:[#allocation8 + $0x798] sm:$0xff]
    %v3441 = vld [vmem:[#allocation8 + $0x7a0] sm:$0xf]
    %v3442 = vld [vmem:[#allocation8 + $0x7a4] sm:$0xff]
    %v3443 = vld [vmem:[#allocation8 + $0x7ac] sm:$0xf]
    %v3444 = vld [vmem:[#allocation8 + $0x7b0] sm:$0xff]
    %v3445 = vld [vmem:[#allocation8 + $0x7b8] sm:$0xf]
    %v3446 = vld [vmem:[#allocation8 + $0x7bc] sm:$0xff]
    %v3447 = vld [vmem:[#allocation8 + $0x7c4] sm:$0xf]
    %v3448 = vld [vmem:[#allocation8 + $0x7c8] sm:$0xff]
    %v3449 = vld [vmem:[#allocation8 + $0x7d0] sm:$0xf]
    %v3450 = vld [vmem:[#allocation8 + $0x7d4] sm:$0xff]
    %v3451 = vld [vmem:[#allocation8 + $0x7dc] sm:$0xf]
    %v3452 = vld [vmem:[#allocation8 + $0x7e0] sm:$0xff]
    %v3453 = vld [vmem:[#allocation8 + $0x7e8] sm:$0xf]
    %v3454 = vld [vmem:[#allocation8 + $0x7ec] sm:$0xff]
    %v3455 = vld [vmem:[#allocation8 + $0x7f4] sm:$0xf]
    %v3456 = vld [vmem:[#allocation8 + $0x7f8] sm:$0xff]
    %v3457 = vld [vmem:[#allocation8 + $0x800] sm:$0xf]
    %v3458 = vld [vmem:[#allocation8 + $0x804] sm:$0xff]
    %v3459 = vld [vmem:[#allocation8 + $0x80c] sm:$0xf]
    %v3460 = vld [vmem:[#allocation8 + $0x810] sm:$0xff]
    %v3461 = vld [vmem:[#allocation8 + $0x818] sm:$0xf]
    %v3462 = vld [vmem:[#allocation8 + $0x81c] sm:$0xff]
    %v3463 = vld [vmem:[#allocation8 + $0x824] sm:$0xf]
    %v3464 = vld [vmem:[#allocation8 + $0x828] sm:$0xff]
    %v3465 = vld [vmem:[#allocation8 + $0x830] sm:$0xf]
    %v3466 = vld [vmem:[#allocation8 + $0x834] sm:$0xff]
    %v3467 = vld [vmem:[#allocation8 + $0x83c] sm:$0xf]
    %v3468 = vld [vmem:[#allocation8 + $0x840] sm:$0xff]
    %v3469 = vld [vmem:[#allocation8 + $0x848] sm:$0xf]
    %v3470 = vld [vmem:[#allocation8 + $0x84c] sm:$0xff]
    %v3471 = vld [vmem:[#allocation8 + $0x854] sm:$0xf]
    %v3472 = vld [vmem:[#allocation8 + $0x858] sm:$0xff]
    %v3473 = vld [vmem:[#allocation8 + $0x860] sm:$0xf]
    %v3474 = vld [vmem:[#allocation8 + $0x864] sm:$0xff]
    %v3475 = vld [vmem:[#allocation8 + $0x86c] sm:$0xf]
    %v3476 = vld [vmem:[#allocation8 + $0x870] sm:$0xff]
    %v3477 = vld [vmem:[#allocation8 + $0x878] sm:$0xf]
    %v3478 = vld [vmem:[#allocation8 + $0x87c] sm:$0xff]
    %v3479 = vld [vmem:[#allocation8 + $0x884] sm:$0xf]
    %v3480 = vld [vmem:[#allocation8 + $0x888] sm:$0xff]
    %v3481 = vld [vmem:[#allocation8 + $0x890] sm:$0xf]
    %v3482 = vld [vmem:[#allocation8 + $0x894] sm:$0xff]
    %v3483 = vld [vmem:[#allocation8 + $0x89c] sm:$0xf]
    %v3484 = vld [vmem:[#allocation8 + $0x8a0] sm:$0xff]
    %v3485 = vld [vmem:[#allocation8 + $0x8a8] sm:$0xf]
    %v3486 = vld [vmem:[#allocation8 + $0x8ac] sm:$0xff]
    %v3487 = vld [vmem:[#allocation8 + $0x8b4] sm:$0xf]
    %v3488 = vld [vmem:[#allocation8 + $0x8b8] sm:$0xff]
    %v3489 = vld [vmem:[#allocation8 + $0x8c0] sm:$0xf]
    %v3490 = vld [vmem:[#allocation8 + $0x8c4] sm:$0xff]
    %v3491 = vld [vmem:[#allocation8 + $0x8cc] sm:$0xf]
    %v3492 = vld [vmem:[#allocation8 + $0x8d0] sm:$0xff]
    %v3493 = vld [vmem:[#allocation8 + $0x8d8] sm:$0xf]
    %v3494 = vld [vmem:[#allocation8 + $0x8dc] sm:$0xff]
    %v3495 = vld [vmem:[#allocation8 + $0x8e4] sm:$0xf]
    %v3496 = vld [vmem:[#allocation8 + $0x8e8] sm:$0xff]
    %v3497 = vld [vmem:[#allocation8 + $0x8f0] sm:$0xf]
    %v3498 = vld [vmem:[#allocation8 + $0x8f4] sm:$0xff]
    %v3499 = vld [vmem:[#allocation8 + $0x8fc] sm:$0xf]
    %v3501 = vlaneseq
    %v3502 = vshrl.u32 %v3501, 7
    %v3503 = vsub.s32 0, %v3502
    %v3504 = vrot.slane %v3371, %v3503
    %v3505 = vlaneseq
    %v3506 = vshrl.u32 %v3505, 7
    %v3507 = vsub.s32 1, %v3506
    %v3508 = vrot.slane %v3371, %v3507
    %v3509 = vlaneseq
    %v3510 = vshrl.u32 %v3509, 7
    %v3511 = vsub.s32 2, %v3510
    %v3512 = vrot.slane %v3371, %v3511
    %v3513 = vlaneseq
    %v3514 = vshrl.u32 %v3513, 7
    %v3515 = vsub.s32 3, %v3514
    %v3516 = vrot.slane %v3371, %v3515
    %v3617 = vunpack.c.l.b16 %v3275
    %v3618 = vunpack.c.h.b16 %v3275
    %v3619 = vunpack.c.l.b16 %v3276
    %v3620 = vunpack.c.h.b16 %v3276
    %v3621 = vunpack.c.l.b16 %v3277
    %v3622 = vunpack.c.h.b16 %v3277
    %v3623 = vunpack.c.l.b16 %v3278
    %v3624 = vunpack.c.h.b16 %v3278
    %v3625 = vunpack.c.l.b16 %v3279
    %v3626 = vunpack.c.h.b16 %v3279
    %v3627 = vunpack.c.l.b16 %v3280
    %v3628 = vunpack.c.h.b16 %v3280
    %v3629 = vunpack.c.l.b16 %v3281
    %v3630 = vunpack.c.h.b16 %v3281
    %v3631 = vunpack.c.l.b16 %v3282
    %v3632 = vunpack.c.h.b16 %v3282
    %v3633 = vunpack.c.l.b16 %v3283
    %v3634 = vunpack.c.h.b16 %v3283
    %v3635 = vunpack.c.l.b16 %v3284
    %v3636 = vunpack.c.h.b16 %v3284
    %v3637 = vunpack.c.l.b16 %v3285
    %v3638 = vunpack.c.h.b16 %v3285
    %v3639 = vunpack.c.l.b16 %v3286
    %v3640 = vunpack.c.h.b16 %v3286
    %v3641 = vunpack.c.l.b16 %v3287
    %v3642 = vunpack.c.h.b16 %v3287
    %v3643 = vunpack.c.l.b16 %v3288
    %v3644 = vunpack.c.h.b16 %v3288
    %v3645 = vunpack.c.l.b16 %v3289
    %v3646 = vunpack.c.h.b16 %v3289
    %v3647 = vunpack.c.l.b16 %v3290
    %v3648 = vunpack.c.h.b16 %v3290
    %v3649 = vunpack.c.l.b16 %v3291
    %v3650 = vunpack.c.h.b16 %v3291
    %v3651 = vunpack.c.l.b16 %v3292
    %v3652 = vunpack.c.h.b16 %v3292
    %v3653 = vunpack.c.l.b16 %v3293
    %v3654 = vunpack.c.h.b16 %v3293
    %v3655 = vunpack.c.l.b16 %v3294
    %v3656 = vunpack.c.h.b16 %v3294
    %v3657 = vunpack.c.l.b16 %v3295
    %v3658 = vunpack.c.h.b16 %v3295
    %v3659 = vunpack.c.l.b16 %v3296
    %v3660 = vunpack.c.h.b16 %v3296
    %v3661 = vunpack.c.l.b16 %v3297
    %v3662 = vunpack.c.h.b16 %v3297
    %v3663 = vunpack.c.l.b16 %v3298
    %v3664 = vunpack.c.h.b16 %v3298
    %v3665 = vunpack.c.l.b16 %v3299
    %v3666 = vunpack.c.h.b16 %v3299
    %v3667 = vunpack.c.l.b16 %v3300
    %v3668 = vunpack.c.h.b16 %v3300
    %v3669 = vunpack.c.l.b16 %v3301
    %v3670 = vunpack.c.h.b16 %v3301
    %v3671 = vunpack.c.l.b16 %v3302
    %v3672 = vunpack.c.h.b16 %v3302
    %v3673 = vunpack.c.l.b16 %v3303
    %v3674 = vunpack.c.h.b16 %v3303
    %v3675 = vunpack.c.l.b16 %v3304
    %v3676 = vunpack.c.h.b16 %v3304
    %v3677 = vunpack.c.l.b16 %v3305
    %v3678 = vunpack.c.h.b16 %v3305
    %v3679 = vunpack.c.l.b16 %v3306
    %v3680 = vunpack.c.h.b16 %v3306
    %v3681 = vunpack.c.l.b16 %v3307
    %v3682 = vunpack.c.h.b16 %v3307
    %v3683 = vunpack.c.l.b16 %v3308
    %v3684 = vunpack.c.h.b16 %v3308
    %v3685 = vunpack.c.l.b16 %v3309
    %v3686 = vunpack.c.h.b16 %v3309
    %v3687 = vunpack.c.l.b16 %v3310
    %v3688 = vunpack.c.h.b16 %v3310
    %v3689 = vunpack.c.l.b16 %v3311
    %v3690 = vunpack.c.h.b16 %v3311
    %v3691 = vunpack.c.l.b16 %v3312
    %v3692 = vunpack.c.h.b16 %v3312
    %v3693 = vunpack.c.l.b16 %v3313
    %v3694 = vunpack.c.h.b16 %v3313
    %v3695 = vunpack.c.l.b16 %v3314
    %v3696 = vunpack.c.h.b16 %v3314
    %v3697 = vunpack.c.l.b16 %v3315
    %v3698 = vunpack.c.h.b16 %v3315
    %v3699 = vunpack.c.l.b16 %v3316
    %v3700 = vunpack.c.h.b16 %v3316
    %v3701 = vunpack.c.l.b16 %v3317
    %v3702 = vunpack.c.h.b16 %v3317
    %v3703 = vunpack.c.l.b16 %v3318
    %v3704 = vunpack.c.h.b16 %v3318
    %v3705 = vunpack.c.l.b16 %v3319
    %v3706 = vunpack.c.h.b16 %v3319
    %v3707 = vunpack.c.l.b16 %v3320
    %v3708 = vunpack.c.h.b16 %v3320
    %v3709 = vunpack.c.l.b16 %v3321
    %v3710 = vunpack.c.h.b16 %v3321
    %v3711 = vunpack.c.l.b16 %v3322
    %v3712 = vunpack.c.h.b16 %v3322
    %v3713 = vunpack.c.l.b16 %v3323
    %v3714 = vunpack.c.h.b16 %v3323
    %v3715 = vunpack.c.l.b16 %v3324
    %v3716 = vunpack.c.h.b16 %v3324
    %v3717 = vunpack.c.l.b16 %v3325
    %v3718 = vunpack.c.h.b16 %v3325
    %v3719 = vunpack.c.l.b16 %v3326
    %v3720 = vunpack.c.h.b16 %v3326
    %v3721 = vunpack.c.l.b16 %v3327
    %v3722 = vunpack.c.h.b16 %v3327
    %v3723 = vunpack.c.l.b16 %v3328
    %v3724 = vunpack.c.h.b16 %v3328
    %v3725 = vunpack.c.l.b16 %v3329
    %v3726 = vunpack.c.h.b16 %v3329
    %v3727 = vunpack.c.l.b16 %v3330
    %v3728 = vunpack.c.h.b16 %v3330
    %v3729 = vunpack.c.l.b16 %v3331
    %v3730 = vunpack.c.h.b16 %v3331
    %v3731 = vunpack.c.l.b16 %v3332
    %v3732 = vunpack.c.h.b16 %v3332
    %v3733 = vunpack.c.l.b16 %v3333
    %v3734 = vunpack.c.h.b16 %v3333
    %v3735 = vunpack.c.l.b16 %v3334
    %v3736 = vunpack.c.h.b16 %v3334
    %v3737 = vunpack.c.l.b16 %v3335
    %v3738 = vunpack.c.h.b16 %v3335
    %v3739 = vunpack.c.l.b16 %v3336
    %v3740 = vunpack.c.h.b16 %v3336
    %v3741 = vunpack.c.l.b16 %v3337
    %v3742 = vunpack.c.h.b16 %v3337
    %v3743 = vunpack.c.l.b16 %v3338
    %v3744 = vunpack.c.h.b16 %v3338
    %v3745 = vunpack.c.l.b16 %v3339
    %v3746 = vunpack.c.h.b16 %v3339
    %v3747 = vunpack.c.l.b16 %v3340
    %v3748 = vunpack.c.h.b16 %v3340
    %v3749 = vunpack.c.l.b16 %v3341
    %v3750 = vunpack.c.h.b16 %v3341
    %v3751 = vunpack.c.l.b16 %v3342
    %v3752 = vunpack.c.h.b16 %v3342
    %v3753 = vunpack.c.l.b16 %v3343
    %v3754 = vunpack.c.h.b16 %v3343
    %v3755 = vunpack.c.l.b16 %v3344
    %v3756 = vunpack.c.h.b16 %v3344
    %v3757 = vunpack.c.l.b16 %v3345
    %v3758 = vunpack.c.h.b16 %v3345
    %v3759 = vunpack.c.l.b16 %v3346
    %v3760 = vunpack.c.h.b16 %v3346
    %v3761 = vunpack.c.l.b16 %v3347
    %v3762 = vunpack.c.h.b16 %v3347
    %v3763 = vunpack.c.l.b16 %v3348
    %v3764 = vunpack.c.h.b16 %v3348
    %v3765 = vunpack.c.l.b16 %v3349
    %v3766 = vunpack.c.h.b16 %v3349
    %v3767 = vunpack.c.l.b16 %v3350
    %v3768 = vunpack.c.h.b16 %v3350
    %v3769 = vunpack.c.l.b16 %v3351
    %v3770 = vunpack.c.h.b16 %v3351
    %v3771 = vunpack.c.l.b16 %v3352
    %v3772 = vunpack.c.h.b16 %v3352
    %v3773 = vunpack.c.l.b16 %v3353
    %v3774 = vunpack.c.h.b16 %v3353
    %v3775 = vunpack.c.l.b16 %v3354
    %v3776 = vunpack.c.h.b16 %v3354
    %v3777 = vunpack.c.l.b16 %v3355
    %v3778 = vunpack.c.h.b16 %v3355
    %v3779 = vunpack.c.l.b16 %v3356
    %v3780 = vunpack.c.h.b16 %v3356
    %v3781 = vunpack.c.l.b16 %v3357
    %v3782 = vunpack.c.h.b16 %v3357
    %v3783 = vunpack.c.l.b16 %v3358
    %v3784 = vunpack.c.h.b16 %v3358
    %v3785 = vunpack.c.l.b16 %v3359
    %v3786 = vunpack.c.h.b16 %v3359
    %v3787 = vunpack.c.l.b16 %v3360
    %v3788 = vunpack.c.h.b16 %v3360
    %v3789 = vunpack.c.l.b16 %v3361
    %v3790 = vunpack.c.h.b16 %v3361
    %v3791 = vunpack.c.l.b16 %v3362
    %v3792 = vunpack.c.h.b16 %v3362
    %v3793 = vunpack.c.l.b16 %v3363
    %v3794 = vunpack.c.h.b16 %v3363
    %v3795 = vunpack.c.l.b16 %v3364
    %v3796 = vunpack.c.h.b16 %v3364
    %v3797 = vunpack.c.l.b16 %v3365
    %v3798 = vunpack.c.h.b16 %v3365
    %v3799 = vunpack.c.l.b16 %v3366
    %v3800 = vunpack.c.h.b16 %v3366
    %v3801 = vunpack.c.l.b16 %v3367
    %v3802 = vunpack.c.h.b16 %v3367
    %v3803 = vunpack.c.l.b16 %v3368
    %v3804 = vunpack.c.h.b16 %v3368
    %v3805 = vunpack.c.l.b16 %v3369
    %v3806 = vunpack.c.h.b16 %v3369
    %v3807 = vunpack.c.l.b16 %v3370
    %v3808 = vunpack.c.h.b16 %v3370
    %v3809 = vpack.c.b16 %v3621, %v3617
    %v3810 = vpack.c.b16 %v3622, %v3618
    %v3811 = vpack.c.b16 %v3623, %v3619
    %v3812 = vpack.c.b16 %v3624, %v3620
    %v3813 = vpack.c.b16 %v3629, %v3625
    %v3814 = vpack.c.b16 %v3630, %v3626
    %v3815 = vpack.c.b16 %v3631, %v3627
    %v3816 = vpack.c.b16 %v3632, %v3628
    %v3817 = vpack.c.b16 %v3637, %v3633
    %v3818 = vpack.c.b16 %v3638, %v3634
    %v3819 = vpack.c.b16 %v3639, %v3635
    %v3820 = vpack.c.b16 %v3640, %v3636
    %v3821 = vpack.c.b16 %v3645, %v3641
    %v3822 = vpack.c.b16 %v3646, %v3642
    %v3823 = vpack.c.b16 %v3647, %v3643
    %v3824 = vpack.c.b16 %v3648, %v3644
    %v3825 = vpack.c.b16 %v3653, %v3649
    %v3826 = vpack.c.b16 %v3654, %v3650
    %v3827 = vpack.c.b16 %v3655, %v3651
    %v3828 = vpack.c.b16 %v3656, %v3652
    %v3829 = vpack.c.b16 %v3661, %v3657
    %v3830 = vpack.c.b16 %v3662, %v3658
    %v3831 = vpack.c.b16 %v3663, %v3659
    %v3832 = vpack.c.b16 %v3664, %v3660
    %v3833 = vpack.c.b16 %v3669, %v3665
    %v3834 = vpack.c.b16 %v3670, %v3666
    %v3835 = vpack.c.b16 %v3671, %v3667
    %v3836 = vpack.c.b16 %v3672, %v3668
    %v3837 = vpack.c.b16 %v3677, %v3673
    %v3838 = vpack.c.b16 %v3678, %v3674
    %v3839 = vpack.c.b16 %v3679, %v3675
    %v3840 = vpack.c.b16 %v3680, %v3676
    %v3841 = vpack.c.b16 %v3685, %v3681
    %v3842 = vpack.c.b16 %v3686, %v3682
    %v3843 = vpack.c.b16 %v3687, %v3683
    %v3844 = vpack.c.b16 %v3688, %v3684
    %v3845 = vpack.c.b16 %v3693, %v3689
    %v3846 = vpack.c.b16 %v3694, %v3690
    %v3847 = vpack.c.b16 %v3695, %v3691
    %v3848 = vpack.c.b16 %v3696, %v3692
    %v3849 = vpack.c.b16 %v3701, %v3697
    %v3850 = vpack.c.b16 %v3702, %v3698
    %v3851 = vpack.c.b16 %v3703, %v3699
    %v3852 = vpack.c.b16 %v3704, %v3700
    %v3853 = vpack.c.b16 %v3709, %v3705
    %v3854 = vpack.c.b16 %v3710, %v3706
    %v3855 = vpack.c.b16 %v3711, %v3707
    %v3856 = vpack.c.b16 %v3712, %v3708
    %v3857 = vpack.c.b16 %v3717, %v3713
    %v3858 = vpack.c.b16 %v3718, %v3714
    %v3859 = vpack.c.b16 %v3719, %v3715
    %v3860 = vpack.c.b16 %v3720, %v3716
    %v3861 = vpack.c.b16 %v3725, %v3721
    %v3862 = vpack.c.b16 %v3726, %v3722
    %v3863 = vpack.c.b16 %v3727, %v3723
    %v3864 = vpack.c.b16 %v3728, %v3724
    %v3865 = vpack.c.b16 %v3733, %v3729
    %v3866 = vpack.c.b16 %v3734, %v3730
    %v3867 = vpack.c.b16 %v3735, %v3731
    %v3868 = vpack.c.b16 %v3736, %v3732
    %v3869 = vpack.c.b16 %v3741, %v3737
    %v3870 = vpack.c.b16 %v3742, %v3738
    %v3871 = vpack.c.b16 %v3743, %v3739
    %v3872 = vpack.c.b16 %v3744, %v3740
    %v3873 = vpack.c.b16 %v3749, %v3745
    %v3874 = vpack.c.b16 %v3750, %v3746
    %v3875 = vpack.c.b16 %v3751, %v3747
    %v3876 = vpack.c.b16 %v3752, %v3748
    %v3877 = vpack.c.b16 %v3757, %v3753
    %v3878 = vpack.c.b16 %v3758, %v3754
    %v3879 = vpack.c.b16 %v3759, %v3755
    %v3880 = vpack.c.b16 %v3760, %v3756
    %v3881 = vpack.c.b16 %v3765, %v3761
    %v3882 = vpack.c.b16 %v3766, %v3762
    %v3883 = vpack.c.b16 %v3767, %v3763
    %v3884 = vpack.c.b16 %v3768, %v3764
    %v3885 = vpack.c.b16 %v3773, %v3769
    %v3886 = vpack.c.b16 %v3774, %v3770
    %v3887 = vpack.c.b16 %v3775, %v3771
    %v3888 = vpack.c.b16 %v3776, %v3772
    %v3889 = vpack.c.b16 %v3781, %v3777
    %v3890 = vpack.c.b16 %v3782, %v3778
    %v3891 = vpack.c.b16 %v3783, %v3779
    %v3892 = vpack.c.b16 %v3784, %v3780
    %v3893 = vpack.c.b16 %v3789, %v3785
    %v3894 = vpack.c.b16 %v3790, %v3786
    %v3895 = vpack.c.b16 %v3791, %v3787
    %v3896 = vpack.c.b16 %v3792, %v3788
    %v3897 = vpack.c.b16 %v3797, %v3793
    %v3898 = vpack.c.b16 %v3798, %v3794
    %v3899 = vpack.c.b16 %v3799, %v3795
    %v3900 = vpack.c.b16 %v3800, %v3796
    %v3901 = vpack.c.b16 %v3805, %v3801
    %v3902 = vpack.c.b16 %v3806, %v3802
    %v3903 = vpack.c.b16 %v3807, %v3803
    %v3904 = vpack.c.b16 %v3808, %v3804
    %4001 = vmatprep.subr.bf16.mxu0 %v3810
    %4002 = vmatpush1.bf16.msra.mxu0 %v3809
    %4003 = vmatprep.subr.bf16.mxu0 %v3814
    %4004 = vmatpush1.bf16.msra.mxu0 %v3813
    %4005 = vmatprep.subr.bf16.mxu0 %v3818
    %4006 = vmatpush1.bf16.msra.mxu0 %v3817
    %4007 = vmatprep.subr.bf16.mxu0 %v3822
    %4008 = vmatpush1.bf16.msra.mxu0 %v3821
    %4009 = vmatprep.subr.bf16.mxu0 %v3826
    %4010 = vmatpush1.bf16.msra.mxu0 %v3825
    %4011 = vmatprep.subr.bf16.mxu0 %v3830
    %4012 = vmatpush1.bf16.msra.mxu0 %v3829
    %4013 = vmatprep.subr.bf16.mxu0 %v3834
    %4014 = vmatpush1.bf16.msra.mxu0 %v3833
    %4015 = vmatprep.subr.bf16.mxu0 %v3838
    %4016 = vmatpush1.bf16.msra.mxu0 %v3837
    %4017 = vmatprep.subr.bf16.mxu0 %v3842
    %4018 = vmatpush1.bf16.msra.mxu0 %v3841
    %4019 = vmatprep.subr.bf16.mxu0 %v3846
    %4020 = vmatpush1.bf16.msra.mxu0 %v3845
    %4021 = vmatprep.subr.bf16.mxu0 %v3850
    %4022 = vmatpush1.bf16.msra.mxu0 %v3849
    %4023 = vmatprep.subr.bf16.mxu0 %v3854
    %4024 = vmatpush1.bf16.msra.mxu0 %v3853
    %4025 = vmatprep.subr.bf16.mxu0 %v3858
    %4026 = vmatpush1.bf16.msra.mxu0 %v3857
    %4027 = vmatprep.subr.bf16.mxu0 %v3862
    %4028 = vmatpush1.bf16.msra.mxu0 %v3861
    %4029 = vmatprep.subr.bf16.mxu0 %v3866
    %4030 = vmatpush1.bf16.msra.mxu0 %v3865
    %4031 = vmatprep.subr.bf16.mxu0 %v3870
    %4032 = vmatpush1.bf16.msra.mxu0 %v3869
    %4033 = vmatprep.mubr.bf16.mxu0 %v93
    %4034 = vmatmul.mubr.bf16.gmra.mrb[0].mxu0 %v92
    %v4035 = vpop.f32.mrb[0].mxu0
    %v4036 = vadd.f32 %v3504, %v4035
    %v4037 = vpop.f32.mrb[0].mxu0
    %v4038 = vadd.f32 %v3508, %v4037
    %v4039 = vpop.f32.mrb[0].mxu0
    %v4040 = vadd.f32 %v3504, %v4039
    %v4041 = vpop.f32.mrb[0].mxu0
    %v4042 = vadd.f32 %v3508, %v4041
    %4043 = vdwg.mxu0
    %4044 = vmatprep.subr.bf16.mxu0 %v3874
    %4045 = vmatpush1.bf16.msra.mxu0 %v3873
    %4046 = vmatprep.subr.bf16.mxu0 %v3878
    %4047 = vmatpush1.bf16.msra.mxu0 %v3877
    %4048 = vmatprep.subr.bf16.mxu0 %v3882
    %4049 = vmatpush1.bf16.msra.mxu0 %v3881
    %4050 = vmatprep.subr.bf16.mxu0 %v3886
    %4051 = vmatpush1.bf16.msra.mxu0 %v3885
    %4052 = vmatprep.subr.bf16.mxu0 %v3890
    %4053 = vmatpush1.bf16.msra.mxu0 %v3889
    %4054 = vmatprep.subr.bf16.mxu0 %v3894
    %4055 = vmatpush1.bf16.msra.mxu0 %v3893
    %4056 = vmatprep.subr.bf16.mxu0 %v3898
    %4057 = vmatpush1.bf16.msra.mxu0 %v3897
    %4058 = vmatprep.subr.bf16.mxu0 %v3902
    %4059 = vmatpush1.bf16.msra.mxu0 %v3901
    %4060 = vmatprep.subr.bf16.mxu0 0
    %4061 = vmatpush1.bf16.msra.mxu0 0
    %4062 = vmatprep.subr.bf16.mxu0 0
    %4063 = vmatpush1.bf16.msra.mxu0 0
    %4064 = vmatprep.subr.bf16.mxu0 0
    %4065 = vmatpush1.bf16.msra.mxu0 0
    %4066 = vmatprep.subr.bf16.mxu0 0
    %4067 = vmatpush1.bf16.msra.mxu0 0
    %4068 = vmatprep.subr.bf16.mxu0 0
    %4069 = vmatpush1.bf16.msra.mxu0 0
    %4070 = vmatprep.subr.bf16.mxu0 0
    %4071 = vmatpush1.bf16.msra.mxu0 0
    %4072 = vmatprep.subr.bf16.mxu0 0
    %4073 = vmatpush1.bf16.msra.mxu0 0
    %4074 = vmatprep.subr.bf16.mxu0 0
    %4075 = vmatpush1.bf16.msra.mxu0 0
    %4076 = vmatprep.mubr.bf16.mxu0 0
    %4077 = vmatmul.mubr.bf16.gmra.mrb[0].mxu0 %v94
    %v4078 = vpop.f32.mrb[0].mxu0
    %v4079 = vadd.f32 %v4036, %v4078
    %v4080 = vpop.f32.mrb[0].mxu0
    %v4081 = vadd.f32 %v4038, %v4080
    %v4082 = vpop.f32.mrb[0].mxu0
    %v4083 = vadd.f32 %v4040, %v4082
    %v4084 = vpop.f32.mrb[0].mxu0
    %v4085 = vadd.f32 %v4042, %v4084
    %4086 = vdwg.mxu0
    %4087 = vmatprep.subr.bf16.mxu0 %v3812
    %4088 = vmatpush1.bf16.msra.mxu0 %v3811
    %4089 = vmatprep.subr.bf16.mxu0 %v3816
    %4090 = vmatpush1.bf16.msra.mxu0 %v3815
    %4091 = vmatprep.subr.bf16.mxu0 %v3820
    %4092 = vmatpush1.bf16.msra.mxu0 %v3819
    %4093 = vmatprep.subr.bf16.mxu0 %v3824
    %4094 = vmatpush1.bf16.msra.mxu0 %v3823
    %4095 = vmatprep.subr.bf16.mxu0 %v3828
    %4096 = vmatpush1.bf16.msra.mxu0 %v3827
    %4097 = vmatprep.subr.bf16.mxu0 %v3832
    %4098 = vmatpush1.bf16.msra.mxu0 %v3831
    %4099 = vmatprep.subr.bf16.mxu0 %v3836
    %4100 = vmatpush1.bf16.msra.mxu0 %v3835
    %4101 = vmatprep.subr.bf16.mxu0 %v3840
    %4102 = vmatpush1.bf16.msra.mxu0 %v3839
    %4103 = vmatprep.subr.bf16.mxu0 %v3844
    %4104 = vmatpush1.bf16.msra.mxu0 %v3843
    %4105 = vmatprep.subr.bf16.mxu0 %v3848
    %4106 = vmatpush1.bf16.msra.mxu0 %v3847
    %4107 = vmatprep.subr.bf16.mxu0 %v3852
    %4108 = vmatpush1.bf16.msra.mxu0 %v3851
    %4109 = vmatprep.subr.bf16.mxu0 %v3856
    %4110 = vmatpush1.bf16.msra.mxu0 %v3855
    %4111 = vmatprep.subr.bf16.mxu0 %v3860
    %4112 = vmatpush1.bf16.msra.mxu0 %v3859
    %4113 = vmatprep.subr.bf16.mxu0 %v3864
    %4114 = vmatpush1.bf16.msra.mxu0 %v3863
    %4115 = vmatprep.subr.bf16.mxu0 %v3868
    %4116 = vmatpush1.bf16.msra.mxu0 %v3867
    %4117 = vmatprep.subr.bf16.mxu0 %v3872
    %4118 = vmatpush1.bf16.msra.mxu0 %v3871
    %4119 = vmatprep.mubr.bf16.mxu0 %v93
    %4120 = vmatmul.mubr.bf16.gmra.mrb[0].mxu0 %v92
    %v4121 = vpop.f32.mrb[0].mxu0
    %v4122 = vadd.f32 %v3512, %v4121
    %v4123 = vpop.f32.mrb[0].mxu0
    %v4124 = vadd.f32 %v3516, %v4123
    %v4125 = vpop.f32.mrb[0].mxu0
    %v4126 = vadd.f32 %v3512, %v4125
    %v4127 = vpop.f32.mrb[0].mxu0
    %v4128 = vadd.f32 %v3516, %v4127
    %4129 = vdwg.mxu0
    %4130 = vmatprep.subr.bf16.mxu0 %v3876
    %4131 = vmatpush1.bf16.msra.mxu0 %v3875
    %4132 = vmatprep.subr.bf16.mxu0 %v3880
    %4133 = vmatpush1.bf16.msra.mxu0 %v3879
    %4134 = vmatprep.subr.bf16.mxu0 %v3884
    %4135 = vmatpush1.bf16.msra.mxu0 %v3883
    %4136 = vmatprep.subr.bf16.mxu0 %v3888
    %4137 = vmatpush1.bf16.msra.mxu0 %v3887
    %4138 = vmatprep.subr.bf16.mxu0 %v3892
    %4139 = vmatpush1.bf16.msra.mxu0 %v3891
    %4140 = vmatprep.subr.bf16.mxu0 %v3896
    %4141 = vmatpush1.bf16.msra.mxu0 %v3895
    %4142 = vmatprep.subr.bf16.mxu0 %v3900
    %4143 = vmatpush1.bf16.msra.mxu0 %v3899
    %4144 = vmatprep.subr.bf16.mxu0 %v3904
    %4145 = vmatpush1.bf16.msra.mxu0 %v3903
    %4146 = vmatprep.subr.bf16.mxu0 0
    %4147 = vmatpush1.bf16.msra.mxu0 0
    %4148 = vmatprep.subr.bf16.mxu0 0
    %4149 = vmatpush1.bf16.msra.mxu0 0
    %4150 = vmatprep.subr.bf16.mxu0 0
    %4151 = vmatpush1.bf16.msra.mxu0 0
    %4152 = vmatprep.subr.bf16.mxu0 0
    %4153 = vmatpush1.bf16.msra.mxu0 0
    %4154 = vmatprep.subr.bf16.mxu0 0
    %4155 = vmatpush1.bf16.msra.mxu0 0
    %4156 = vmatprep.subr.bf16.mxu0 0
    %4157 = vmatpush1.bf16.msra.mxu0 0
    %4158 = vmatprep.subr.bf16.mxu0 0
    %4159 = vmatpush1.bf16.msra.mxu0 0
    %4160 = vmatprep.subr.bf16.mxu0 0
    %4161 = vmatpush1.bf16.msra.mxu0 0
    %4162 = vmatprep.mubr.bf16.mxu0 0
    %4163 = vmatmul.mubr.bf16.gmra.mrb[0].mxu0 %v94
    %v4164 = vpop.f32.mrb[0].mxu0
    %v4165 = vadd.f32 %v4122, %v4164
    %v4166 = vpop.f32.mrb[0].mxu0
    %v4167 = vadd.f32 %v4124, %v4166
    %v4168 = vpop.f32.mrb[0].mxu0
    %v4169 = vadd.f32 %v4126, %v4168
    %v4170 = vpop.f32.mrb[0].mxu0
    %v4171 = vadd.f32 %v4128, %v4170
    %4172 = vdwg.mxu0
    %v4173 = vmax.f32 %v4079, 0.0
    %v4174 = vmax.f32 %v4081, 0.0
    %v4175 = vmax.f32 %v4165, 0.0
    %v4176 = vmax.f32 %v4167, 0.0
    %v4177 = vmax.f32 %v4083, 0.0
    %v4178 = vmax.f32 %v4085, 0.0
    %v4179 = vmax.f32 %v4169, 0.0
    %v4180 = vmax.f32 %v4171, 0.0
    %v4181 = vpack.c.bf16 %v4177, %v4173
    %v4182 = vpack.c.bf16 %v4178, %v4174
    %v4183 = vpack.c.bf16 %v4179, %v4175
    %v4184 = vpack.c.bf16 %v4180, %v4176
    %v4313 = vunpack.c.l.b16 %v3372
    %v4314 = vunpack.c.h.b16 %v3372
    %v4315 = vunpack.c.l.b16 %v3373
    %v4316 = vunpack.c.l.b16 %v3374
    %v4317 = vunpack.c.h.b16 %v3374
    %v4318 = vunpack.c.l.b16 %v3375
    %v4319 = vunpack.c.l.b16 %v3376
    %v4320 = vunpack.c.h.b16 %v3376
    %v4321 = vunpack.c.l.b16 %v3377
    %v4322 = vunpack.c.l.b16 %v3378
    %v4323 = vunpack.c.h.b16 %v3378
    %v4324 = vunpack.c.l.b16 %v3379
    %v4325 = vunpack.c.l.b16 %v3380
    %v4326 = vunpack.c.h.b16 %v3380
    %v4327 = vunpack.c.l.b16 %v3381
    %v4328 = vunpack.c.l.b16 %v3382
    %v4329 = vunpack.c.h.b16 %v3382
    %v4330 = vunpack.c.l.b16 %v3383
    %v4331 = vunpack.c.l.b16 %v3384
    %v4332 = vunpack.c.h.b16 %v3384
    %v4333 = vunpack.c.l.b16 %v3385
    %v4334 = vunpack.c.l.b16 %v3386
    %v4335 = vunpack.c.h.b16 %v3386
    %v4336 = vunpack.c.l.b16 %v3387
    %v4337 = vunpack.c.l.b16 %v3388
    %v4338 = vunpack.c.h.b16 %v3388
    %v4339 = vunpack.c.l.b16 %v3389
    %v4340 = vunpack.c.l.b16 %v3390
    %v4341 = vunpack.c.h.b16 %v3390
    %v4342 = vunpack.c.l.b16 %v3391
    %v4343 = vunpack.c.l.b16 %v3392
    %v4344 = vunpack.c.h.b16 %v3392
    %v4345 = vunpack.c.l.b16 %v3393
    %v4346 = vunpack.c.l.b16 %v3394
    %v4347 = vunpack.c.h.b16 %v3394
    %v4348 = vunpack.c.l.b16 %v3395
    %v4349 = vunpack.c.l.b16 %v3396
    %v4350 = vunpack.c.h.b16 %v3396
    %v4351 = vunpack.c.l.b16 %v3397
    %v4352 = vunpack.c.l.b16 %v3398
    %v4353 = vunpack.c.h.b16 %v3398
    %v4354 = vunpack.c.l.b16 %v3399
    %v4355 = vunpack.c.l.b16 %v3400
    %v4356 = vunpack.c.h.b16 %v3400
    %v4357 = vunpack.c.l.b16 %v3401
    %v4358 = vunpack.c.l.b16 %v3402
    %v4359 = vunpack.c.h.b16 %v3402
    %v4360 = vunpack.c.l.b16 %v3403
    %v4361 = vunpack.c.l.b16 %v3404
    %v4362 = vunpack.c.h.b16 %v3404
    %v4363 = vunpack.c.l.b16 %v3405
    %v4364 = vunpack.c.l.b16 %v3406
    %v4365 = vunpack.c.h.b16 %v3406
    %v4366 = vunpack.c.l.b16 %v3407
    %v4367 = vunpack.c.l.b16 %v3408
    %v4368 = vunpack.c.h.b16 %v3408
    %v4369 = vunpack.c.l.b16 %v3409
    %v4370 = vunpack.c.l.b16 %v3410
    %v4371 = vunpack.c.h.b16 %v3410
    %v4372 = vunpack.c.l.b16 %v3411
    %v4373 = vunpack.c.l.b16 %v3412
    %v4374 = vunpack.c.h.b16 %v3412
    %v4375 = vunpack.c.l.b16 %v3413
    %v4376 = vunpack.c.l.b16 %v3414
    %v4377 = vunpack.c.h.b16 %v3414
    %v4378 = vunpack.c.l.b16 %v3415
    %v4379 = vunpack.c.l.b16 %v3416
    %v4380 = vunpack.c.h.b16 %v3416
    %v4381 = vunpack.c.l.b16 %v3417
    %v4382 = vunpack.c.l.b16 %v3418
    %v4383 = vunpack.c.h.b16 %v3418
    %v4384 = vunpack.c.l.b16 %v3419
    %v4385 = vunpack.c.l.b16 %v3420
    %v4386 = vunpack.c.h.b16 %v3420
    %v4387 = vunpack.c.l.b16 %v3421
    %v4388 = vunpack.c.l.b16 %v3422
    %v4389 = vunpack.c.h.b16 %v3422
    %v4390 = vunpack.c.l.b16 %v3423
    %v4391 = vunpack.c.l.b16 %v3424
    %v4392 = vunpack.c.h.b16 %v3424
    %v4393 = vunpack.c.l.b16 %v3425
    %v4394 = vunpack.c.l.b16 %v3426
    %v4395 = vunpack.c.h.b16 %v3426
    %v4396 = vunpack.c.l.b16 %v3427
    %v4397 = vunpack.c.l.b16 %v3428
    %v4398 = vunpack.c.h.b16 %v3428
    %v4399 = vunpack.c.l.b16 %v3429
    %v4400 = vunpack.c.l.b16 %v3430
    %v4401 = vunpack.c.h.b16 %v3430
    %v4402 = vunpack.c.l.b16 %v3431
    %v4403 = vunpack.c.l.b16 %v3432
    %v4404 = vunpack.c.h.b16 %v3432
    %v4405 = vunpack.c.l.b16 %v3433
    %v4406 = vunpack.c.l.b16 %v3434
    %v4407 = vunpack.c.h.b16 %v3434
    %v4408 = vunpack.c.l.b16 %v3435
    %v4409 = vunpack.c.l.b16 %v3436
    %v4410 = vunpack.c.h.b16 %v3436
    %v4411 = vunpack.c.l.b16 %v3437
    %v4412 = vunpack.c.l.b16 %v3438
    %v4413 = vunpack.c.h.b16 %v3438
    %v4414 = vunpack.c.l.b16 %v3439
    %v4415 = vunpack.c.l.b16 %v3440
    %v4416 = vunpack.c.h.b16 %v3440
    %v4417 = vunpack.c.l.b16 %v3441
    %v4418 = vunpack.c.l.b16 %v3442
    %v4419 = vunpack.c.h.b16 %v3442
    %v4420 = vunpack.c.l.b16 %v3443
    %v4421 = vunpack.c.l.b16 %v3444
    %v4422 = vunpack.c.h.b16 %v3444
    %v4423 = vunpack.c.l.b16 %v3445
    %v4424 = vunpack.c.l.b16 %v3446
    %v4425 = vunpack.c.h.b16 %v3446
    %v4426 = vunpack.c.l.b16 %v3447
    %v4427 = vunpack.c.l.b16 %v3448
    %v4428 = vunpack.c.h.b16 %v3448
    %v4429 = vunpack.c.l.b16 %v3449
    %v4430 = vunpack.c.l.b16 %v3450
    %v4431 = vunpack.c.h.b16 %v3450
    %v4432 = vunpack.c.l.b16 %v3451
    %v4433 = vunpack.c.l.b16 %v3452
    %v4434 = vunpack.c.h.b16 %v3452
    %v4435 = vunpack.c.l.b16 %v3453
    %v4436 = vunpack.c.l.b16 %v3454
    %v4437 = vunpack.c.h.b16 %v3454
    %v4438 = vunpack.c.l.b16 %v3455
    %v4439 = vunpack.c.l.b16 %v3456
    %v4440 = vunpack.c.h.b16 %v3456
    %v4441 = vunpack.c.l.b16 %v3457
    %v4442 = vunpack.c.l.b16 %v3458
    %v4443 = vunpack.c.h.b16 %v3458
    %v4444 = vunpack.c.l.b16 %v3459
    %v4445 = vunpack.c.l.b16 %v3460
    %v4446 = vunpack.c.h.b16 %v3460
    %v4447 = vunpack.c.l.b16 %v3461
    %v4448 = vunpack.c.l.b16 %v3462
    %v4449 = vunpack.c.h.b16 %v3462
    %v4450 = vunpack.c.l.b16 %v3463
    %v4451 = vunpack.c.l.b16 %v3464
    %v4452 = vunpack.c.h.b16 %v3464
    %v4453 = vunpack.c.l.b16 %v3465
    %v4454 = vunpack.c.l.b16 %v3466
    %v4455 = vunpack.c.h.b16 %v3466
    %v4456 = vunpack.c.l.b16 %v3467
    %v4457 = vunpack.c.l.b16 %v3468
    %v4458 = vunpack.c.h.b16 %v3468
    %v4459 = vunpack.c.l.b16 %v3469
    %v4460 = vunpack.c.l.b16 %v3470
    %v4461 = vunpack.c.h.b16 %v3470
    %v4462 = vunpack.c.l.b16 %v3471
    %v4463 = vunpack.c.l.b16 %v3472
    %v4464 = vunpack.c.h.b16 %v3472
    %v4465 = vunpack.c.l.b16 %v3473
    %v4466 = vunpack.c.l.b16 %v3474
    %v4467 = vunpack.c.h.b16 %v3474
    %v4468 = vunpack.c.l.b16 %v3475
    %v4469 = vunpack.c.l.b16 %v3476
    %v4470 = vunpack.c.h.b16 %v3476
    %v4471 = vunpack.c.l.b16 %v3477
    %v4472 = vunpack.c.l.b16 %v3478
    %v4473 = vunpack.c.h.b16 %v3478
    %v4474 = vunpack.c.l.b16 %v3479
    %v4475 = vunpack.c.l.b16 %v3480
    %v4476 = vunpack.c.h.b16 %v3480
    %v4477 = vunpack.c.l.b16 %v3481
    %v4478 = vunpack.c.l.b16 %v3482
    %v4479 = vunpack.c.h.b16 %v3482
    %v4480 = vunpack.c.l.b16 %v3483
    %v4481 = vunpack.c.l.b16 %v3484
    %v4482 = vunpack.c.h.b16 %v3484
    %v4483 = vunpack.c.l.b16 %v3485
    %v4484 = vunpack.c.l.b16 %v3486
    %v4485 = vunpack.c.h.b16 %v3486
    %v4486 = vunpack.c.l.b16 %v3487
    %v4487 = vunpack.c.l.b16 %v3488
    %v4488 = vunpack.c.h.b16 %v3488
    %v4489 = vunpack.c.l.b16 %v3489
    %v4490 = vunpack.c.l.b16 %v3490
    %v4491 = vunpack.c.h.b16 %v3490
    %v4492 = vunpack.c.l.b16 %v3491
    %v4493 = vunpack.c.l.b16 %v3492
    %v4494 = vunpack.c.h.b16 %v3492
    %v4495 = vunpack.c.l.b16 %v3493
    %v4496 = vunpack.c.l.b16 %v3494
    %v4497 = vunpack.c.h.b16 %v3494
    %v4498 = vunpack.c.l.b16 %v3495
    %v4499 = vunpack.c.l.b16 %v3496
    %v4500 = vunpack.c.h.b16 %v3496
    %v4501 = vunpack.c.l.b16 %v3497
    %v4502 = vunpack.c.l.b16 %v3498
    %v4503 = vunpack.c.h.b16 %v3498
    %v4504 = vunpack.c.l.b16 %v3499
    %v4505 = vpack.c.b16 %v4316, %v4313
    %v4506 = vpack.c.b16 %v4317, %v4314
    %v4507 = vpack.c.b16 %v4318, %v4315
    %v4508 = vpack.c.b16 %v4322, %v4319
    %v4509 = vpack.c.b16 %v4323, %v4320
    %v4510 = vpack.c.b16 %v4324, %v4321
    %v4511 = vpack.c.b16 %v4328, %v4325
    %v4512 = vpack.c.b16 %v4329, %v4326
    %v4513 = vpack.c.b16 %v4330, %v4327
    %v4514 = vpack.c.b16 %v4334, %v4331
    %v4515 = vpack.c.b16 %v4335, %v4332
    %v4516 = vpack.c.b16 %v4336, %v4333
    %v4517 = vpack.c.b16 %v4340, %v4337
    %v4518 = vpack.c.b16 %v4341, %v4338
    %v4519 = vpack.c.b16 %v4342, %v4339
    %v4520 = vpack.c.b16 %v4346, %v4343
    %v4521 = vpack.c.b16 %v4347, %v4344
    %v4522 = vpack.c.b16 %v4348, %v4345
    %v4523 = vpack.c.b16 %v4352, %v4349
    %v4524 = vpack.c.b16 %v4353, %v4350
    %v4525 = vpack.c.b16 %v4354, %v4351
    %v4526 = vpack.c.b16 %v4358, %v4355
    %v4527 = vpack.c.b16 %v4359, %v4356
    %v4528 = vpack.c.b16 %v4360, %v4357
    %v4529 = vpack.c.b16 %v4364, %v4361
    %v4530 = vpack.c.b16 %v4365, %v4362
    %v4531 = vpack.c.b16 %v4366, %v4363
    %v4532 = vpack.c.b16 %v4370, %v4367
    %v4533 = vpack.c.b16 %v4371, %v4368
    %v4534 = vpack.c.b16 %v4372, %v4369
    %v4535 = vpack.c.b16 %v4376, %v4373
    %v4536 = vpack.c.b16 %v4377, %v4374
    %v4537 = vpack.c.b16 %v4378, %v4375
    %v4538 = vpack.c.b16 %v4382, %v4379
    %v4539 = vpack.c.b16 %v4383, %v4380
    %v4540 = vpack.c.b16 %v4384, %v4381
    %v4541 = vpack.c.b16 %v4388, %v4385
    %v4542 = vpack.c.b16 %v4389, %v4386
    %v4543 = vpack.c.b16 %v4390, %v4387
    %v4544 = vpack.c.b16 %v4394, %v4391
    %v4545 = vpack.c.b16 %v4395, %v4392
    %v4546 = vpack.c.b16 %v4396, %v4393
    %v4547 = vpack.c.b16 %v4400, %v4397
    %v4548 = vpack.c.b16 %v4401, %v4398
    %v4549 = vpack.c.b16 %v4402, %v4399
    %v4550 = vpack.c.b16 %v4406, %v4403
    %v4551 = vpack.c.b16 %v4407, %v4404
    %v4552 = vpack.c.b16 %v4408, %v4405
    %v4553 = vpack.c.b16 %v4412, %v4409
    %v4554 = vpack.c.b16 %v4413, %v4410
    %v4555 = vpack.c.b16 %v4414, %v4411
    %v4556 = vpack.c.b16 %v4418, %v4415
    %v4557 = vpack.c.b16 %v4419, %v4416
    %v4558 = vpack.c.b16 %v4420, %v4417
    %v4559 = vpack.c.b16 %v4424, %v4421
    %v4560 = vpack.c.b16 %v4425, %v4422
    %v4561 = vpack.c.b16 %v4426, %v4423
    %v4562 = vpack.c.b16 %v4430, %v4427
    %v4563 = vpack.c.b16 %v4431, %v4428
    %v4564 = vpack.c.b16 %v4432, %v4429
    %v4565 = vpack.c.b16 %v4436, %v4433
    %v4566 = vpack.c.b16 %v4437, %v4434
    %v4567 = vpack.c.b16 %v4438, %v4435
    %v4568 = vpack.c.b16 %v4442, %v4439
    %v4569 = vpack.c.b16 %v4443, %v4440
    %v4570 = vpack.c.b16 %v4444, %v4441
    %v4571 = vpack.c.b16 %v4448, %v4445
    %v4572 = vpack.c.b16 %v4449, %v4446
    %v4573 = vpack.c.b16 %v4450, %v4447
    %v4574 = vpack.c.b16 %v4454, %v4451
    %v4575 = vpack.c.b16 %v4455, %v4452
    %v4576 = vpack.c.b16 %v4456, %v4453
    %v4577 = vpack.c.b16 %v4460, %v4457
    %v4578 = vpack.c.b16 %v4461, %v4458
    %v4579 = vpack.c.b16 %v4462, %v4459
    %v4580 = vpack.c.b16 %v4466, %v4463
    %v4581 = vpack.c.b16 %v4467, %v4464
    %v4582 = vpack.c.b16 %v4468, %v4465
    %v4583 = vpack.c.b16 %v4472, %v4469
    %v4584 = vpack.c.b16 %v4473, %v4470
    %v4585 = vpack.c.b16 %v4474, %v4471
    %v4586 = vpack.c.b16 %v4478, %v4475
    %v4587 = vpack.c.b16 %v4479, %v4476
    %v4588 = vpack.c.b16 %v4480, %v4477
    %v4589 = vpack.c.b16 %v4484, %v4481
    %v4590 = vpack.c.b16 %v4485, %v4482
    %v4591 = vpack.c.b16 %v4486, %v4483
    %v4592 = vpack.c.b16 %v4490, %v4487
    %v4593 = vpack.c.b16 %v4491, %v4488
    %v4594 = vpack.c.b16 %v4492, %v4489
    %v4595 = vpack.c.b16 %v4496, %v4493
    %v4596 = vpack.c.b16 %v4497, %v4494
    %v4597 = vpack.c.b16 %v4498, %v4495
    %v4598 = vpack.c.b16 %v4502, %v4499
    %v4599 = vpack.c.b16 %v4503, %v4500
    %v4600 = vpack.c.b16 %v4504, %v4501
    %4697 = vmatprep.subr.bf16.mxu0 %v4506
    %4698 = vmatpush1.bf16.msra.mxu0 %v4505
    %4699 = vmatprep.subr.bf16.mxu0 %v4509
    %4700 = vmatpush1.bf16.msra.mxu0 %v4508
    %4701 = vmatprep.subr.bf16.mxu0 %v4512
    %4702 = vmatpush1.bf16.msra.mxu0 %v4511
    %4703 = vmatprep.subr.bf16.mxu0 %v4515
    %4704 = vmatpush1.bf16.msra.mxu0 %v4514
    %4705 = vmatprep.subr.bf16.mxu0 %v4518
    %4706 = vmatpush1.bf16.msra.mxu0 %v4517
    %4707 = vmatprep.subr.bf16.mxu0 %v4521
    %4708 = vmatpush1.bf16.msra.mxu0 %v4520
    %4709 = vmatprep.subr.bf16.mxu0 %v4524
    %4710 = vmatpush1.bf16.msra.mxu0 %v4523
    %4711 = vmatprep.subr.bf16.mxu0 %v4527
    %4712 = vmatpush1.bf16.msra.mxu0 %v4526
    %4713 = vmatprep.subr.bf16.mxu0 %v4530
    %4714 = vmatpush1.bf16.msra.mxu0 %v4529
    %4715 = vmatprep.subr.bf16.mxu0 %v4533
    %4716 = vmatpush1.bf16.msra.mxu0 %v4532
    %4717 = vmatprep.subr.bf16.mxu0 %v4536
    %4718 = vmatpush1.bf16.msra.mxu0 %v4535
    %4719 = vmatprep.subr.bf16.mxu0 %v4539
    %4720 = vmatpush1.bf16.msra.mxu0 %v4538
    %4721 = vmatprep.subr.bf16.mxu0 %v4542
    %4722 = vmatpush1.bf16.msra.mxu0 %v4541
    %4723 = vmatprep.subr.bf16.mxu0 %v4545
    %4724 = vmatpush1.bf16.msra.mxu0 %v4544
    %4725 = vmatprep.subr.bf16.mxu0 %v4548
    %4726 = vmatpush1.bf16.msra.mxu0 %v4547
    %4727 = vmatprep.subr.bf16.mxu0 %v4551
    %4728 = vmatpush1.bf16.msra.mxu0 %v4550
    %4729 = vmatprep.mubr.bf16.mxu0 %v4182
    %4730 = vmatmul.mubr.bf16.gmra.mrb[0].mxu0 %v4181
    %v4731 = vpop.f32.mrb[0].mxu0
    %v4732 = vadd.f32 0.0, %v4731
    %v4733 = vpop.f32.mrb[0].mxu0
    %v4734 = vadd.f32 0.0, %v4733
    %v4735 = vpop.f32.mrb[0].mxu0
    %v4736 = vadd.f32 0.0, %v4735
    %v4737 = vpop.f32.mrb[0].mxu0
    %v4738 = vadd.f32 0.0, %v4737
    %4739 = vdwg.mxu0
    %4740 = vmatprep.subr.bf16.mxu0 %v4554
    %4741 = vmatpush1.bf16.msra.mxu0 %v4553
    %4742 = vmatprep.subr.bf16.mxu0 %v4557
    %4743 = vmatpush1.bf16.msra.mxu0 %v4556
    %4744 = vmatprep.subr.bf16.mxu0 %v4560
    %4745 = vmatpush1.bf16.msra.mxu0 %v4559
    %4746 = vmatprep.subr.bf16.mxu0 %v4563
    %4747 = vmatpush1.bf16.msra.mxu0 %v4562
    %4748 = vmatprep.subr.bf16.mxu0 %v4566
    %4749 = vmatpush1.bf16.msra.mxu0 %v4565
    %4750 = vmatprep.subr.bf16.mxu0 %v4569
    %4751 = vmatpush1.bf16.msra.mxu0 %v4568
    %4752 = vmatprep.subr.bf16.mxu0 %v4572
    %4753 = vmatpush1.bf16.msra.mxu0 %v4571
    %4754 = vmatprep.subr.bf16.mxu0 %v4575
    %4755 = vmatpush1.bf16.msra.mxu0 %v4574
    %4756 = vmatprep.subr.bf16.mxu0 %v4578
    %4757 = vmatpush1.bf16.msra.mxu0 %v4577
    %4758 = vmatprep.subr.bf16.mxu0 %v4581
    %4759 = vmatpush1.bf16.msra.mxu0 %v4580
    %4760 = vmatprep.subr.bf16.mxu0 %v4584
    %4761 = vmatpush1.bf16.msra.mxu0 %v4583
    %4762 = vmatprep.subr.bf16.mxu0 %v4587
    %4763 = vmatpush1.bf16.msra.mxu0 %v4586
    %4764 = vmatprep.subr.bf16.mxu0 %v4590
    %4765 = vmatpush1.bf16.msra.mxu0 %v4589
    %4766 = vmatprep.subr.bf16.mxu0 %v4593
    %4767 = vmatpush1.bf16.msra.mxu0 %v4592
    %4768 = vmatprep.subr.bf16.mxu0 %v4596
    %4769 = vmatpush1.bf16.msra.mxu0 %v4595
    %4770 = vmatprep.subr.bf16.mxu0 %v4599
    %4771 = vmatpush1.bf16.msra.mxu0 %v4598
    %4772 = vmatprep.mubr.bf16.mxu0 %v4184
    %4773 = vmatmul.mubr.bf16.gmra.mrb[0].mxu0 %v4183
    %v4774 = vpop.f32.mrb[0].mxu0
    %v4775 = vadd.f32 %v4732, %v4774
    %v4776 = vpop.f32.mrb[0].mxu0
    %v4777 = vadd.f32 %v4734, %v4776
    %v4778 = vpop.f32.mrb[0].mxu0
    %v4779 = vadd.f32 %v4736, %v4778
    %v4780 = vpop.f32.mrb[0].mxu0
    %v4781 = vadd.f32 %v4738, %v4780
    %4782 = vdwg.mxu0
    %4783 = vmatprep.subr.bf16.mxu0 0
    %4784 = vmatpush1.bf16.msra.mxu0 %v4507
    %4785 = vmatprep.subr.bf16.mxu0 0
    %4786 = vmatpush1.bf16.msra.mxu0 %v4510
    %4787 = vmatprep.subr.bf16.mxu0 0
    %4788 = vmatpush1.bf16.msra.mxu0 %v4513
    %4789 = vmatprep.subr.bf16.mxu0 0
    %4790 = vmatpush1.bf16.msra.mxu0 %v4516
    %4791 = vmatprep.subr.bf16.mxu0 0
    %4792 = vmatpush1.bf16.msra.mxu0 %v4519
    %4793 = vmatprep.subr.bf16.mxu0 0
    %4794 = vmatpush1.bf16.msra.mxu0 %v4522
    %4795 = vmatprep.subr.bf16.mxu0 0
    %4796 = vmatpush1.bf16.msra.mxu0 %v4525
    %4797 = vmatprep.subr.bf16.mxu0 0
    %4798 = vmatpush1.bf16.msra.mxu0 %v4528
    %4799 = vmatprep.subr.bf16.mxu0 0
    %4800 = vmatpush1.bf16.msra.mxu0 %v4531
    %4801 = vmatprep.subr.bf16.mxu0 0
    %4802 = vmatpush1.bf16.msra.mxu0 %v4534
    %4803 = vmatprep.subr.bf16.mxu0 0
    %4804 = vmatpush1.bf16.msra.mxu0 %v4537
    %4805 = vmatprep.subr.bf16.mxu0 0
    %4806 = vmatpush1.bf16.msra.mxu0 %v4540
    %4807 = vmatprep.subr.bf16.mxu0 0
    %4808 = vmatpush1.bf16.msra.mxu0 %v4543
    %4809 = vmatprep.subr.bf16.mxu0 0
    %4810 = vmatpush1.bf16.msra.mxu0 %v4546
    %4811 = vmatprep.subr.bf16.mxu0 0
    %4812 = vmatpush1.bf16.msra.mxu0 %v4549
    %4813 = vmatprep.subr.bf16.mxu0 0
    %4814 = vmatpush1.bf16.msra.mxu0 %v4552
    %4815 = vmatprep.mubr.bf16.mxu0 %v4182
    %4816 = vmatmul.mubr.bf16.gmra.mrb[0].mxu0 %v4181
    %v4817 = vpop.f32.mrb[0].mxu0
    %v4818 = vadd.f32 0.0, %v4817
    %v4819 = vpop.f32.mrb[0].mxu0
    %v4820 = vpop.f32.mrb[0].mxu0
    %v4821 = vadd.f32 0.0, %v4820
    %v4822 = vpop.f32.mrb[0].mxu0
    %4823 = vdwg.mxu0
    %4824 = vmatprep.subr.bf16.mxu0 0
    %4825 = vmatpush1.bf16.msra.mxu0 %v4555
    %4826 = vmatprep.subr.bf16.mxu0 0
    %4827 = vmatpush1.bf16.msra.mxu0 %v4558
    %4828 = vmatprep.subr.bf16.mxu0 0
    %4829 = vmatpush1.bf16.msra.mxu0 %v4561
    %4830 = vmatprep.subr.bf16.mxu0 0
    %4831 = vmatpush1.bf16.msra.mxu0 %v4564
    %4832 = vmatprep.subr.bf16.mxu0 0
    %4833 = vmatpush1.bf16.msra.mxu0 %v4567
    %4834 = vmatprep.subr.bf16.mxu0 0
    %4835 = vmatpush1.bf16.msra.mxu0 %v4570
    %4836 = vmatprep.subr.bf16.mxu0 0
    %4837 = vmatpush1.bf16.msra.mxu0 %v4573
    %4838 = vmatprep.subr.bf16.mxu0 0
    %4839 = vmatpush1.bf16.msra.mxu0 %v4576
    %4840 = vmatprep.subr.bf16.mxu0 0
    %4841 = vmatpush1.bf16.msra.mxu0 %v4579
    %4842 = vmatprep.subr.bf16.mxu0 0
    %4843 = vmatpush1.bf16.msra.mxu0 %v4582
    %4844 = vmatprep.subr.bf16.mxu0 0
    %4845 = vmatpush1.bf16.msra.mxu0 %v4585
    %4846 = vmatprep.subr.bf16.mxu0 0
    %4847 = vmatpush1.bf16.msra.mxu0 %v4588
    %4848 = vmatprep.subr.bf16.mxu0 0
    %4849 = vmatpush1.bf16.msra.mxu0 %v4591
    %4850 = vmatprep.subr.bf16.mxu0 0
    %4851 = vmatpush1.bf16.msra.mxu0 %v4594
    %4852 = vmatprep.subr.bf16.mxu0 0
    %4853 = vmatpush1.bf16.msra.mxu0 %v4597
    %4854 = vmatprep.subr.bf16.mxu0 0
    %4855 = vmatpush1.bf16.msra.mxu0 %v4600
    %4856 = vmatprep.mubr.bf16.mxu0 %v4184
    %4857 = vmatmul.mubr.bf16.gmra.mrb[0].mxu0 %v4183
    %v4858 = vpop.f32.mrb[0].mxu0
    %v4859 = vadd.f32 %v4818, %v4858
    %v4860 = vpop.f32.mrb[0].mxu0
    %v4861 = vpop.f32.mrb[0].mxu0
    %v4862 = vadd.f32 %v4821, %v4861
    %v4863 = vpop.f32.mrb[0].mxu0
    %4864 = vdwg.mxu0
    %v4865 = vadd.f32 %v3185, %v4775
    %v4866 = vadd.f32 %v3187, %v4777
    %v4867 = vadd.f32 %v3269, %v4859
    %v4868 = vadd.f32 %v3189, %v4779
    %v4869 = vadd.f32 %v3191, %v4781
    %v4870 = vadd.f32 %v3272, %v4862
    %v4871 = vld [vmem:[#allocation10] sm:$0x7]
    %v4873 = vlaneseq
    %v4874 = vshrl.u32 %v4873, 7
    %v4875 = vsub.s32 0, %v4874
    %v4876 = vrot.slane %v4871, %v4875
    %v4877 = vlaneseq
    %v4878 = vshrl.u32 %v4877, 7
    %v4879 = vsub.s32 1, %v4878
    %v4880 = vrot.slane %v4871, %v4879
    %v4881 = vlaneseq
    %v4882 = vshrl.u32 %v4881, 7
    %v4883 = vsub.s32 2, %v4882
    %v4884 = vrot.slane %v4871, %v4883
    %v4888 = vadd.f32 %v4865, %v4876
    %v4889 = vadd.f32 %v4866, %v4880
    %v4890 = vadd.f32 %v4867, %v4884
    %v4891 = vadd.f32 %v4868, %v4876
    %v4892 = vadd.f32 %v4869, %v4880
    %v4893 = vadd.f32 %v4870, %v4884
    %4894 = vst [vmem:[#allocation11] sm:$0xff] %v4888
    %4895 = vst [vmem:[#allocation11 + $0x8] sm:$0xff] %v4889
    %4896 = vst [vmem:[#allocation11 + $0x10] sm:$0xff] %v4890
    %4897 = vst [vmem:[#allocation11 + $0x18] sm:$0xff] %v4891
    %4898 = vst [vmem:[#allocation11 + $0x20] sm:$0xff] %v4892
    %4899 = vst [vmem:[#allocation11 + $0x28] sm:$0xff] %v4893
    // Predicated region
    $region42: #{feed_forward.1} parent=1 // pred_check
      _
    $region43: #{feed_forward.1} parent=1 // pred_check_branch
      %4901 = sbr.rel (0) target = $region45
    $region44: #{feed_forward.1} parent=1 // pred_region
      %s4903 = ssub.s32 768, 768
      %4904 = vsyncadd [#allocation4], %s4903
      %s4905 = sshll.u32 [#allocation11], 4
      %s4906 = int_to_ptr.vmem [resolvable:$true] %s4905
      %4911 = dma.vmem_to_hbm [thread:$0]  %s4906, 768, %s5, [#allocation4], 384, 384, 24
    $region45: #{feed_forward.1} parent=1 // pred_fallthru
      _
    // Predicated region
    $region46: #{feed_forward.1} parent=1 // pred_check
      _
    $region47: #{feed_forward.1} parent=1 // pred_check_branch
      %4913 = sbr.rel (0) target = $region49
    $region48: #{feed_forward.1} parent=1 // pred_region
      %4914 = dma.done [#allocation4], 768
    $region49: #{feed_forward.1} parent=1 // pred_fallthru
      _
    %4915 = vsyncpa [#allocation3], 1
    %4916 = vsyncpa [#allocation6], 1
    %4917 = vsyncpa [#allocation9], 1
    %4918 = vsyncpa [#allocation4], 1

</llo_original>
